<compile_context>
chip_gen: v7x
topology: tpu7x:2x2x1
jax: 0.10.0
libtpu: 0.0.40
codegen_flags: <defaults>
</compile_context>

<pallas_src>
import functools

import jax
import jax.numpy as jnp
from jax.experimental import pallas as pl
from jax.experimental.pallas import tpu as pltpu  # noqa: F401  (TPU backend registration)

# ----------------------------- model config -----------------------------
BATCH = 2
IMG_C, IMG_H, IMG_W = 3, 16, 16
PATCH = 4
NUM_PATCHES = (IMG_H // PATCH) * (IMG_W // PATCH)      # encoder.num_outputs = ncls = 16
ENC_DIM = 24                                           # encoder.output_embed_dim (!= n_embd -> Linear proj)
N_EMBD = 32                                            # decoder.n_embd
N_HEAD = 2
HEAD_DIM = N_EMBD // N_HEAD
VOCAB = 64
VOCAB_PAD = 128                                        # lm_head padded to a lane-dense 128-wide output
BLOCK_SIZE = 64                                        # decoder.block_size
SEQ_LEN = 8                                            # L = ids.size(-1)
MLP_HIDDEN = 4 * N_EMBD
USE_SOFT_PROMPTING = True
USE_CROSS_ATTN = True

# order in which parameter tensors are passed to the fused pallas_call
PARAM_ORDER = (
    "patch_w", "patch_b", "enc_proj", "wte", "wpe",
    "ln1_g", "ln1_b", "lnc_g", "lnc_b", "ln2_g", "ln2_b", "lnf_g", "lnf_b",
    "wqkv", "bqkv", "wo", "bwo",
    "cq", "bcq", "ckv", "bckv", "co", "bco",
    "fc_w", "fc_b", "pr_w", "pr_b", "lm_w",
)


# ----------------------------- fused Pallas kernel -----------------------------

def _fused_kernel(patches_ref, ids_ref,
                  patch_w_ref, patch_b_ref, enc_proj_ref,
                  wte_ref, wpe_ref,
                  ln1_g_ref, ln1_b_ref, lnc_g_ref, lnc_b_ref,
                  ln2_g_ref, ln2_b_ref, lnf_g_ref, lnf_b_ref,
                  wqkv_ref, bqkv_ref, wo_ref, bwo_ref,
                  cq_ref, bcq_ref, ckv_ref, bckv_ref, co_ref, bco_ref,
                  fc_w_ref, fc_b_ref, pr_w_ref, pr_b_ref, lm_w_ref,
                  enc_out_ref, logits_ref, hidden_ref,
                  *, B, ncls, L, Ttot, nhead, use_soft_prompting, use_cross_attn):
    f32 = jnp.float32
    E = wte_ref.shape[1]
    vocab = wte_ref.shape[0]
    dh = E // nhead
    scale = 1.0 / (dh ** 0.5)

    def ln(x, g_ref, b_ref):
        mean = jnp.mean(x, axis=-1, keepdims=True)
        var = jnp.mean(jnp.square(x - mean), axis=-1, keepdims=True)
        return (x - mean) * jax.lax.rsqrt(var + 1e-5) * g_ref[...] + b_ref[...]

    def attend(q, k, v, mask):
        # q @ k^T via dot_general (no materialized transpose), MXU f32 accumulation
        s = jax.lax.dot_general(q, k, (((1,), (1,)), ((), ())),
                                preferred_element_type=f32) * scale
        if mask is not None:
            s = s + mask
        s = s - jnp.max(s, axis=-1, keepdims=True)
        p = jnp.exp(s)
        # reciprocal on the EUP slot instead of a VPU divide
        p = p * pl.reciprocal(jnp.sum(p, axis=-1, keepdims=True), approx=True)
        return jnp.dot(p, v, preferred_element_type=f32)

    # ---------------- encoder: patch-embed conv-as-matmul + Linear(enc_dim, n_embd, bias=False) --
    enc = jnp.dot(patches_ref[...], patch_w_ref[...],
                  preferred_element_type=f32) + patch_b_ref[...]              # (B*ncls, ENC_DIM)
    enc = jnp.dot(enc, enc_proj_ref[...], preferred_element_type=f32)         # (B*ncls, E)
    enc_out_ref[...] = enc

    # ---------------- token embeddings (in-kernel one-hot matmul; no HBM gather) ----------------
    onehot = (ids_ref[...] ==
              jax.lax.broadcasted_iota(jnp.int32, (B * L, vocab), 1)).astype(f32)
    tok = jnp.dot(onehot, wte_ref[...], preferred_element_type=f32)           # (B*L, E)

    # ---------------- build decoder input sequence + positional embeddings ----------------
    pos = wpe_ref[0:Ttot, :]                                                  # (Ttot, E)
    rows = []
    for b in range(B):
        if use_soft_prompting:
            xb = jnp.concatenate([enc[b * ncls:(b + 1) * ncls, :],
                                  tok[b * L:(b + 1) * L, :]], axis=0)[:Ttot, :]
        else:
            xb = tok[b * L:(b + 1) * L, :][:Ttot, :]
        rows.append(xb + pos)
    x = jnp.concatenate(rows, axis=0)                                         # (B*Ttot, E)

    # ---------------- additive self-attention mask built in-kernel ----------------
    ri = jax.lax.broadcasted_iota(jnp.int32, (Ttot, Ttot), 0)
    ci = jax.lax.broadcasted_iota(jnp.int32, (Ttot, Ttot), 1)
    if use_soft_prompting:
        # prefix rows attend everywhere; text rows: causal over text only (matches reference
        # repeat()/masked_fill construction -- text rows do NOT attend to the image prefix).
        allowed = (ri < ncls) | ((ci >= ncls) & (ci <= ri))
    else:
        allowed = ci <= ri
    mask = jnp.where(allowed, 0.0, -1e30).astype(f32)                         # finite -> no NaN risk

    # ---------------- self attention ----------------
    xn = ln(x, ln1_g_ref, ln1_b_ref)
    qkv = jnp.dot(xn, wqkv_ref[...], preferred_element_type=f32) + bqkv_ref[...]   # (B*Ttot, 3E)
    wo = wo_ref[...]
    proj = []
    for b in range(B):
        r0 = b * Ttot
        acc = None
        for h in range(nhead):
            qh = qkv[r0:r0 + Ttot, h * dh:(h + 1) * dh]
            kh = qkv[r0:r0 + Ttot, E + h * dh:E + (h + 1) * dh]
            vh = qkv[r0:r0 + Ttot, 2 * E + h * dh:2 * E + (h + 1) * dh]
            ah = attend(qh, kh, vh, mask)                                     # (Ttot, dh)
            contrib = jnp.dot(ah, wo[h * dh:(h + 1) * dh, :],
                              preferred_element_type=f32)                     # merge-heads @ Wo
            acc = contrib if acc is None else acc + contrib
        proj.append(acc)
    x = x + jnp.concatenate(proj, axis=0) + bwo_ref[...]

    # ---------------- cross attention (K/V from encoder output, no mask) ----------------
    if use_cross_attn:
        xn = ln(x, lnc_g_ref, lnc_b_ref)
        qc = jnp.dot(xn, cq_ref[...], preferred_element_type=f32) + bcq_ref[...]       # (B*Ttot, E)
        kvc = jnp.dot(enc, ckv_ref[...], preferred_element_type=f32) + bckv_ref[...]   # (B*ncls, 2E)
        co = co_ref[...]
        proj = []
        for b in range(B):
            r0 = b * Ttot
            s0 = b * ncls
            acc = None
            for h in range(nhead):
                qh = qc[r0:r0 + Ttot, h * dh:(h + 1) * dh]
                kh = kvc[s0:s0 + ncls, h * dh:(h + 1) * dh]
                vh = kvc[s0:s0 + ncls, E + h * dh:E + (h + 1) * dh]
                ah = attend(qh, kh, vh, None)
                contrib = jnp.dot(ah, co[h * dh:(h + 1) * dh, :],
                                  preferred_element_type=f32)
                acc = contrib if acc is None else acc + contrib
            proj.append(acc)
        x = x + jnp.concatenate(proj, axis=0) + bco_ref[...]

    # ---------------- MLP ----------------
    xn = ln(x, ln2_g_ref, ln2_b_ref)
    h1 = jnp.dot(xn, fc_w_ref[...], preferred_element_type=f32) + fc_b_ref[...]
    h1 = jax.nn.gelu(h1, approximate=True)  # TODO(synk): reference nn.GELU() default is exact erf
    x = x + jnp.dot(h1, pr_w_ref[...], preferred_element_type=f32) + pr_b_ref[...]

    # ---------------- final layernorm, hidden state, lm_head (text rows only == logits[offset:]) --
    hidden = ln(x, lnf_g_ref, lnf_b_ref)
    hidden_ref[...] = hidden
    if use_soft_prompting:
        text = jnp.concatenate(
            [hidden[b * Ttot + ncls:(b + 1) * Ttot, :] for b in range(B)], axis=0)
    else:
        text = hidden
    # lane-dense (…,128) store; padded lanes are zero-weights and sliced off in the wrapper
    logits_ref[...] = jnp.dot(text, lm_w_ref[...], preferred_element_type=f32)


# ----------------------------- parameters -----------------------------

def init_params(key):
    def nrm(k, shape, scale=0.02):
        return scale * jax.random.normal(k, shape, jnp.float32)

    ks = iter(jax.random.split(key, 24))
    p = {}
    # encoder: Conv2d(C, ENC_DIM, kernel=stride=PATCH) as matmul + Linear(ENC_DIM, N_EMBD, bias=False)
    p["patch_w"] = nrm(next(ks), (IMG_C * PATCH * PATCH, ENC_DIM))
    p["patch_b"] = nrm(next(ks), (1, ENC_DIM))
    p["enc_proj"] = nrm(next(ks), (ENC_DIM, N_EMBD))
    # decoder embeddings
    p["wte"] = nrm(next(ks), (VOCAB, N_EMBD))
    p["wpe"] = nrm(next(ks), (BLOCK_SIZE, N_EMBD))
    # layer norms
    for name in ("ln1", "lnc", "ln2", "lnf"):
        p[name + "_g"] = jnp.ones((1, N_EMBD), jnp.float32)
        p[name + "_b"] = jnp.zeros((1, N_EMBD), jnp.float32)
    # fused self-attn QKV (wq|wk|wv) and output projection
    p["wqkv"] = nrm(next(ks), (N_EMBD, 3 * N_EMBD))
    p["bqkv"] = nrm(next(ks), (1, 3 * N_EMBD))
    p["wo"] = nrm(next(ks), (N_EMBD, N_EMBD))
    p["bwo"] = nrm(next(ks), (1, N_EMBD))
    # cross attention: Q projection, fused K|V projection, output projection
    p["cq"] = nrm(next(ks), (N_EMBD, N_EMBD))
    p["bcq"] = nrm(next(ks), (1, N_EMBD))
    p["ckv"] = nrm(next(ks), (N_EMBD, 2 * N_EMBD))
    p["bckv"] = nrm(next(ks), (1, 2 * N_EMBD))
    p["co"] = nrm(next(ks), (N_EMBD, N_EMBD))
    p["bco"] = nrm(next(ks), (1, N_EMBD))
    # MLP
    p["fc_w"] = nrm(next(ks), (N_EMBD, MLP_HIDDEN))
    p["fc_b"] = nrm(next(ks), (1, MLP_HIDDEN))
    p["pr_w"] = nrm(next(ks), (MLP_HIDDEN, N_EMBD))
    p["pr_b"] = nrm(next(ks), (1, N_EMBD))
    # lm_head (no bias), zero-padded to a lane-dense 128-wide output
    lm = nrm(next(ks), (N_EMBD, VOCAB))
    p["lm_w"] = jnp.zeros((N_EMBD, VOCAB_PAD), jnp.float32).at[:, :VOCAB].set(lm)
    return p


# ----------------------------- VisionEncoderDecoder.forward -----------------------------

def vision_encoder_decoder_forward(params, images, ids, attn_msk=None, encoder_output=None):
    # TODO(synk): user-supplied attn_msk and precomputed encoder_output fast-paths are not
    # plumbed into the fused kernel; only the default (None) path of the reference forward
    # is implemented (mask is generated in-kernel).
    assert attn_msk is None and encoder_output is None

    B, C, H, W = images.shape
    Hp, Wp = H // PATCH, W // PATCH
    ncls = Hp * Wp
    L = ids.shape[-1]
    if USE_SOFT_PROMPTING:
        Ttot = min(ncls + L, BLOCK_SIZE)
        Tkeep = Ttot - ncls
    else:
        Ttot = L
        Tkeep = L

    # one-time layout plumbing in XLA: NCHW image -> patch-major rows, ids -> column vector
    patches = images.reshape(B, C, Hp, PATCH, Wp, PATCH).transpose(0, 2, 4, 1, 3, 5)
    patches = patches.reshape(B * ncls, C * PATCH * PATCH).astype(jnp.float32)
    ids_col = ids.reshape(B * L, 1).astype(jnp.int32)

    kernel = functools.partial(
        _fused_kernel, B=B, ncls=ncls, L=L, Ttot=Ttot, nhead=N_HEAD,
        use_soft_prompting=USE_SOFT_PROMPTING, use_cross_attn=USE_CROSS_ATTN)

    enc2d, logits_pad, hidden2d = pl.pallas_call(
        kernel,
        out_shape=(
            jax.ShapeDtypeStruct((B * ncls, N_EMBD), jnp.float32),      # encoder output
            jax.ShapeDtypeStruct((B * Tkeep, VOCAB_PAD), jnp.float32),  # lane-dense logits
            jax.ShapeDtypeStruct((B * Ttot, N_EMBD), jnp.float32),      # hidden state
        ),
    )(patches, ids_col, *[params[k] for k in PARAM_ORDER])

    encoder_output = enc2d.reshape(B, ncls, N_EMBD)
    logits = logits_pad[:, :VOCAB].reshape(B, Tkeep, VOCAB)
    hidden = hidden2d.reshape(B, Ttot, N_EMBD)
    return encoder_output, logits, hidden


# ----------------------------- main -----------------------------

if __name__ == "__main__":
    key = jax.random.PRNGKey(0)
    k_param, k_img, k_ids = jax.random.split(key, 3)
    params = init_params(k_param)
    images = jax.random.normal(k_img, (BATCH, IMG_C, IMG_H, IMG_W), jnp.float32)
    ids = jax.random.randint(k_ids, (BATCH, SEQ_LEN), 0, VOCAB, jnp.int32)

    forward = jax.jit(vision_encoder_decoder_forward)
    enc_out, logits, hidden = forward(params, images, ids)
    jax.block_until_ready((enc_out, logits, hidden))

    assert enc_out.shape == (BATCH, NUM_PATCHES, N_EMBD)
    assert logits.shape == (BATCH, SEQ_LEN, VOCAB)
    assert hidden.shape == (BATCH, NUM_PATCHES + SEQ_LEN, N_EMBD)
    assert not bool(jnp.any(jnp.isnan(logits)))
    print("KERNEL_OK")
</pallas_src>

<mosaic_0001>
module attributes {stable_mosaic.version = 11 : i64} {
  func.func @_fused_kernel(%arg0: memref<32x48xf32, #tpu.memory_space<vmem>>, %arg1: memref<16x1xi32, #tpu.memory_space<vmem>>, %arg2: memref<48x24xf32, #tpu.memory_space<vmem>>, %arg3: memref<1x24xf32, #tpu.memory_space<vmem>>, %arg4: memref<24x32xf32, #tpu.memory_space<vmem>>, %arg5: memref<64x32xf32, #tpu.memory_space<vmem>>, %arg6: memref<64x32xf32, #tpu.memory_space<vmem>>, %arg7: memref<1x32xf32, #tpu.memory_space<vmem>>, %arg8: memref<1x32xf32, #tpu.memory_space<vmem>>, %arg9: memref<1x32xf32, #tpu.memory_space<vmem>>, %arg10: memref<1x32xf32, #tpu.memory_space<vmem>>, %arg11: memref<1x32xf32, #tpu.memory_space<vmem>>, %arg12: memref<1x32xf32, #tpu.memory_space<vmem>>, %arg13: memref<1x32xf32, #tpu.memory_space<vmem>>, %arg14: memref<1x32xf32, #tpu.memory_space<vmem>>, %arg15: memref<32x96xf32, #tpu.memory_space<vmem>>, %arg16: memref<1x96xf32, #tpu.memory_space<vmem>>, %arg17: memref<32x32xf32, #tpu.memory_space<vmem>>, %arg18: memref<1x32xf32, #tpu.memory_space<vmem>>, %arg19: memref<32x32xf32, #tpu.memory_space<vmem>>, %arg20: memref<1x32xf32, #tpu.memory_space<vmem>>, %arg21: memref<32x64xf32, #tpu.memory_space<vmem>>, %arg22: memref<1x64xf32, #tpu.memory_space<vmem>>, %arg23: memref<32x32xf32, #tpu.memory_space<vmem>>, %arg24: memref<1x32xf32, #tpu.memory_space<vmem>>, %arg25: memref<32x128xf32, #tpu.memory_space<vmem>>, %arg26: memref<1x128xf32, #tpu.memory_space<vmem>>, %arg27: memref<128x32xf32, #tpu.memory_space<vmem>>, %arg28: memref<1x32xf32, #tpu.memory_space<vmem>>, %arg29: memref<32x128xf32, #tpu.memory_space<vmem>>, %arg30: memref<32x32xf32, #tpu.memory_space<vmem>>, %arg31: memref<16x128xf32, #tpu.memory_space<vmem>>, %arg32: memref<48x32xf32, #tpu.memory_space<vmem>>) attributes {dimension_semantics = [], scalar_prefetch = 0 : i64, scratch_operands = 0 : i64, tpu.core_type = #tpu.core_type<tc>} {
    %c0 = arith.constant 0 : index
    %c0_0 = arith.constant 0 : index
    %0 = vector.load %arg0[%c0, %c0_0] : memref<32x48xf32, #tpu.memory_space<vmem>>, vector<32x48xf32>
    %c0_1 = arith.constant 0 : index
    %c0_2 = arith.constant 0 : index
    %1 = vector.load %arg2[%c0_1, %c0_2] : memref<48x24xf32, #tpu.memory_space<vmem>>, vector<48x24xf32>
    %cst = arith.constant dense<0.000000e+00> : vector<32x24xf32>
    %2 = tpu.matmul %0, %1, %cst {dimension_numbers = #tpu.dot_dimension_numbers<[1], [0], [0], [1], [0, 0, 1, 1], [], []>} : vector<32x48xf32>, vector<48x24xf32>, vector<32x24xf32> -> vector<32x24xf32>
    %c0_3 = arith.constant 0 : index
    %c0_4 = arith.constant 0 : index
    %3 = vector.load %arg3[%c0_3, %c0_4] : memref<1x24xf32, #tpu.memory_space<vmem>>, vector<1x24xf32>
    %4 = vector.broadcast %3 : vector<1x24xf32> to vector<32x24xf32>
    %5 = arith.addf %2, %4 : vector<32x24xf32>
    %c0_5 = arith.constant 0 : index
    %c0_6 = arith.constant 0 : index
    %6 = vector.load %arg4[%c0_5, %c0_6] : memref<24x32xf32, #tpu.memory_space<vmem>>, vector<24x32xf32>
    %cst_7 = arith.constant dense<0.000000e+00> : vector<32x32xf32>
    %7 = tpu.matmul %5, %6, %cst_7 {dimension_numbers = #tpu.dot_dimension_numbers<[1], [0], [0], [1], [0, 0, 1, 1], [], []>} : vector<32x24xf32>, vector<24x32xf32>, vector<32x32xf32> -> vector<32x32xf32>
    %c0_8 = arith.constant 0 : index
    %c0_9 = arith.constant 0 : index
    %8 = vector.load %arg30[%c0_8, %c0_9] : memref<32x32xf32, #tpu.memory_space<vmem>>, vector<32x32xf32>
    tpu.vector_store %arg30[%c0_8, %c0_9], %7 {strides = array<i32>} : memref<32x32xf32, #tpu.memory_space<vmem>>, vector<32x32xf32>,
    %c0_10 = arith.constant 0 : index
    %c0_11 = arith.constant 0 : index
    %9 = vector.load %arg1[%c0_10, %c0_11] : memref<16x1xi32, #tpu.memory_space<vmem>>, vector<16x1xi32>
    %10 = tpu.iota {dimensions = array<i32: 1>} : vector<16x64xi32>
    %11 = vector.broadcast %9 : vector<16x1xi32> to vector<16x64xi32>
    %12 = arith.cmpi eq, %11, %10 : vector<16x64xi32>
    %13 = arith.extui %12 : vector<16x64xi1> to vector<16x64xi32>
    %14 = arith.sitofp %13 : vector<16x64xi32> to vector<16x64xf32>
    %c0_12 = arith.constant 0 : index
    %c0_13 = arith.constant 0 : index
    %15 = vector.load %arg5[%c0_12, %c0_13] : memref<64x32xf32, #tpu.memory_space<vmem>>, vector<64x32xf32>
    %cst_14 = arith.constant dense<0.000000e+00> : vector<16x32xf32>
    %16 = tpu.matmul %14, %15, %cst_14 {dimension_numbers = #tpu.dot_dimension_numbers<[1], [0], [0], [1], [0, 0, 1, 1], [], []>} : vector<16x64xf32>, vector<64x32xf32>, vector<16x32xf32> -> vector<16x32xf32>
    %c0_15 = arith.constant 0 : index
    %c0_16 = arith.constant 0 : index
    %17 = vector.load %arg6[%c0_15, %c0_16] : memref<64x32xf32, #tpu.memory_space<vmem>>, vector<24x32xf32>
    %18 = vector.extract_strided_slice %7 {offsets = [0, 0], sizes = [16, 32], strides = [1, 1]} : vector<32x32xf32> to vector<16x32xf32>
    %19 = vector.extract_strided_slice %16 {offsets = [0, 0], sizes = [8, 32], strides = [1, 1]} : vector<16x32xf32> to vector<8x32xf32>
    %20 = tpu.concatenate %18, %19 in 0 : vector<16x32xf32>, vector<8x32xf32> -> vector<24x32xf32>
    %21 = arith.addf %20, %17 : vector<24x32xf32>
    %22 = vector.extract_strided_slice %7 {offsets = [16, 0], sizes = [16, 32], strides = [1, 1]} : vector<32x32xf32> to vector<16x32xf32>
    %23 = vector.extract_strided_slice %16 {offsets = [8, 0], sizes = [8, 32], strides = [1, 1]} : vector<16x32xf32> to vector<8x32xf32>
    %24 = tpu.concatenate %22, %23 in 0 : vector<16x32xf32>, vector<8x32xf32> -> vector<24x32xf32>
    %25 = arith.addf %24, %17 : vector<24x32xf32>
    %26 = tpu.concatenate %21, %25 in 0 : vector<24x32xf32>, vector<24x32xf32> -> vector<48x32xf32>
    %27 = tpu.iota {dimensions = array<i32: 0>} : vector<24x24xi32>
    %28 = tpu.iota {dimensions = array<i32: 1>} : vector<24x24xi32>
    %c16_i32 = arith.constant 16 : i32
    %29 = vector.broadcast %c16_i32 : i32 to vector<24x24xi32>
    %30 = arith.cmpi slt, %27, %29 : vector<24x24xi32>
    %c16_i32_17 = arith.constant 16 : i32
    %31 = vector.broadcast %c16_i32_17 : i32 to vector<24x24xi32>
    %32 = arith.cmpi sge, %28, %31 : vector<24x24xi32>
    %33 = arith.cmpi sle, %28, %27 : vector<24x24xi32>
    %34 = arith.andi %32, %33 : vector<24x24xi1>
    %35 = arith.ori %30, %34 : vector<24x24xi1>
    %cst_18 = arith.constant 0.000000e+00 : f32
    %cst_19 = arith.constant -1.000000e+30 : f32
    %36 = vector.broadcast %cst_18 : f32 to vector<24x24xf32>
    %37 = vector.broadcast %cst_19 : f32 to vector<24x24xf32>
    %38 = arith.select %35, %36, %37 : vector<24x24xi1>, vector<24x24xf32>
    %cst_20 = arith.constant dense<0.000000e+00> : vector<48xf32>
    %39 = vector.multi_reduction <add>, %26, %cst_20 [1] : vector<48x32xf32> to vector<48xf32>
    %40 = vector.shape_cast %39 : vector<48xf32> to vector<48x1xf32>
    %cst_21 = arith.constant 3.200000e+01 : f32
    %41 = vector.broadcast %cst_21 : f32 to vector<48x1xf32>
    %42 = arith.divf %40, %41 : vector<48x1xf32>
    %43 = vector.broadcast %42 : vector<48x1xf32> to vector<48x32xf32>
    %44 = arith.subf %26, %43 : vector<48x32xf32>
    %45 = arith.mulf %44, %44 : vector<48x32xf32>
    %cst_22 = arith.constant dense<0.000000e+00> : vector<48xf32>
    %46 = vector.multi_reduction <add>, %45, %cst_22 [1] : vector<48x32xf32> to vector<48xf32>
    %47 = vector.shape_cast %46 : vector<48xf32> to vector<48x1xf32>
    %cst_23 = arith.constant 3.200000e+01 : f32
    %48 = vector.broadcast %cst_23 : f32 to vector<48x1xf32>
    %49 = arith.divf %47, %48 : vector<48x1xf32>
    %50 = vector.broadcast %42 : vector<48x1xf32> to vector<48x32xf32>
    %51 = arith.subf %26, %50 : vector<48x32xf32>
    %cst_24 = arith.constant 9.99999974E-6 : f32
    %52 = vector.broadcast %cst_24 : f32 to vector<48x1xf32>
    %53 = arith.addf %49, %52 : vector<48x1xf32>
    %54 = math.rsqrt %53 : vector<48x1xf32>
    %55 = vector.broadcast %54 : vector<48x1xf32> to vector<48x32xf32>
    %56 = arith.mulf %51, %55 : vector<48x32xf32>
    %c0_25 = arith.constant 0 : index
    %c0_26 = arith.constant 0 : index
    %57 = vector.load %arg7[%c0_25, %c0_26] : memref<1x32xf32, #tpu.memory_space<vmem>>, vector<1x32xf32>
    %58 = vector.broadcast %57 : vector<1x32xf32> to vector<48x32xf32>
    %59 = arith.mulf %56, %58 : vector<48x32xf32>
    %c0_27 = arith.constant 0 : index
    %c0_28 = arith.constant 0 : index
    %60 = vector.load %arg8[%c0_27, %c0_28] : memref<1x32xf32, #tpu.memory_space<vmem>>, vector<1x32xf32>
    %61 = vector.broadcast %60 : vector<1x32xf32> to vector<48x32xf32>
    %62 = arith.addf %59, %61 : vector<48x32xf32>
    %c0_29 = arith.constant 0 : index
    %c0_30 = arith.constant 0 : index
    %63 = vector.load %arg15[%c0_29, %c0_30] : memref<32x96xf32, #tpu.memory_space<vmem>>, vector<32x96xf32>
    %cst_31 = arith.constant dense<0.000000e+00> : vector<48x96xf32>
    %64 = tpu.matmul %62, %63, %cst_31 {dimension_numbers = #tpu.dot_dimension_numbers<[1], [0], [0], [1], [0, 0, 1, 1], [], []>} : vector<48x32xf32>, vector<32x96xf32>, vector<48x96xf32> -> vector<48x96xf32>
    %c0_32 = arith.constant 0 : index
    %c0_33 = arith.constant 0 : index
    %65 = vector.load %arg16[%c0_32, %c0_33] : memref<1x96xf32, #tpu.memory_space<vmem>>, vector<1x96xf32>
    %66 = vector.broadcast %65 : vector<1x96xf32> to vector<48x96xf32>
    %67 = arith.addf %64, %66 : vector<48x96xf32>
    %c0_34 = arith.constant 0 : index
    %c0_35 = arith.constant 0 : index
    %68 = vector.load %arg17[%c0_34, %c0_35] : memref<32x32xf32, #tpu.memory_space<vmem>>, vector<32x32xf32>
    %69 = vector.extract_strided_slice %67 {offsets = [0, 0], sizes = [24, 16], strides = [1, 1]} : vector<48x96xf32> to vector<24x16xf32>
    %70 = vector.extract_strided_slice %67 {offsets = [0, 32], sizes = [24, 16], strides = [1, 1]} : vector<48x96xf32> to vector<24x16xf32>
    %71 = vector.extract_strided_slice %67 {offsets = [0, 64], sizes = [24, 16], strides = [1, 1]} : vector<48x96xf32> to vector<24x16xf32>
    %cst_36 = arith.constant dense<0.000000e+00> : vector<24x24xf32>
    %72 = tpu.matmul %69, %70, %cst_36 {dimension_numbers = #tpu.dot_dimension_numbers<[1], [1], [0], [0], [0, 0, 1, 0], [], []>} : vector<24x16xf32>, vector<24x16xf32>, vector<24x24xf32> -> vector<24x24xf32>
    %cst_37 = arith.constant 2.500000e-01 : f32
    %73 = vector.broadcast %cst_37 : f32 to vector<24x24xf32>
    %74 = arith.mulf %72, %73 : vector<24x24xf32>
    %75 = arith.addf %74, %38 : vector<24x24xf32>
    %cst_38 = arith.constant dense<0xFF800000> : vector<24xf32>
    %76 = vector.multi_reduction <maximumf>, %75, %cst_38 [1] : vector<24x24xf32> to vector<24xf32>
    %77 = vector.shape_cast %76 : vector<24xf32> to vector<24x1xf32>
    %78 = vector.broadcast %77 : vector<24x1xf32> to vector<24x24xf32>
    %79 = arith.subf %75, %78 : vector<24x24xf32>
    %80 = math.exp %79 : vector<24x24xf32>
    %cst_39 = arith.constant dense<0.000000e+00> : vector<24xf32>
    %81 = vector.multi_reduction <add>, %80, %cst_39 [1] : vector<24x24xf32> to vector<24xf32>
    %82 = vector.shape_cast %81 : vector<24xf32> to vector<24x1xf32>
    %83 = tpu.reciprocal %82 {approx = true} : vector<24x1xf32> -> vector<24x1xf32>
    %84 = vector.broadcast %83 : vector<24x1xf32> to vector<24x24xf32>
    %85 = arith.mulf %80, %84 : vector<24x24xf32>
    %cst_40 = arith.constant dense<0.000000e+00> : vector<24x16xf32>
    %86 = tpu.matmul %85, %71, %cst_40 {dimension_numbers = #tpu.dot_dimension_numbers<[1], [0], [0], [1], [0, 0, 1, 1], [], []>} : vector<24x24xf32>, vector<24x16xf32>, vector<24x16xf32> -> vector<24x16xf32>
    %87 = vector.extract_strided_slice %68 {offsets = [0, 0], sizes = [16, 32], strides = [1, 1]} : vector<32x32xf32> to vector<16x32xf32>
    %cst_41 = arith.constant dense<0.000000e+00> : vector<24x32xf32>
    %88 = tpu.matmul %86, %87, %cst_41 {dimension_numbers = #tpu.dot_dimension_numbers<[1], [0], [0], [1], [0, 0, 1, 1], [], []>} : vector<24x16xf32>, vector<16x32xf32>, vector<24x32xf32> -> vector<24x32xf32>
    %89 = vector.extract_strided_slice %67 {offsets = [0, 16], sizes = [24, 16], strides = [1, 1]} : vector<48x96xf32> to vector<24x16xf32>
    %90 = vector.extract_strided_slice %67 {offsets = [0, 48], sizes = [24, 16], strides = [1, 1]} : vector<48x96xf32> to vector<24x16xf32>
    %91 = vector.extract_strided_slice %67 {offsets = [0, 80], sizes = [24, 16], strides = [1, 1]} : vector<48x96xf32> to vector<24x16xf32>
    %cst_42 = arith.constant dense<0.000000e+00> : vector<24x24xf32>
    %92 = tpu.matmul %89, %90, %cst_42 {dimension_numbers = #tpu.dot_dimension_numbers<[1], [1], [0], [0], [0, 0, 1, 0], [], []>} : vector<24x16xf32>, vector<24x16xf32>, vector<24x24xf32> -> vector<24x24xf32>
    %cst_43 = arith.constant 2.500000e-01 : f32
    %93 = vector.broadcast %cst_43 : f32 to vector<24x24xf32>
    %94 = arith.mulf %92, %93 : vector<24x24xf32>
    %95 = arith.addf %94, %38 : vector<24x24xf32>
    %cst_44 = arith.constant dense<0xFF800000> : vector<24xf32>
    %96 = vector.multi_reduction <maximumf>, %95, %cst_44 [1] : vector<24x24xf32> to vector<24xf32>
    %97 = vector.shape_cast %96 : vector<24xf32> to vector<24x1xf32>
    %98 = vector.broadcast %97 : vector<24x1xf32> to vector<24x24xf32>
    %99 = arith.subf %95, %98 : vector<24x24xf32>
    %100 = math.exp %99 : vector<24x24xf32>
    %cst_45 = arith.constant dense<0.000000e+00> : vector<24xf32>
    %101 = vector.multi_reduction <add>, %100, %cst_45 [1] : vector<24x24xf32> to vector<24xf32>
    %102 = vector.shape_cast %101 : vector<24xf32> to vector<24x1xf32>
    %103 = tpu.reciprocal %102 {approx = true} : vector<24x1xf32> -> vector<24x1xf32>
    %104 = vector.broadcast %103 : vector<24x1xf32> to vector<24x24xf32>
    %105 = arith.mulf %100, %104 : vector<24x24xf32>
    %cst_46 = arith.constant dense<0.000000e+00> : vector<24x16xf32>
    %106 = tpu.matmul %105, %91, %cst_46 {dimension_numbers = #tpu.dot_dimension_numbers<[1], [0], [0], [1], [0, 0, 1, 1], [], []>} : vector<24x24xf32>, vector<24x16xf32>, vector<24x16xf32> -> vector<24x16xf32>
    %107 = vector.extract_strided_slice %68 {offsets = [16, 0], sizes = [16, 32], strides = [1, 1]} : vector<32x32xf32> to vector<16x32xf32>
    %cst_47 = arith.constant dense<0.000000e+00> : vector<24x32xf32>
    %108 = tpu.matmul %106, %107, %cst_47 {dimension_numbers = #tpu.dot_dimension_numbers<[1], [0], [0], [1], [0, 0, 1, 1], [], []>} : vector<24x16xf32>, vector<16x32xf32>, vector<24x32xf32> -> vector<24x32xf32>
    %109 = arith.addf %88, %108 : vector<24x32xf32>
    %110 = vector.extract_strided_slice %67 {offsets = [24, 0], sizes = [24, 16], strides = [1, 1]} : vector<48x96xf32> to vector<24x16xf32>
    %111 = vector.extract_strided_slice %67 {offsets = [24, 32], sizes = [24, 16], strides = [1, 1]} : vector<48x96xf32> to vector<24x16xf32>
    %112 = vector.extract_strided_slice %67 {offsets = [24, 64], sizes = [24, 16], strides = [1, 1]} : vector<48x96xf32> to vector<24x16xf32>
    %cst_48 = arith.constant dense<0.000000e+00> : vector<24x24xf32>
    %113 = tpu.matmul %110, %111, %cst_48 {dimension_numbers = #tpu.dot_dimension_numbers<[1], [1], [0], [0], [0, 0, 1, 0], [], []>} : vector<24x16xf32>, vector<24x16xf32>, vector<24x24xf32> -> vector<24x24xf32>
    %cst_49 = arith.constant 2.500000e-01 : f32
    %114 = vector.broadcast %cst_49 : f32 to vector<24x24xf32>
    %115 = arith.mulf %113, %114 : vector<24x24xf32>
    %116 = arith.addf %115, %38 : vector<24x24xf32>
    %cst_50 = arith.constant dense<0xFF800000> : vector<24xf32>
    %117 = vector.multi_reduction <maximumf>, %116, %cst_50 [1] : vector<24x24xf32> to vector<24xf32>
    %118 = vector.shape_cast %117 : vector<24xf32> to vector<24x1xf32>
    %119 = vector.broadcast %118 : vector<24x1xf32> to vector<24x24xf32>
    %120 = arith.subf %116, %119 : vector<24x24xf32>
    %121 = math.exp %120 : vector<24x24xf32>
    %cst_51 = arith.constant dense<0.000000e+00> : vector<24xf32>
    %122 = vector.multi_reduction <add>, %121, %cst_51 [1] : vector<24x24xf32> to vector<24xf32>
    %123 = vector.shape_cast %122 : vector<24xf32> to vector<24x1xf32>
    %124 = tpu.reciprocal %123 {approx = true} : vector<24x1xf32> -> vector<24x1xf32>
    %125 = vector.broadcast %124 : vector<24x1xf32> to vector<24x24xf32>
    %126 = arith.mulf %121, %125 : vector<24x24xf32>
    %cst_52 = arith.constant dense<0.000000e+00> : vector<24x16xf32>
    %127 = tpu.matmul %126, %112, %cst_52 {dimension_numbers = #tpu.dot_dimension_numbers<[1], [0], [0], [1], [0, 0, 1, 1], [], []>} : vector<24x24xf32>, vector<24x16xf32>, vector<24x16xf32> -> vector<24x16xf32>
    %128 = vector.extract_strided_slice %68 {offsets = [0, 0], sizes = [16, 32], strides = [1, 1]} : vector<32x32xf32> to vector<16x32xf32>
    %cst_53 = arith.constant dense<0.000000e+00> : vector<24x32xf32>
    %129 = tpu.matmul %127, %128, %cst_53 {dimension_numbers = #tpu.dot_dimension_numbers<[1], [0], [0], [1], [0, 0, 1, 1], [], []>} : vector<24x16xf32>, vector<16x32xf32>, vector<24x32xf32> -> vector<24x32xf32>
    %130 = vector.extract_strided_slice %67 {offsets = [24, 16], sizes = [24, 16], strides = [1, 1]} : vector<48x96xf32> to vector<24x16xf32>
    %131 = vector.extract_strided_slice %67 {offsets = [24, 48], sizes = [24, 16], strides = [1, 1]} : vector<48x96xf32> to vector<24x16xf32>
    %132 = vector.extract_strided_slice %67 {offsets = [24, 80], sizes = [24, 16], strides = [1, 1]} : vector<48x96xf32> to vector<24x16xf32>
    %cst_54 = arith.constant dense<0.000000e+00> : vector<24x24xf32>
    %133 = tpu.matmul %130, %131, %cst_54 {dimension_numbers = #tpu.dot_dimension_numbers<[1], [1], [0], [0], [0, 0, 1, 0], [], []>} : vector<24x16xf32>, vector<24x16xf32>, vector<24x24xf32> -> vector<24x24xf32>
    %cst_55 = arith.constant 2.500000e-01 : f32
    %134 = vector.broadcast %cst_55 : f32 to vector<24x24xf32>
    %135 = arith.mulf %133, %134 : vector<24x24xf32>
    %136 = arith.addf %135, %38 : vector<24x24xf32>
    %cst_56 = arith.constant dense<0xFF800000> : vector<24xf32>
    %137 = vector.multi_reduction <maximumf>, %136, %cst_56 [1] : vector<24x24xf32> to vector<24xf32>
    %138 = vector.shape_cast %137 : vector<24xf32> to vector<24x1xf32>
    %139 = vector.broadcast %138 : vector<24x1xf32> to vector<24x24xf32>
    %140 = arith.subf %136, %139 : vector<24x24xf32>
    %141 = math.exp %140 : vector<24x24xf32>
    %cst_57 = arith.constant dense<0.000000e+00> : vector<24xf32>
    %142 = vector.multi_reduction <add>, %141, %cst_57 [1] : vector<24x24xf32> to vector<24xf32>
    %143 = vector.shape_cast %142 : vector<24xf32> to vector<24x1xf32>
    %144 = tpu.reciprocal %143 {approx = true} : vector<24x1xf32> -> vector<24x1xf32>
    %145 = vector.broadcast %144 : vector<24x1xf32> to vector<24x24xf32>
    %146 = arith.mulf %141, %145 : vector<24x24xf32>
    %cst_58 = arith.constant dense<0.000000e+00> : vector<24x16xf32>
    %147 = tpu.matmul %146, %132, %cst_58 {dimension_numbers = #tpu.dot_dimension_numbers<[1], [0], [0], [1], [0, 0, 1, 1], [], []>} : vector<24x24xf32>, vector<24x16xf32>, vector<24x16xf32> -> vector<24x16xf32>
    %148 = vector.extract_strided_slice %68 {offsets = [16, 0], sizes = [16, 32], strides = [1, 1]} : vector<32x32xf32> to vector<16x32xf32>
    %cst_59 = arith.constant dense<0.000000e+00> : vector<24x32xf32>
    %149 = tpu.matmul %147, %148, %cst_59 {dimension_numbers = #tpu.dot_dimension_numbers<[1], [0], [0], [1], [0, 0, 1, 1], [], []>} : vector<24x16xf32>, vector<16x32xf32>, vector<24x32xf32> -> vector<24x32xf32>
    %150 = arith.addf %129, %149 : vector<24x32xf32>
    %151 = tpu.concatenate %109, %150 in 0 : vector<24x32xf32>, vector<24x32xf32> -> vector<48x32xf32>
    %152 = arith.addf %26, %151 : vector<48x32xf32>
    %c0_60 = arith.constant 0 : index
    %c0_61 = arith.constant 0 : index
    %153 = vector.load %arg18[%c0_60, %c0_61] : memref<1x32xf32, #tpu.memory_space<vmem>>, vector<1x32xf32>
    %154 = vector.broadcast %153 : vector<1x32xf32> to vector<48x32xf32>
    %155 = arith.addf %152, %154 : vector<48x32xf32>
    %cst_62 = arith.constant dense<0.000000e+00> : vector<48xf32>
    %156 = vector.multi_reduction <add>, %155, %cst_62 [1] : vector<48x32xf32> to vector<48xf32>
    %157 = vector.shape_cast %156 : vector<48xf32> to vector<48x1xf32>
    %cst_63 = arith.constant 3.200000e+01 : f32
    %158 = vector.broadcast %cst_63 : f32 to vector<48x1xf32>
    %159 = arith.divf %157, %158 : vector<48x1xf32>
    %160 = vector.broadcast %159 : vector<48x1xf32> to vector<48x32xf32>
    %161 = arith.subf %155, %160 : vector<48x32xf32>
    %162 = arith.mulf %161, %161 : vector<48x32xf32>
    %cst_64 = arith.constant dense<0.000000e+00> : vector<48xf32>
    %163 = vector.multi_reduction <add>, %162, %cst_64 [1] : vector<48x32xf32> to vector<48xf32>
    %164 = vector.shape_cast %163 : vector<48xf32> to vector<48x1xf32>
    %cst_65 = arith.constant 3.200000e+01 : f32
    %165 = vector.broadcast %cst_65 : f32 to vector<48x1xf32>
    %166 = arith.divf %164, %165 : vector<48x1xf32>
    %167 = vector.broadcast %159 : vector<48x1xf32> to vector<48x32xf32>
    %168 = arith.subf %155, %167 : vector<48x32xf32>
    %cst_66 = arith.constant 9.99999974E-6 : f32
    %169 = vector.broadcast %cst_66 : f32 to vector<48x1xf32>
    %170 = arith.addf %166, %169 : vector<48x1xf32>
    %171 = math.rsqrt %170 : vector<48x1xf32>
    %172 = vector.broadcast %171 : vector<48x1xf32> to vector<48x32xf32>
    %173 = arith.mulf %168, %172 : vector<48x32xf32>
    %c0_67 = arith.constant 0 : index
    %c0_68 = arith.constant 0 : index
    %174 = vector.load %arg9[%c0_67, %c0_68] : memref<1x32xf32, #tpu.memory_space<vmem>>, vector<1x32xf32>
    %175 = vector.broadcast %174 : vector<1x32xf32> to vector<48x32xf32>
    %176 = arith.mulf %173, %175 : vector<48x32xf32>
    %c0_69 = arith.constant 0 : index
    %c0_70 = arith.constant 0 : index
    %177 = vector.load %arg10[%c0_69, %c0_70] : memref<1x32xf32, #tpu.memory_space<vmem>>, vector<1x32xf32>
    %178 = vector.broadcast %177 : vector<1x32xf32> to vector<48x32xf32>
    %179 = arith.addf %176, %178 : vector<48x32xf32>
    %c0_71 = arith.constant 0 : index
    %c0_72 = arith.constant 0 : index
    %180 = vector.load %arg19[%c0_71, %c0_72] : memref<32x32xf32, #tpu.memory_space<vmem>>, vector<32x32xf32>
    %cst_73 = arith.constant dense<0.000000e+00> : vector<48x32xf32>
    %181 = tpu.matmul %179, %180, %cst_73 {dimension_numbers = #tpu.dot_dimension_numbers<[1], [0], [0], [1], [0, 0, 1, 1], [], []>} : vector<48x32xf32>, vector<32x32xf32>, vector<48x32xf32> -> vector<48x32xf32>
    %c0_74 = arith.constant 0 : index
    %c0_75 = arith.constant 0 : index
    %182 = vector.load %arg20[%c0_74, %c0_75] : memref<1x32xf32, #tpu.memory_space<vmem>>, vector<1x32xf32>
    %183 = vector.broadcast %182 : vector<1x32xf32> to vector<48x32xf32>
    %184 = arith.addf %181, %183 : vector<48x32xf32>
    %c0_76 = arith.constant 0 : index
    %c0_77 = arith.constant 0 : index
    %185 = vector.load %arg21[%c0_76, %c0_77] : memref<32x64xf32, #tpu.memory_space<vmem>>, vector<32x64xf32>
    %cst_78 = arith.constant dense<0.000000e+00> : vector<32x64xf32>
    %186 = tpu.matmul %7, %185, %cst_78 {dimension_numbers = #tpu.dot_dimension_numbers<[1], [0], [0], [1], [0, 0, 1, 1], [], []>} : vector<32x32xf32>, vector<32x64xf32>, vector<32x64xf32> -> vector<32x64xf32>
    %c0_79 = arith.constant 0 : index
    %c0_80 = arith.constant 0 : index
    %187 = vector.load %arg22[%c0_79, %c0_80] : memref<1x64xf32, #tpu.memory_space<vmem>>, vector<1x64xf32>
    %188 = vector.broadcast %187 : vector<1x64xf32> to vector<32x64xf32>
    %189 = arith.addf %186, %188 : vector<32x64xf32>
    %c0_81 = arith.constant 0 : index
    %c0_82 = arith.constant 0 : index
    %190 = vector.load %arg23[%c0_81, %c0_82] : memref<32x32xf32, #tpu.memory_space<vmem>>, vector<32x32xf32>
    %191 = vector.extract_strided_slice %184 {offsets = [0, 0], sizes = [24, 16], strides = [1, 1]} : vector<48x32xf32> to vector<24x16xf32>
    %192 = vector.extract_strided_slice %189 {offsets = [0, 0], sizes = [16, 16], strides = [1, 1]} : vector<32x64xf32> to vector<16x16xf32>
    %193 = vector.extract_strided_slice %189 {offsets = [0, 32], sizes = [16, 16], strides = [1, 1]} : vector<32x64xf32> to vector<16x16xf32>
    %cst_83 = arith.constant dense<0.000000e+00> : vector<24x16xf32>
    %194 = tpu.matmul %191, %192, %cst_83 {dimension_numbers = #tpu.dot_dimension_numbers<[1], [1], [0], [0], [0, 0, 1, 0], [], []>} : vector<24x16xf32>, vector<16x16xf32>, vector<24x16xf32> -> vector<24x16xf32>
    %cst_84 = arith.constant 2.500000e-01 : f32
    %195 = vector.broadcast %cst_84 : f32 to vector<24x16xf32>
    %196 = arith.mulf %194, %195 : vector<24x16xf32>
    %cst_85 = arith.constant dense<0xFF800000> : vector<24xf32>
    %197 = vector.multi_reduction <maximumf>, %196, %cst_85 [1] : vector<24x16xf32> to vector<24xf32>
    %198 = vector.shape_cast %197 : vector<24xf32> to vector<24x1xf32>
    %199 = vector.broadcast %198 : vector<24x1xf32> to vector<24x16xf32>
    %200 = arith.subf %196, %199 : vector<24x16xf32>
    %201 = math.exp %200 : vector<24x16xf32>
    %cst_86 = arith.constant dense<0.000000e+00> : vector<24xf32>
    %202 = vector.multi_reduction <add>, %201, %cst_86 [1] : vector<24x16xf32> to vector<24xf32>
    %203 = vector.shape_cast %202 : vector<24xf32> to vector<24x1xf32>
    %204 = tpu.reciprocal %203 {approx = true} : vector<24x1xf32> -> vector<24x1xf32>
    %205 = vector.broadcast %204 : vector<24x1xf32> to vector<24x16xf32>
    %206 = arith.mulf %201, %205 : vector<24x16xf32>
    %cst_87 = arith.constant dense<0.000000e+00> : vector<24x16xf32>
    %207 = tpu.matmul %206, %193, %cst_87 {dimension_numbers = #tpu.dot_dimension_numbers<[1], [0], [0], [1], [0, 0, 1, 1], [], []>} : vector<24x16xf32>, vector<16x16xf32>, vector<24x16xf32> -> vector<24x16xf32>
    %208 = vector.extract_strided_slice %190 {offsets = [0, 0], sizes = [16, 32], strides = [1, 1]} : vector<32x32xf32> to vector<16x32xf32>
    %cst_88 = arith.constant dense<0.000000e+00> : vector<24x32xf32>
    %209 = tpu.matmul %207, %208, %cst_88 {dimension_numbers = #tpu.dot_dimension_numbers<[1], [0], [0], [1], [0, 0, 1, 1], [], []>} : vector<24x16xf32>, vector<16x32xf32>, vector<24x32xf32> -> vector<24x32xf32>
    %210 = vector.extract_strided_slice %184 {offsets = [0, 16], sizes = [24, 16], strides = [1, 1]} : vector<48x32xf32> to vector<24x16xf32>
    %211 = vector.extract_strided_slice %189 {offsets = [0, 16], sizes = [16, 16], strides = [1, 1]} : vector<32x64xf32> to vector<16x16xf32>
    %212 = vector.extract_strided_slice %189 {offsets = [0, 48], sizes = [16, 16], strides = [1, 1]} : vector<32x64xf32> to vector<16x16xf32>
    %cst_89 = arith.constant dense<0.000000e+00> : vector<24x16xf32>
    %213 = tpu.matmul %210, %211, %cst_89 {dimension_numbers = #tpu.dot_dimension_numbers<[1], [1], [0], [0], [0, 0, 1, 0], [], []>} : vector<24x16xf32>, vector<16x16xf32>, vector<24x16xf32> -> vector<24x16xf32>
    %cst_90 = arith.constant 2.500000e-01 : f32
    %214 = vector.broadcast %cst_90 : f32 to vector<24x16xf32>
    %215 = arith.mulf %213, %214 : vector<24x16xf32>
    %cst_91 = arith.constant dense<0xFF800000> : vector<24xf32>
    %216 = vector.multi_reduction <maximumf>, %215, %cst_91 [1] : vector<24x16xf32> to vector<24xf32>
    %217 = vector.shape_cast %216 : vector<24xf32> to vector<24x1xf32>
    %218 = vector.broadcast %217 : vector<24x1xf32> to vector<24x16xf32>
    %219 = arith.subf %215, %218 : vector<24x16xf32>
    %220 = math.exp %219 : vector<24x16xf32>
    %cst_92 = arith.constant dense<0.000000e+00> : vector<24xf32>
    %221 = vector.multi_reduction <add>, %220, %cst_92 [1] : vector<24x16xf32> to vector<24xf32>
    %222 = vector.shape_cast %221 : vector<24xf32> to vector<24x1xf32>
    %223 = tpu.reciprocal %222 {approx = true} : vector<24x1xf32> -> vector<24x1xf32>
    %224 = vector.broadcast %223 : vector<24x1xf32> to vector<24x16xf32>
    %225 = arith.mulf %220, %224 : vector<24x16xf32>
    %cst_93 = arith.constant dense<0.000000e+00> : vector<24x16xf32>
    %226 = tpu.matmul %225, %212, %cst_93 {dimension_numbers = #tpu.dot_dimension_numbers<[1], [0], [0], [1], [0, 0, 1, 1], [], []>} : vector<24x16xf32>, vector<16x16xf32>, vector<24x16xf32> -> vector<24x16xf32>
    %227 = vector.extract_strided_slice %190 {offsets = [16, 0], sizes = [16, 32], strides = [1, 1]} : vector<32x32xf32> to vector<16x32xf32>
    %cst_94 = arith.constant dense<0.000000e+00> : vector<24x32xf32>
    %228 = tpu.matmul %226, %227, %cst_94 {dimension_numbers = #tpu.dot_dimension_numbers<[1], [0], [0], [1], [0, 0, 1, 1], [], []>} : vector<24x16xf32>, vector<16x32xf32>, vector<24x32xf32> -> vector<24x32xf32>
    %229 = arith.addf %209, %228 : vector<24x32xf32>
    %230 = vector.extract_strided_slice %184 {offsets = [24, 0], sizes = [24, 16], strides = [1, 1]} : vector<48x32xf32> to vector<24x16xf32>
    %231 = vector.extract_strided_slice %189 {offsets = [16, 0], sizes = [16, 16], strides = [1, 1]} : vector<32x64xf32> to vector<16x16xf32>
    %232 = vector.extract_strided_slice %189 {offsets = [16, 32], sizes = [16, 16], strides = [1, 1]} : vector<32x64xf32> to vector<16x16xf32>
    %cst_95 = arith.constant dense<0.000000e+00> : vector<24x16xf32>
    %233 = tpu.matmul %230, %231, %cst_95 {dimension_numbers = #tpu.dot_dimension_numbers<[1], [1], [0], [0], [0, 0, 1, 0], [], []>} : vector<24x16xf32>, vector<16x16xf32>, vector<24x16xf32> -> vector<24x16xf32>
    %cst_96 = arith.constant 2.500000e-01 : f32
    %234 = vector.broadcast %cst_96 : f32 to vector<24x16xf32>
    %235 = arith.mulf %233, %234 : vector<24x16xf32>
    %cst_97 = arith.constant dense<0xFF800000> : vector<24xf32>
    %236 = vector.multi_reduction <maximumf>, %235, %cst_97 [1] : vector<24x16xf32> to vector<24xf32>
    %237 = vector.shape_cast %236 : vector<24xf32> to vector<24x1xf32>
    %238 = vector.broadcast %237 : vector<24x1xf32> to vector<24x16xf32>
    %239 = arith.subf %235, %238 : vector<24x16xf32>
    %240 = math.exp %239 : vector<24x16xf32>
    %cst_98 = arith.constant dense<0.000000e+00> : vector<24xf32>
    %241 = vector.multi_reduction <add>, %240, %cst_98 [1] : vector<24x16xf32> to vector<24xf32>
    %242 = vector.shape_cast %241 : vector<24xf32> to vector<24x1xf32>
    %243 = tpu.reciprocal %242 {approx = true} : vector<24x1xf32> -> vector<24x1xf32>
    %244 = vector.broadcast %243 : vector<24x1xf32> to vector<24x16xf32>
    %245 = arith.mulf %240, %244 : vector<24x16xf32>
    %cst_99 = arith.constant dense<0.000000e+00> : vector<24x16xf32>
    %246 = tpu.matmul %245, %232, %cst_99 {dimension_numbers = #tpu.dot_dimension_numbers<[1], [0], [0], [1], [0, 0, 1, 1], [], []>} : vector<24x16xf32>, vector<16x16xf32>, vector<24x16xf32> -> vector<24x16xf32>
    %247 = vector.extract_strided_slice %190 {offsets = [0, 0], sizes = [16, 32], strides = [1, 1]} : vector<32x32xf32> to vector<16x32xf32>
    %cst_100 = arith.constant dense<0.000000e+00> : vector<24x32xf32>
    %248 = tpu.matmul %246, %247, %cst_100 {dimension_numbers = #tpu.dot_dimension_numbers<[1], [0], [0], [1], [0, 0, 1, 1], [], []>} : vector<24x16xf32>, vector<16x32xf32>, vector<24x32xf32> -> vector<24x32xf32>
    %249 = vector.extract_strided_slice %184 {offsets = [24, 16], sizes = [24, 16], strides = [1, 1]} : vector<48x32xf32> to vector<24x16xf32>
    %250 = vector.extract_strided_slice %189 {offsets = [16, 16], sizes = [16, 16], strides = [1, 1]} : vector<32x64xf32> to vector<16x16xf32>
    %251 = vector.extract_strided_slice %189 {offsets = [16, 48], sizes = [16, 16], strides = [1, 1]} : vector<32x64xf32> to vector<16x16xf32>
    %cst_101 = arith.constant dense<0.000000e+00> : vector<24x16xf32>
    %252 = tpu.matmul %249, %250, %cst_101 {dimension_numbers = #tpu.dot_dimension_numbers<[1], [1], [0], [0], [0, 0, 1, 0], [], []>} : vector<24x16xf32>, vector<16x16xf32>, vector<24x16xf32> -> vector<24x16xf32>
    %cst_102 = arith.constant 2.500000e-01 : f32
    %253 = vector.broadcast %cst_102 : f32 to vector<24x16xf32>
    %254 = arith.mulf %252, %253 : vector<24x16xf32>
    %cst_103 = arith.constant dense<0xFF800000> : vector<24xf32>
    %255 = vector.multi_reduction <maximumf>, %254, %cst_103 [1] : vector<24x16xf32> to vector<24xf32>
    %256 = vector.shape_cast %255 : vector<24xf32> to vector<24x1xf32>
    %257 = vector.broadcast %256 : vector<24x1xf32> to vector<24x16xf32>
    %258 = arith.subf %254, %257 : vector<24x16xf32>
    %259 = math.exp %258 : vector<24x16xf32>
    %cst_104 = arith.constant dense<0.000000e+00> : vector<24xf32>
    %260 = vector.multi_reduction <add>, %259, %cst_104 [1] : vector<24x16xf32> to vector<24xf32>
    %261 = vector.shape_cast %260 : vector<24xf32> to vector<24x1xf32>
    %262 = tpu.reciprocal %261 {approx = true} : vector<24x1xf32> -> vector<24x1xf32>
    %263 = vector.broadcast %262 : vector<24x1xf32> to vector<24x16xf32>
    %264 = arith.mulf %259, %263 : vector<24x16xf32>
    %cst_105 = arith.constant dense<0.000000e+00> : vector<24x16xf32>
    %265 = tpu.matmul %264, %251, %cst_105 {dimension_numbers = #tpu.dot_dimension_numbers<[1], [0], [0], [1], [0, 0, 1, 1], [], []>} : vector<24x16xf32>, vector<16x16xf32>, vector<24x16xf32> -> vector<24x16xf32>
    %266 = vector.extract_strided_slice %190 {offsets = [16, 0], sizes = [16, 32], strides = [1, 1]} : vector<32x32xf32> to vector<16x32xf32>
    %cst_106 = arith.constant dense<0.000000e+00> : vector<24x32xf32>
    %267 = tpu.matmul %265, %266, %cst_106 {dimension_numbers = #tpu.dot_dimension_numbers<[1], [0], [0], [1], [0, 0, 1, 1], [], []>} : vector<24x16xf32>, vector<16x32xf32>, vector<24x32xf32> -> vector<24x32xf32>
    %268 = arith.addf %248, %267 : vector<24x32xf32>
    %269 = tpu.concatenate %229, %268 in 0 : vector<24x32xf32>, vector<24x32xf32> -> vector<48x32xf32>
    %270 = arith.addf %155, %269 : vector<48x32xf32>
    %c0_107 = arith.constant 0 : index
    %c0_108 = arith.constant 0 : index
    %271 = vector.load %arg24[%c0_107, %c0_108] : memref<1x32xf32, #tpu.memory_space<vmem>>, vector<1x32xf32>
    %272 = vector.broadcast %271 : vector<1x32xf32> to vector<48x32xf32>
    %273 = arith.addf %270, %272 : vector<48x32xf32>
    %cst_109 = arith.constant dense<0.000000e+00> : vector<48xf32>
    %274 = vector.multi_reduction <add>, %273, %cst_109 [1] : vector<48x32xf32> to vector<48xf32>
    %275 = vector.shape_cast %274 : vector<48xf32> to vector<48x1xf32>
    %cst_110 = arith.constant 3.200000e+01 : f32
    %276 = vector.broadcast %cst_110 : f32 to vector<48x1xf32>
    %277 = arith.divf %275, %276 : vector<48x1xf32>
    %278 = vector.broadcast %277 : vector<48x1xf32> to vector<48x32xf32>
    %279 = arith.subf %273, %278 : vector<48x32xf32>
    %280 = arith.mulf %279, %279 : vector<48x32xf32>
    %cst_111 = arith.constant dense<0.000000e+00> : vector<48xf32>
    %281 = vector.multi_reduction <add>, %280, %cst_111 [1] : vector<48x32xf32> to vector<48xf32>
    %282 = vector.shape_cast %281 : vector<48xf32> to vector<48x1xf32>
    %cst_112 = arith.constant 3.200000e+01 : f32
    %283 = vector.broadcast %cst_112 : f32 to vector<48x1xf32>
    %284 = arith.divf %282, %283 : vector<48x1xf32>
    %285 = vector.broadcast %277 : vector<48x1xf32> to vector<48x32xf32>
    %286 = arith.subf %273, %285 : vector<48x32xf32>
    %cst_113 = arith.constant 9.99999974E-6 : f32
    %287 = vector.broadcast %cst_113 : f32 to vector<48x1xf32>
    %288 = arith.addf %284, %287 : vector<48x1xf32>
    %289 = math.rsqrt %288 : vector<48x1xf32>
    %290 = vector.broadcast %289 : vector<48x1xf32> to vector<48x32xf32>
    %291 = arith.mulf %286, %290 : vector<48x32xf32>
    %c0_114 = arith.constant 0 : index
    %c0_115 = arith.constant 0 : index
    %292 = vector.load %arg11[%c0_114, %c0_115] : memref<1x32xf32, #tpu.memory_space<vmem>>, vector<1x32xf32>
    %293 = vector.broadcast %292 : vector<1x32xf32> to vector<48x32xf32>
    %294 = arith.mulf %291, %293 : vector<48x32xf32>
    %c0_116 = arith.constant 0 : index
    %c0_117 = arith.constant 0 : index
    %295 = vector.load %arg12[%c0_116, %c0_117] : memref<1x32xf32, #tpu.memory_space<vmem>>, vector<1x32xf32>
    %296 = vector.broadcast %295 : vector<1x32xf32> to vector<48x32xf32>
    %297 = arith.addf %294, %296 : vector<48x32xf32>
    %c0_118 = arith.constant 0 : index
    %c0_119 = arith.constant 0 : index
    %298 = vector.load %arg25[%c0_118, %c0_119] : memref<32x128xf32, #tpu.memory_space<vmem>>, vector<32x128xf32>
    %cst_120 = arith.constant dense<0.000000e+00> : vector<48x128xf32>
    %299 = tpu.matmul %297, %298, %cst_120 {dimension_numbers = #tpu.dot_dimension_numbers<[1], [0], [0], [1], [0, 0, 1, 1], [], []>} : vector<48x32xf32>, vector<32x128xf32>, vector<48x128xf32> -> vector<48x128xf32>
    %c0_121 = arith.constant 0 : index
    %c0_122 = arith.constant 0 : index
    %300 = vector.load %arg26[%c0_121, %c0_122] : memref<1x128xf32, #tpu.memory_space<vmem>>, vector<1x128xf32>
    %301 = vector.broadcast %300 : vector<1x128xf32> to vector<48x128xf32>
    %302 = arith.addf %299, %301 : vector<48x128xf32>
    %303 = arith.mulf %302, %302 : vector<48x128xf32>
    %304 = arith.mulf %302, %303 : vector<48x128xf32>
    %cst_123 = arith.constant 4.471500e-02 : f32
    %305 = vector.broadcast %cst_123 : f32 to vector<48x128xf32>
    %306 = arith.mulf %305, %304 : vector<48x128xf32>
    %307 = arith.addf %302, %306 : vector<48x128xf32>
    %cst_124 = arith.constant 0.797884583 : f32
    %308 = vector.broadcast %cst_124 : f32 to vector<48x128xf32>
    %309 = arith.mulf %308, %307 : vector<48x128xf32>
    %310 = math.tanh %309 : vector<48x128xf32>
    %cst_125 = arith.constant 1.000000e+00 : f32
    %311 = vector.broadcast %cst_125 : f32 to vector<48x128xf32>
    %312 = arith.addf %311, %310 : vector<48x128xf32>
    %cst_126 = arith.constant 5.000000e-01 : f32
    %313 = vector.broadcast %cst_126 : f32 to vector<48x128xf32>
    %314 = arith.mulf %313, %312 : vector<48x128xf32>
    %315 = arith.mulf %302, %314 : vector<48x128xf32>
    %c0_127 = arith.constant 0 : index
    %c0_128 = arith.constant 0 : index
    %316 = vector.load %arg27[%c0_127, %c0_128] : memref<128x32xf32, #tpu.memory_space<vmem>>, vector<128x32xf32>
    %cst_129 = arith.constant dense<0.000000e+00> : vector<48x32xf32>
    %317 = tpu.matmul %315, %316, %cst_129 {dimension_numbers = #tpu.dot_dimension_numbers<[1], [0], [0], [1], [0, 0, 1, 1], [], []>} : vector<48x128xf32>, vector<128x32xf32>, vector<48x32xf32> -> vector<48x32xf32>
    %318 = arith.addf %273, %317 : vector<48x32xf32>
    %c0_130 = arith.constant 0 : index
    %c0_131 = arith.constant 0 : index
    %319 = vector.load %arg28[%c0_130, %c0_131] : memref<1x32xf32, #tpu.memory_space<vmem>>, vector<1x32xf32>
    %320 = vector.broadcast %319 : vector<1x32xf32> to vector<48x32xf32>
    %321 = arith.addf %318, %320 : vector<48x32xf32>
    %cst_132 = arith.constant dense<0.000000e+00> : vector<48xf32>
    %322 = vector.multi_reduction <add>, %321, %cst_132 [1] : vector<48x32xf32> to vector<48xf32>
    %323 = vector.shape_cast %322 : vector<48xf32> to vector<48x1xf32>
    %cst_133 = arith.constant 3.200000e+01 : f32
    %324 = vector.broadcast %cst_133 : f32 to vector<48x1xf32>
    %325 = arith.divf %323, %324 : vector<48x1xf32>
    %326 = vector.broadcast %325 : vector<48x1xf32> to vector<48x32xf32>
    %327 = arith.subf %321, %326 : vector<48x32xf32>
    %328 = arith.mulf %327, %327 : vector<48x32xf32>
    %cst_134 = arith.constant dense<0.000000e+00> : vector<48xf32>
    %329 = vector.multi_reduction <add>, %328, %cst_134 [1] : vector<48x32xf32> to vector<48xf32>
    %330 = vector.shape_cast %329 : vector<48xf32> to vector<48x1xf32>
    %cst_135 = arith.constant 3.200000e+01 : f32
    %331 = vector.broadcast %cst_135 : f32 to vector<48x1xf32>
    %332 = arith.divf %330, %331 : vector<48x1xf32>
    %333 = vector.broadcast %325 : vector<48x1xf32> to vector<48x32xf32>
    %334 = arith.subf %321, %333 : vector<48x32xf32>
    %cst_136 = arith.constant 9.99999974E-6 : f32
    %335 = vector.broadcast %cst_136 : f32 to vector<48x1xf32>
    %336 = arith.addf %332, %335 : vector<48x1xf32>
    %337 = math.rsqrt %336 : vector<48x1xf32>
    %338 = vector.broadcast %337 : vector<48x1xf32> to vector<48x32xf32>
    %339 = arith.mulf %334, %338 : vector<48x32xf32>
    %c0_137 = arith.constant 0 : index
    %c0_138 = arith.constant 0 : index
    %340 = vector.load %arg13[%c0_137, %c0_138] : memref<1x32xf32, #tpu.memory_space<vmem>>, vector<1x32xf32>
    %341 = vector.broadcast %340 : vector<1x32xf32> to vector<48x32xf32>
    %342 = arith.mulf %339, %341 : vector<48x32xf32>
    %c0_139 = arith.constant 0 : index
    %c0_140 = arith.constant 0 : index
    %343 = vector.load %arg14[%c0_139, %c0_140] : memref<1x32xf32, #tpu.memory_space<vmem>>, vector<1x32xf32>
    %344 = vector.broadcast %343 : vector<1x32xf32> to vector<48x32xf32>
    %345 = arith.addf %342, %344 : vector<48x32xf32>
    %c0_141 = arith.constant 0 : index
    %c0_142 = arith.constant 0 : index
    %346 = vector.load %arg32[%c0_141, %c0_142] : memref<48x32xf32, #tpu.memory_space<vmem>>, vector<48x32xf32>
    tpu.vector_store %arg32[%c0_141, %c0_142], %345 {strides = array<i32>} : memref<48x32xf32, #tpu.memory_space<vmem>>, vector<48x32xf32>,
    %347 = vector.extract_strided_slice %345 {offsets = [16, 0], sizes = [8, 32], strides = [1, 1]} : vector<48x32xf32> to vector<8x32xf32>
    %348 = vector.extract_strided_slice %345 {offsets = [40, 0], sizes = [8, 32], strides = [1, 1]} : vector<48x32xf32> to vector<8x32xf32>
    %349 = tpu.concatenate %347, %348 in 0 : vector<8x32xf32>, vector<8x32xf32> -> vector<16x32xf32>
    %c0_143 = arith.constant 0 : index
    %c0_144 = arith.constant 0 : index
    %350 = vector.load %arg29[%c0_143, %c0_144] : memref<32x128xf32, #tpu.memory_space<vmem>>, vector<32x128xf32>
    %cst_145 = arith.constant dense<0.000000e+00> : vector<16x128xf32>
    %351 = tpu.matmul %349, %350, %cst_145 {dimension_numbers = #tpu.dot_dimension_numbers<[1], [0], [0], [1], [0, 0, 1, 1], [], []>} : vector<16x32xf32>, vector<32x128xf32>, vector<16x128xf32> -> vector<16x128xf32>
    %c0_146 = arith.constant 0 : index
    %c0_147 = arith.constant 0 : index
    %352 = vector.load %arg31[%c0_146, %c0_147] : memref<16x128xf32, #tpu.memory_space<vmem>>, vector<16x128xf32>
    tpu.vector_store %arg31[%c0_146, %c0_147], %351 {strides = array<i32>} : memref<16x128xf32, #tpu.memory_space<vmem>>, vector<16x128xf32>,
    return
  }
}

</mosaic_0001>

<llo_original>
// kernel: vision_encoder_decoder_forward.1
$region0: #{vision_encoder_decoder_forward.1}
  #allocation0 [shape = 'u32[]', space=smem, size = 0x4, offset = 0x4, fixed_abs, tag = 'smem constant byte address 0x4 - core index']
  #allocation1 [shape = 'u32[144,128]{1,0:T(1,128)}', space=vmem, size = 0x12000, scoped, tag = 'internal scratch']
  %s0 = inlined_call_operand.smem [shape: u32[33], index: -1, kind: input, shape index: {}]
  %s1 = sld [smem:[%s0]]
  %s2 = scalar_lea.smem %s0, 1
  %s3 = sld [smem:[%s2]]
  %s4 = scalar_lea.smem %s0, 2
  %s5 = sld [smem:[%s4]]
  %s6 = scalar_lea.smem %s0, 3
  %s7 = sld [smem:[%s6]]
  %s8 = scalar_lea.smem %s0, 4
  %s9 = sld [smem:[%s8]]
  %s10 = scalar_lea.smem %s0, 5
  %s11 = sld [smem:[%s10]]
  %s12 = scalar_lea.smem %s0, 6
  %s13 = sld [smem:[%s12]]
  %s14 = scalar_lea.smem %s0, 7
  %s15 = sld [smem:[%s14]]
  %s16 = scalar_lea.smem %s0, 8
  %s17 = sld [smem:[%s16]]
  %s18 = scalar_lea.smem %s0, 9
  %s19 = sld [smem:[%s18]]
  %s20 = scalar_lea.smem %s0, 10
  %s21 = sld [smem:[%s20]]
  %s22 = scalar_lea.smem %s0, 11
  %s23 = sld [smem:[%s22]]
  %s24 = scalar_lea.smem %s0, 12
  %s25 = sld [smem:[%s24]]
  %s26 = scalar_lea.smem %s0, 13
  %s27 = sld [smem:[%s26]]
  %s28 = scalar_lea.smem %s0, 14
  %s29 = sld [smem:[%s28]]
  %s30 = scalar_lea.smem %s0, 15
  %s31 = sld [smem:[%s30]]
  %s32 = scalar_lea.smem %s0, 16
  %s33 = sld [smem:[%s32]]
  %s34 = scalar_lea.smem %s0, 17
  %s35 = sld [smem:[%s34]]
  %s36 = scalar_lea.smem %s0, 18
  %s37 = sld [smem:[%s36]]
  %s38 = scalar_lea.smem %s0, 19
  %s39 = sld [smem:[%s38]]
  %s40 = scalar_lea.smem %s0, 20
  %s41 = sld [smem:[%s40]]
  %s42 = scalar_lea.smem %s0, 21
  %s43 = sld [smem:[%s42]]
  %s44 = scalar_lea.smem %s0, 22
  %s45 = sld [smem:[%s44]]
  %s46 = scalar_lea.smem %s0, 23
  %s47 = sld [smem:[%s46]]
  %s48 = scalar_lea.smem %s0, 24
  %s49 = sld [smem:[%s48]]
  %s50 = scalar_lea.smem %s0, 25
  %s51 = sld [smem:[%s50]]
  %s52 = scalar_lea.smem %s0, 26
  %s53 = sld [smem:[%s52]]
  %s54 = scalar_lea.smem %s0, 27
  %s55 = sld [smem:[%s54]]
  %s56 = scalar_lea.smem %s0, 28
  %s57 = sld [smem:[%s56]]
  %s58 = scalar_lea.smem %s0, 29
  %s59 = sld [smem:[%s58]]
  %s60 = scalar_lea.smem %s0, 30
  %s61 = sld [smem:[%s60]]
  %s62 = scalar_lea.smem %s0, 31
  %s63 = sld [smem:[%s62]]
  %s64 = scalar_lea.smem %s0, 32
  %s65 = sld [smem:[%s64]]
  %66 = xla_tuple %s61, %s63, %s65
  %s67 = sld [smem:[#allocation0]]
  $region146: #{vision_encoder_decoder_forward.1} parent=0
    _
  %s69 = ssub.s32 1, %s67
  %s70 = scalar_select 0, %s69, %s67
  $region1: #{vision_encoder_decoder_forward.1} parent=0
    #allocation2 [shape = 'u8[16384]{0}', space=vmem, size = 0x4000, scoped, tag = 'output window, operand 0, single buffered']
    #allocation3 [shape = 's32[1]{0}', space=sflag, size = 0x4, scoped, tag = 'scoped memory for vision_encoder_decoder_forward.1']
    #allocation4 [shape = 'u8[24576]{0}', space=vmem, size = 0x6000, scoped, tag = 'output window, operand 2, single buffered']
    #allocation5 [shape = 's32[1]{0}', space=sflag, size = 0x4, scoped, tag = 'scoped memory for vision_encoder_decoder_forward.1']
    %71 = vsyncpa [#allocation3], 0
    %72 = vsyncpa [#allocation5], 0
    // Predicated region
    $region2: #{vision_encoder_decoder_forward.1} parent=1 // pred_check
      _
    $region3: #{vision_encoder_decoder_forward.1} parent=1 // pred_check_branch
      %74 = sbr.rel (0) target = $region5
    $region4: #{vision_encoder_decoder_forward.1} parent=1 // pred_region
      _
    $region5: #{vision_encoder_decoder_forward.1} parent=1 // pred_fallthru
      _
    // Predicated region
    $region6: #{vision_encoder_decoder_forward.1} parent=1 // pred_check
      _
    $region7: #{vision_encoder_decoder_forward.1} parent=1 // pred_check_branch
      %76 = sbr.rel (0) target = $region9
    $region8: #{vision_encoder_decoder_forward.1} parent=1 // pred_region
      _
    $region9: #{vision_encoder_decoder_forward.1} parent=1 // pred_fallthru
      _
    // Predicated region
    $region10: #{vision_encoder_decoder_forward.1} parent=1 // pred_check
      _
    $region11: #{vision_encoder_decoder_forward.1} parent=1 // pred_check_branch
      %78 = sbr.rel (0) target = $region13
    $region12: #{vision_encoder_decoder_forward.1} parent=1 // pred_region
      _
    $region13: #{vision_encoder_decoder_forward.1} parent=1 // pred_fallthru
      _
    // Predicated region
    $region14: #{vision_encoder_decoder_forward.1} parent=1 // pred_check
      _
    $region15: #{vision_encoder_decoder_forward.1} parent=1 // pred_check_branch
      %80 = sbr.rel (0) target = $region17
    $region16: #{vision_encoder_decoder_forward.1} parent=1 // pred_region
      _
    $region17: #{vision_encoder_decoder_forward.1} parent=1 // pred_fallthru
      _
    // Predicated region
    $region18: #{vision_encoder_decoder_forward.1} parent=1 // pred_check
      _
    $region19: #{vision_encoder_decoder_forward.1} parent=1 // pred_check_branch
      %82 = sbr.rel (0) target = $region21
    $region20: #{vision_encoder_decoder_forward.1} parent=1 // pred_region
      _
    $region21: #{vision_encoder_decoder_forward.1} parent=1 // pred_fallthru
      _
    // Predicated region
    $region22: #{vision_encoder_decoder_forward.1} parent=1 // pred_check
      _
    $region23: #{vision_encoder_decoder_forward.1} parent=1 // pred_check_branch
      %84 = sbr.rel (0) target = $region25
    $region24: #{vision_encoder_decoder_forward.1} parent=1 // pred_region
      _
    $region25: #{vision_encoder_decoder_forward.1} parent=1 // pred_fallthru
      _
    // Predicated region
    $region26: #{vision_encoder_decoder_forward.1} parent=1 // pred_check
      _
    $region27: #{vision_encoder_decoder_forward.1} parent=1 // pred_check_branch
      %86 = sbr.rel (0) target = $region29
    $region28: #{vision_encoder_decoder_forward.1} parent=1 // pred_region
      _
    $region29: #{vision_encoder_decoder_forward.1} parent=1 // pred_fallthru
      _
    // Predicated region
    $region30: #{vision_encoder_decoder_forward.1} parent=1 // pred_check
      _
    $region31: #{vision_encoder_decoder_forward.1} parent=1 // pred_check_branch
      %88 = sbr.rel (0) target = $region33
    $region32: #{vision_encoder_decoder_forward.1} parent=1 // pred_region
      _
    $region33: #{vision_encoder_decoder_forward.1} parent=1 // pred_fallthru
      _
    // Predicated region
    $region34: #{vision_encoder_decoder_forward.1} parent=1 // pred_check
      _
    $region35: #{vision_encoder_decoder_forward.1} parent=1 // pred_check_branch
      %90 = sbr.rel (0) target = $region37
    $region36: #{vision_encoder_decoder_forward.1} parent=1 // pred_region
      _
    $region37: #{vision_encoder_decoder_forward.1} parent=1 // pred_fallthru
      _
    // Predicated region
    $region38: #{vision_encoder_decoder_forward.1} parent=1 // pred_check
      _
    $region39: #{vision_encoder_decoder_forward.1} parent=1 // pred_check_branch
      %92 = sbr.rel (0) target = $region41
    $region40: #{vision_encoder_decoder_forward.1} parent=1 // pred_region
      _
    $region41: #{vision_encoder_decoder_forward.1} parent=1 // pred_fallthru
      _
    // Predicated region
    $region42: #{vision_encoder_decoder_forward.1} parent=1 // pred_check
      _
    $region43: #{vision_encoder_decoder_forward.1} parent=1 // pred_check_branch
      %94 = sbr.rel (0) target = $region45
    $region44: #{vision_encoder_decoder_forward.1} parent=1 // pred_region
      _
    $region45: #{vision_encoder_decoder_forward.1} parent=1 // pred_fallthru
      _
    // Predicated region
    $region46: #{vision_encoder_decoder_forward.1} parent=1 // pred_check
      _
    $region47: #{vision_encoder_decoder_forward.1} parent=1 // pred_check_branch
      %96 = sbr.rel (0) target = $region49
    $region48: #{vision_encoder_decoder_forward.1} parent=1 // pred_region
      _
    $region49: #{vision_encoder_decoder_forward.1} parent=1 // pred_fallthru
      _
    // Predicated region
    $region50: #{vision_encoder_decoder_forward.1} parent=1 // pred_check
      _
    $region51: #{vision_encoder_decoder_forward.1} parent=1 // pred_check_branch
      %98 = sbr.rel (0) target = $region53
    $region52: #{vision_encoder_decoder_forward.1} parent=1 // pred_region
      _
    $region53: #{vision_encoder_decoder_forward.1} parent=1 // pred_fallthru
      _
    // Predicated region
    $region54: #{vision_encoder_decoder_forward.1} parent=1 // pred_check
      _
    $region55: #{vision_encoder_decoder_forward.1} parent=1 // pred_check_branch
      %100 = sbr.rel (0) target = $region57
    $region56: #{vision_encoder_decoder_forward.1} parent=1 // pred_region
      _
    $region57: #{vision_encoder_decoder_forward.1} parent=1 // pred_fallthru
      _
    // Predicated region
    $region58: #{vision_encoder_decoder_forward.1} parent=1 // pred_check
      _
    $region59: #{vision_encoder_decoder_forward.1} parent=1 // pred_check_branch
      %102 = sbr.rel (0) target = $region61
    $region60: #{vision_encoder_decoder_forward.1} parent=1 // pred_region
      _
    $region61: #{vision_encoder_decoder_forward.1} parent=1 // pred_fallthru
      _
    // Predicated region
    $region62: #{vision_encoder_decoder_forward.1} parent=1 // pred_check
      _
    $region63: #{vision_encoder_decoder_forward.1} parent=1 // pred_check_branch
      %104 = sbr.rel (0) target = $region65
    $region64: #{vision_encoder_decoder_forward.1} parent=1 // pred_region
      _
    $region65: #{vision_encoder_decoder_forward.1} parent=1 // pred_fallthru
      _
    // Predicated region
    $region66: #{vision_encoder_decoder_forward.1} parent=1 // pred_check
      _
    $region67: #{vision_encoder_decoder_forward.1} parent=1 // pred_check_branch
      %106 = sbr.rel (0) target = $region69
    $region68: #{vision_encoder_decoder_forward.1} parent=1 // pred_region
      _
    $region69: #{vision_encoder_decoder_forward.1} parent=1 // pred_fallthru
      _
    // Predicated region
    $region70: #{vision_encoder_decoder_forward.1} parent=1 // pred_check
      _
    $region71: #{vision_encoder_decoder_forward.1} parent=1 // pred_check_branch
      %108 = sbr.rel (0) target = $region73
    $region72: #{vision_encoder_decoder_forward.1} parent=1 // pred_region
      _
    $region73: #{vision_encoder_decoder_forward.1} parent=1 // pred_fallthru
      _
    // Predicated region
    $region74: #{vision_encoder_decoder_forward.1} parent=1 // pred_check
      _
    $region75: #{vision_encoder_decoder_forward.1} parent=1 // pred_check_branch
      %110 = sbr.rel (0) target = $region77
    $region76: #{vision_encoder_decoder_forward.1} parent=1 // pred_region
      _
    $region77: #{vision_encoder_decoder_forward.1} parent=1 // pred_fallthru
      _
    // Predicated region
    $region78: #{vision_encoder_decoder_forward.1} parent=1 // pred_check
      _
    $region79: #{vision_encoder_decoder_forward.1} parent=1 // pred_check_branch
      %112 = sbr.rel (0) target = $region81
    $region80: #{vision_encoder_decoder_forward.1} parent=1 // pred_region
      _
    $region81: #{vision_encoder_decoder_forward.1} parent=1 // pred_fallthru
      _
    // Predicated region
    $region82: #{vision_encoder_decoder_forward.1} parent=1 // pred_check
      _
    $region83: #{vision_encoder_decoder_forward.1} parent=1 // pred_check_branch
      %114 = sbr.rel (0) target = $region85
    $region84: #{vision_encoder_decoder_forward.1} parent=1 // pred_region
      _
    $region85: #{vision_encoder_decoder_forward.1} parent=1 // pred_fallthru
      _
    // Predicated region
    $region86: #{vision_encoder_decoder_forward.1} parent=1 // pred_check
      _
    $region87: #{vision_encoder_decoder_forward.1} parent=1 // pred_check_branch
      %116 = sbr.rel (0) target = $region89
    $region88: #{vision_encoder_decoder_forward.1} parent=1 // pred_region
      _
    $region89: #{vision_encoder_decoder_forward.1} parent=1 // pred_fallthru
      _
    // Predicated region
    $region90: #{vision_encoder_decoder_forward.1} parent=1 // pred_check
      _
    $region91: #{vision_encoder_decoder_forward.1} parent=1 // pred_check_branch
      %118 = sbr.rel (0) target = $region93
    $region92: #{vision_encoder_decoder_forward.1} parent=1 // pred_region
      _
    $region93: #{vision_encoder_decoder_forward.1} parent=1 // pred_fallthru
      _
    // Predicated region
    $region94: #{vision_encoder_decoder_forward.1} parent=1 // pred_check
      _
    $region95: #{vision_encoder_decoder_forward.1} parent=1 // pred_check_branch
      %120 = sbr.rel (0) target = $region97
    $region96: #{vision_encoder_decoder_forward.1} parent=1 // pred_region
      _
    $region97: #{vision_encoder_decoder_forward.1} parent=1 // pred_fallthru
      _
    // Predicated region
    $region98: #{vision_encoder_decoder_forward.1} parent=1 // pred_check
      _
    $region99: #{vision_encoder_decoder_forward.1} parent=1 // pred_check_branch
      %122 = sbr.rel (0) target = $region101
    $region100: #{vision_encoder_decoder_forward.1} parent=1 // pred_region
      _
    $region101: #{vision_encoder_decoder_forward.1} parent=1 // pred_fallthru
      _
    // Predicated region
    $region102: #{vision_encoder_decoder_forward.1} parent=1 // pred_check
      _
    $region103: #{vision_encoder_decoder_forward.1} parent=1 // pred_check_branch
      %124 = sbr.rel (0) target = $region105
    $region104: #{vision_encoder_decoder_forward.1} parent=1 // pred_region
      _
    $region105: #{vision_encoder_decoder_forward.1} parent=1 // pred_fallthru
      _
    // Predicated region
    $region106: #{vision_encoder_decoder_forward.1} parent=1 // pred_check
      _
    $region107: #{vision_encoder_decoder_forward.1} parent=1 // pred_check_branch
      %126 = sbr.rel (0) target = $region109
    $region108: #{vision_encoder_decoder_forward.1} parent=1 // pred_region
      _
    $region109: #{vision_encoder_decoder_forward.1} parent=1 // pred_fallthru
      _
    // Predicated region
    $region110: #{vision_encoder_decoder_forward.1} parent=1 // pred_check
      _
    $region111: #{vision_encoder_decoder_forward.1} parent=1 // pred_check_branch
      %128 = sbr.rel (0) target = $region113
    $region112: #{vision_encoder_decoder_forward.1} parent=1 // pred_region
      _
    $region113: #{vision_encoder_decoder_forward.1} parent=1 // pred_fallthru
      _
    // Predicated region
    $region114: #{vision_encoder_decoder_forward.1} parent=1 // pred_check
      _
    $region115: #{vision_encoder_decoder_forward.1} parent=1 // pred_check_branch
      %130 = sbr.rel (0) target = $region117
    $region116: #{vision_encoder_decoder_forward.1} parent=1 // pred_region
      _
    $region117: #{vision_encoder_decoder_forward.1} parent=1 // pred_fallthru
      _
    // Predicated region
    $region118: #{vision_encoder_decoder_forward.1} parent=1 // pred_check
      _
    $region119: #{vision_encoder_decoder_forward.1} parent=1 // pred_check_branch
      %132 = sbr.rel (0) target = $region121
    $region120: #{vision_encoder_decoder_forward.1} parent=1 // pred_region
      _
    $region121: #{vision_encoder_decoder_forward.1} parent=1 // pred_fallthru
      _
    %v133 = vld [vmem:[%s1] sm:$0xff]
    %v134 = vld [vmem:[%s1 + $0x8] sm:$0xff]
    %v135 = vld [vmem:[%s1 + $0x10] sm:$0xff]
    %v136 = vld [vmem:[%s1 + $0x18] sm:$0xff]
    %v137 = vld [vmem:[%s5] sm:$0xff]
    %v138 = vld [vmem:[%s5 + $0x8] sm:$0xff]
    %v139 = vld [vmem:[%s5 + $0x10] sm:$0xff]
    %v140 = vld [vmem:[%s5 + $0x18] sm:$0xff]
    %v141 = vld [vmem:[%s5 + $0x20] sm:$0xff]
    %v142 = vld [vmem:[%s5 + $0x28] sm:$0xff]
    %v143 = vld [vmem:[%s7] sm:$0x1]
    %v145 = vlaneseq
    %v146 = vshrl.u32 %v145, 7
    %v147 = vsub.s32 0, %v146
    %v148 = vrot.slane %v143, %v147
    %vm150 = vcmask 392192
    %v152 = vsel %vm150, %v133, 0
    %v155 = vsel %vm150, %v134, 0
    %v158 = vsel %vm150, %v135, 0
    %v161 = vsel %vm150, %v136, 0
    %163 = vmatprep.subr.mxu0 0.0
    %164 = vmatpush1.msra.mxu0 %v137
    %165 = vmatprep.subr.mxu0 0.0
    %166 = vmatpush1.msra.mxu0 %v138
    %167 = vmatprep.subr.mxu0 0.0
    %168 = vmatpush1.msra.mxu0 %v139
    %169 = vmatprep.subr.mxu0 0.0
    %170 = vmatpush1.msra.mxu0 %v140
    %171 = vmatprep.subr.mxu0 0.0
    %172 = vmatpush1.msra.mxu0 %v141
    %173 = vmatprep.subr.mxu0 0.0
    %174 = vmatpush1.msra.mxu0 %v142
    %175 = vmatprep.subr.mxu0 0.0
    %176 = vmatpush1.msra.mxu0 0.0
    %177 = vmatprep.subr.mxu0 0.0
    %178 = vmatpush1.msra.mxu0 0.0
    %179 = vmatprep.subr.mxu0 0.0
    %180 = vmatpush1.msra.mxu0 0.0
    %181 = vmatprep.subr.mxu0 0.0
    %182 = vmatpush1.msra.mxu0 0.0
    %183 = vmatprep.subr.mxu0 0.0
    %184 = vmatpush1.msra.mxu0 0.0
    %185 = vmatprep.subr.mxu0 0.0
    %186 = vmatpush1.msra.mxu0 0.0
    %187 = vmatprep.subr.mxu0 0.0
    %188 = vmatpush1.msra.mxu0 0.0
    %189 = vmatprep.subr.mxu0 0.0
    %190 = vmatpush1.msra.mxu0 0.0
    %191 = vmatprep.subr.mxu0 0.0
    %192 = vmatpush1.msra.mxu0 0.0
    %193 = vmatprep.subr.mxu0 0.0
    %194 = vmatpush1.msra.mxu0 0.0
    %195 = vmatprep.subr.mxu0 0.0
    %196 = vmatpush1.msra.mxu0 0.0
    %197 = vmatprep.subr.mxu0 0.0
    %198 = vmatpush1.msra.mxu0 0.0
    %199 = vmatprep.subr.mxu0 0.0
    %200 = vmatpush1.msra.mxu0 0.0
    %201 = vmatprep.subr.mxu0 0.0
    %202 = vmatpush1.msra.mxu0 0.0
    %203 = vmatprep.subr.mxu0 0.0
    %204 = vmatpush1.msra.mxu0 0.0
    %205 = vmatprep.subr.mxu0 0.0
    %206 = vmatpush1.msra.mxu0 0.0
    %207 = vmatprep.subr.mxu0 0.0
    %208 = vmatpush1.msra.mxu0 0.0
    %209 = vmatprep.subr.mxu0 0.0
    %210 = vmatpush1.msra.mxu0 0.0
    %211 = vmatprep.subr.mxu0 0.0
    %212 = vmatpush1.msra.mxu0 0.0
    %213 = vmatprep.subr.mxu0 0.0
    %214 = vmatpush1.msra.mxu0 0.0
    %215 = vmatprep.subr.mxu0 0.0
    %216 = vmatpush1.msra.mxu0 0.0
    %217 = vmatprep.subr.mxu0 0.0
    %218 = vmatpush1.msra.mxu0 0.0
    %219 = vmatprep.subr.mxu0 0.0
    %220 = vmatpush1.msra.mxu0 0.0
    %221 = vmatprep.subr.mxu0 0.0
    %222 = vmatpush1.msra.mxu0 0.0
    %223 = vmatprep.subr.mxu0 0.0
    %224 = vmatpush1.msra.mxu0 0.0
    %225 = vmatprep.subr.mxu0 0.0
    %226 = vmatpush1.msra.mxu0 0.0
    %227 = vmatprep.mubr.f32.mxu0 0.0
    %228 = vmatmul.mubr.f32.gmra.mrb[0].mxu0 %v152
    %v229 = vpop.f32.mrb[0].mxu0
    %v230 = vadd.f32 %v148, %v229
    %v231 = vpop.f32.mrb[0].mxu0
    %232 = vmatprep.mubr.f32.mxu0 0.0
    %233 = vmatmul.mubr.f32.gmra.mrb[0].mxu0 %v155
    %v234 = vpop.f32.mrb[0].mxu0
    %v235 = vadd.f32 %v148, %v234
    %v236 = vpop.f32.mrb[0].mxu0
    %237 = vmatprep.mubr.f32.mxu0 0.0
    %238 = vmatmul.mubr.f32.gmra.mrb[0].mxu0 %v158
    %v239 = vpop.f32.mrb[0].mxu0
    %v240 = vadd.f32 %v148, %v239
    %v241 = vpop.f32.mrb[0].mxu0
    %242 = vmatprep.mubr.f32.mxu0 0.0
    %243 = vmatmul.mubr.f32.gmra.mrb[0].mxu0 %v161
    %v244 = vpop.f32.mrb[0].mxu0
    %v245 = vadd.f32 %v148, %v244
    %v246 = vpop.f32.mrb[0].mxu0
    %247 = vdwg.mxu0
    %v248 = vld [vmem:[%s9] sm:$0xff]
    %v249 = vld [vmem:[%s9 + $0x8] sm:$0xff]
    %v250 = vld [vmem:[%s9 + $0x10] sm:$0xff]
    %vm251 = vcmask 195584
    %v253 = vsel %vm251, %v230, 0
    %v256 = vsel %vm251, %v235, 0
    %v259 = vsel %vm251, %v240, 0
    %v262 = vsel %vm251, %v245, 0
    %264 = vmatprep.subr.mxu0 0.0
    %265 = vmatpush1.msra.mxu0 %v248
    %266 = vmatprep.subr.mxu0 0.0
    %267 = vmatpush1.msra.mxu0 %v249
    %268 = vmatprep.subr.mxu0 0.0
    %269 = vmatpush1.msra.mxu0 %v250
    %270 = vmatprep.subr.mxu0 0.0
    %271 = vmatpush1.msra.mxu0 0.0
    %272 = vmatprep.subr.mxu0 0.0
    %273 = vmatpush1.msra.mxu0 0.0
    %274 = vmatprep.subr.mxu0 0.0
    %275 = vmatpush1.msra.mxu0 0.0
    %276 = vmatprep.subr.mxu0 0.0
    %277 = vmatpush1.msra.mxu0 0.0
    %278 = vmatprep.subr.mxu0 0.0
    %279 = vmatpush1.msra.mxu0 0.0
    %280 = vmatprep.subr.mxu0 0.0
    %281 = vmatpush1.msra.mxu0 0.0
    %282 = vmatprep.subr.mxu0 0.0
    %283 = vmatpush1.msra.mxu0 0.0
    %284 = vmatprep.subr.mxu0 0.0
    %285 = vmatpush1.msra.mxu0 0.0
    %286 = vmatprep.subr.mxu0 0.0
    %287 = vmatpush1.msra.mxu0 0.0
    %288 = vmatprep.subr.mxu0 0.0
    %289 = vmatpush1.msra.mxu0 0.0
    %290 = vmatprep.subr.mxu0 0.0
    %291 = vmatpush1.msra.mxu0 0.0
    %292 = vmatprep.subr.mxu0 0.0
    %293 = vmatpush1.msra.mxu0 0.0
    %294 = vmatprep.subr.mxu0 0.0
    %295 = vmatpush1.msra.mxu0 0.0
    %296 = vmatprep.subr.mxu0 0.0
    %297 = vmatpush1.msra.mxu0 0.0
    %298 = vmatprep.subr.mxu0 0.0
    %299 = vmatpush1.msra.mxu0 0.0
    %300 = vmatprep.subr.mxu0 0.0
    %301 = vmatpush1.msra.mxu0 0.0
    %302 = vmatprep.subr.mxu0 0.0
    %303 = vmatpush1.msra.mxu0 0.0
    %304 = vmatprep.subr.mxu0 0.0
    %305 = vmatpush1.msra.mxu0 0.0
    %306 = vmatprep.subr.mxu0 0.0
    %307 = vmatpush1.msra.mxu0 0.0
    %308 = vmatprep.subr.mxu0 0.0
    %309 = vmatpush1.msra.mxu0 0.0
    %310 = vmatprep.subr.mxu0 0.0
    %311 = vmatpush1.msra.mxu0 0.0
    %312 = vmatprep.subr.mxu0 0.0
    %313 = vmatpush1.msra.mxu0 0.0
    %314 = vmatprep.subr.mxu0 0.0
    %315 = vmatpush1.msra.mxu0 0.0
    %316 = vmatprep.subr.mxu0 0.0
    %317 = vmatpush1.msra.mxu0 0.0
    %318 = vmatprep.subr.mxu0 0.0
    %319 = vmatpush1.msra.mxu0 0.0
    %320 = vmatprep.subr.mxu0 0.0
    %321 = vmatpush1.msra.mxu0 0.0
    %322 = vmatprep.subr.mxu0 0.0
    %323 = vmatpush1.msra.mxu0 0.0
    %324 = vmatprep.subr.mxu0 0.0
    %325 = vmatpush1.msra.mxu0 0.0
    %326 = vmatprep.subr.mxu0 0.0
    %327 = vmatpush1.msra.mxu0 0.0
    %328 = vmatprep.mubr.f32.mxu0 0.0
    %329 = vmatmul.mubr.f32.gmra.mrb[0].mxu0 %v253
    %v330 = vpop.f32.mrb[0].mxu0
    %v331 = vadd.f32 0.0, %v330
    %v332 = vpop.f32.mrb[0].mxu0
    %333 = vmatprep.mubr.f32.mxu0 0.0
    %334 = vmatmul.mubr.f32.gmra.mrb[0].mxu0 %v256
    %v335 = vpop.f32.mrb[0].mxu0
    %v336 = vadd.f32 0.0, %v335
    %v337 = vpop.f32.mrb[0].mxu0
    %338 = vmatprep.mubr.f32.mxu0 0.0
    %339 = vmatmul.mubr.f32.gmra.mrb[0].mxu0 %v259
    %v340 = vpop.f32.mrb[0].mxu0
    %v341 = vadd.f32 0.0, %v340
    %v342 = vpop.f32.mrb[0].mxu0
    %343 = vmatprep.mubr.f32.mxu0 0.0
    %344 = vmatmul.mubr.f32.gmra.mrb[0].mxu0 %v262
    %v345 = vpop.f32.mrb[0].mxu0
    %v346 = vadd.f32 0.0, %v345
    %v347 = vpop.f32.mrb[0].mxu0
    %348 = vdwg.mxu0
    %vm349 = vcmask 261120
    %350 = vst.msk [vmem:[#allocation2] sm:$0xff] %vm349, %v331
    %351 = vst.msk [vmem:[#allocation2 + $0x8] sm:$0xff] %vm349, %v336
    %352 = vst.msk [vmem:[#allocation2 + $0x10] sm:$0xff] %vm349, %v341
    %353 = vst.msk [vmem:[#allocation2 + $0x18] sm:$0xff] %vm349, %v346
    %v354 = vld [vmem:[%s3] sm:$0xff]
    %v355 = vld [vmem:[%s3 + $0x8] sm:$0xff]
    %v356 = vlaneseq
    %v357 = vand.u32 %v356, 127
    %358 = vset.pattern.permute.xlu0 0
    %359 = vperm.xlu0 %358, %v354
    %v360 = vpop.permute.xlu0 %359
    %361 = vset.pattern.permute.xlu0 0
    %362 = vperm.xlu0 %361, %v355
    %v363 = vpop.permute.xlu0 %362
    %vm364 = vcmp.eq.s32.totalorder %v360, %v357
    %vm365 = vcmp.eq.s32.totalorder %v363, %v357
    %v366 = vsel %vm364, 1, 0
    %v367 = vsel %vm365, 1, 0
    %v368 = vcvt.s32.f32 %v366
    %v369 = vcvt.s32.f32 %v367
    %v370 = vld [vmem:[%s11] sm:$0xff]
    %v371 = vld [vmem:[%s11 + $0x8] sm:$0xff]
    %v372 = vld [vmem:[%s11 + $0x10] sm:$0xff]
    %v373 = vld [vmem:[%s11 + $0x18] sm:$0xff]
    %v374 = vld [vmem:[%s11 + $0x20] sm:$0xff]
    %v375 = vld [vmem:[%s11 + $0x28] sm:$0xff]
    %v376 = vld [vmem:[%s11 + $0x30] sm:$0xff]
    %v377 = vld [vmem:[%s11 + $0x38] sm:$0xff]
    %vm378 = vcmask 523264
    %v380 = vsel %vm378, %v368, 0
    %v383 = vsel %vm378, %v369, 0
    %385 = vmatprep.subr.mxu0 0.0
    %386 = vmatpush1.msra.mxu0 %v370
    %387 = vmatprep.subr.mxu0 0.0
    %388 = vmatpush1.msra.mxu0 %v371
    %389 = vmatprep.subr.mxu0 0.0
    %390 = vmatpush1.msra.mxu0 %v372
    %391 = vmatprep.subr.mxu0 0.0
    %392 = vmatpush1.msra.mxu0 %v373
    %393 = vmatprep.subr.mxu0 0.0
    %394 = vmatpush1.msra.mxu0 %v374
    %395 = vmatprep.subr.mxu0 0.0
    %396 = vmatpush1.msra.mxu0 %v375
    %397 = vmatprep.subr.mxu0 0.0
    %398 = vmatpush1.msra.mxu0 %v376
    %399 = vmatprep.subr.mxu0 0.0
    %400 = vmatpush1.msra.mxu0 %v377
    %401 = vmatprep.subr.mxu0 0.0
    %402 = vmatpush1.msra.mxu0 0.0
    %403 = vmatprep.subr.mxu0 0.0
    %404 = vmatpush1.msra.mxu0 0.0
    %405 = vmatprep.subr.mxu0 0.0
    %406 = vmatpush1.msra.mxu0 0.0
    %407 = vmatprep.subr.mxu0 0.0
    %408 = vmatpush1.msra.mxu0 0.0
    %409 = vmatprep.subr.mxu0 0.0
    %410 = vmatpush1.msra.mxu0 0.0
    %411 = vmatprep.subr.mxu0 0.0
    %412 = vmatpush1.msra.mxu0 0.0
    %413 = vmatprep.subr.mxu0 0.0
    %414 = vmatpush1.msra.mxu0 0.0
    %415 = vmatprep.subr.mxu0 0.0
    %416 = vmatpush1.msra.mxu0 0.0
    %417 = vmatprep.subr.mxu0 0.0
    %418 = vmatpush1.msra.mxu0 0.0
    %419 = vmatprep.subr.mxu0 0.0
    %420 = vmatpush1.msra.mxu0 0.0
    %421 = vmatprep.subr.mxu0 0.0
    %422 = vmatpush1.msra.mxu0 0.0
    %423 = vmatprep.subr.mxu0 0.0
    %424 = vmatpush1.msra.mxu0 0.0
    %425 = vmatprep.subr.mxu0 0.0
    %426 = vmatpush1.msra.mxu0 0.0
    %427 = vmatprep.subr.mxu0 0.0
    %428 = vmatpush1.msra.mxu0 0.0
    %429 = vmatprep.subr.mxu0 0.0
    %430 = vmatpush1.msra.mxu0 0.0
    %431 = vmatprep.subr.mxu0 0.0
    %432 = vmatpush1.msra.mxu0 0.0
    %433 = vmatprep.subr.mxu0 0.0
    %434 = vmatpush1.msra.mxu0 0.0
    %435 = vmatprep.subr.mxu0 0.0
    %436 = vmatpush1.msra.mxu0 0.0
    %437 = vmatprep.subr.mxu0 0.0
    %438 = vmatpush1.msra.mxu0 0.0
    %439 = vmatprep.subr.mxu0 0.0
    %440 = vmatpush1.msra.mxu0 0.0
    %441 = vmatprep.subr.mxu0 0.0
    %442 = vmatpush1.msra.mxu0 0.0
    %443 = vmatprep.subr.mxu0 0.0
    %444 = vmatpush1.msra.mxu0 0.0
    %445 = vmatprep.subr.mxu0 0.0
    %446 = vmatpush1.msra.mxu0 0.0
    %447 = vmatprep.subr.mxu0 0.0
    %448 = vmatpush1.msra.mxu0 0.0
    %449 = vmatprep.mubr.f32.mxu0 0.0
    %450 = vmatmul.mubr.f32.gmra.mrb[0].mxu0 %v380
    %v451 = vpop.f32.mrb[0].mxu0
    %v452 = vadd.f32 0.0, %v451
    %v453 = vpop.f32.mrb[0].mxu0
    %454 = vmatprep.mubr.f32.mxu0 0.0
    %455 = vmatmul.mubr.f32.gmra.mrb[0].mxu0 %v383
    %v456 = vpop.f32.mrb[0].mxu0
    %v457 = vadd.f32 0.0, %v456
    %v458 = vpop.f32.mrb[0].mxu0
    %459 = vdwg.mxu0
    %v460 = vld [vmem:[%s13] sm:$0xff]
    %v461 = vld [vmem:[%s13 + $0x8] sm:$0xff]
    %v462 = vld [vmem:[%s13 + $0x10] sm:$0xff]
    %v463 = vadd.f32 %v331, %v460
    %v464 = vadd.f32 %v336, %v461
    %v465 = vadd.f32 %v452, %v462
    %v466 = vadd.f32 %v341, %v460
    %v467 = vadd.f32 %v346, %v461
    %v468 = vadd.f32 %v457, %v462
    %v469 = vlaneseq
    %v470 = vshrl.u32 %v469, 7
    %v471 = vadd.s32 %v470, 8
    %v472 = vadd.s32 %v470, 16
    %vm473 = vcmp.lt.s32.totalorder %v470, 16
    %vm474 = vcmp.lt.s32.totalorder %v471, 16
    %vm475 = vcmp.lt.s32.totalorder %v472, 16
    %vm476 = vcmp.ge.s32.totalorder %v357, 16
    %vm477 = vcmp.le.s32.totalorder %v357, %v470
    %vm478 = vcmp.le.s32.totalorder %v357, %v471
    %vm479 = vcmp.le.s32.totalorder %v357, %v472
    %vm480 = vmand %vm476, %vm477
    %vm481 = vmand %vm476, %vm478
    %vm482 = vmand %vm476, %vm479
    %vm483 = vmor %vm473, %vm480
    %vm484 = vmor %vm474, %vm481
    %vm485 = vmor %vm475, %vm482
    %v486 = vsel %vm483, 0.0, -1e+30
    %v487 = vsel %vm484, 0.0, -1e+30
    %v488 = vsel %vm485, 0.0, -1e+30
    %v489 = vsel %vm349, %v463, 0.0
    %490 = vadd.xlane.f32.xlu0 %v489
    %v491 = vpop.xlane.xlu0 %490
    %v492 = vsel %vm349, %v464, 0.0
    %493 = vadd.xlane.f32.xlu0 %v492
    %v494 = vpop.xlane.xlu0 %493
    %v495 = vsel %vm349, %v465, 0.0
    %496 = vadd.xlane.f32.xlu0 %v495
    %v497 = vpop.xlane.xlu0 %496
    %v498 = vsel %vm349, %v466, 0.0
    %499 = vadd.xlane.f32.xlu0 %v498
    %v500 = vpop.xlane.xlu0 %499
    %v501 = vsel %vm349, %v467, 0.0
    %502 = vadd.xlane.f32.xlu0 %v501
    %v503 = vpop.xlane.xlu0 %502
    %v504 = vsel %vm349, %v468, 0.0
    %505 = vadd.xlane.f32.xlu0 %v504
    %v506 = vpop.xlane.xlu0 %505
    %v507 = vrcp.pop 32.0
    %v508 = vmul.f32 %v491, %v507
    %v509 = vmul.f32 %v494, %v507
    %v510 = vmul.f32 %v497, %v507
    %v511 = vmul.f32 %v500, %v507
    %v512 = vmul.f32 %v503, %v507
    %v513 = vmul.f32 %v506, %v507
    %v514 = vsub.f32 %v463, %v508
    %v515 = vsub.f32 %v464, %v509
    %v516 = vsub.f32 %v465, %v510
    %v517 = vsub.f32 %v466, %v511
    %v518 = vsub.f32 %v467, %v512
    %v519 = vsub.f32 %v468, %v513
    %v520 = vmul.f32 %v514, %v514
    %v521 = vmul.f32 %v515, %v515
    %v522 = vmul.f32 %v516, %v516
    %v523 = vmul.f32 %v517, %v517
    %v524 = vmul.f32 %v518, %v518
    %v525 = vmul.f32 %v519, %v519
    %v526 = vsel %vm349, %v520, 0.0
    %527 = vadd.xlane.f32.xlu0 %v526
    %v528 = vpop.xlane.xlu0 %527
    %v529 = vsel %vm349, %v521, 0.0
    %530 = vadd.xlane.f32.xlu0 %v529
    %v531 = vpop.xlane.xlu0 %530
    %v532 = vsel %vm349, %v522, 0.0
    %533 = vadd.xlane.f32.xlu0 %v532
    %v534 = vpop.xlane.xlu0 %533
    %v535 = vsel %vm349, %v523, 0.0
    %536 = vadd.xlane.f32.xlu0 %v535
    %v537 = vpop.xlane.xlu0 %536
    %v538 = vsel %vm349, %v524, 0.0
    %539 = vadd.xlane.f32.xlu0 %v538
    %v540 = vpop.xlane.xlu0 %539
    %v541 = vsel %vm349, %v525, 0.0
    %542 = vadd.xlane.f32.xlu0 %v541
    %v543 = vpop.xlane.xlu0 %542
    %v544 = vmul.f32 %v528, %v507
    %v545 = vmul.f32 %v531, %v507
    %v546 = vmul.f32 %v534, %v507
    %v547 = vmul.f32 %v537, %v507
    %v548 = vmul.f32 %v540, %v507
    %v549 = vmul.f32 %v543, %v507
    %v550 = vadd.f32 %v544, 1e-05
    %v551 = vadd.f32 %v545, 1e-05
    %v552 = vadd.f32 %v546, 1e-05
    %v553 = vadd.f32 %v547, 1e-05
    %v554 = vadd.f32 %v548, 1e-05
    %v555 = vadd.f32 %v549, 1e-05
    %v556 = vrsqrt.pop %v550
    %v557 = vrsqrt.pop %v551
    %v558 = vrsqrt.pop %v552
    %v559 = vrsqrt.pop %v553
    %v560 = vrsqrt.pop %v554
    %v561 = vrsqrt.pop %v555
    %v562 = vmul.f32 %v514, %v556
    %v563 = vmul.f32 %v515, %v557
    %v564 = vmul.f32 %v516, %v558
    %v565 = vmul.f32 %v517, %v559
    %v566 = vmul.f32 %v518, %v560
    %v567 = vmul.f32 %v519, %v561
    %v568 = vld [vmem:[%s15] sm:$0x1]
    %v570 = vlaneseq
    %v571 = vshrl.u32 %v570, 7
    %v572 = vsub.s32 0, %v571
    %v573 = vrot.slane %v568, %v572
    %v575 = vmul.f32 %v562, %v573
    %v576 = vmul.f32 %v563, %v573
    %v577 = vmul.f32 %v564, %v573
    %v578 = vmul.f32 %v565, %v573
    %v579 = vmul.f32 %v566, %v573
    %v580 = vmul.f32 %v567, %v573
    %v581 = vld [vmem:[%s17] sm:$0x1]
    %v583 = vlaneseq
    %v584 = vshrl.u32 %v583, 7
    %v585 = vsub.s32 0, %v584
    %v586 = vrot.slane %v581, %v585
    %v588 = vadd.f32 %v575, %v586
    %v589 = vadd.f32 %v576, %v586
    %v590 = vadd.f32 %v577, %v586
    %v591 = vadd.f32 %v578, %v586
    %v592 = vadd.f32 %v579, %v586
    %v593 = vadd.f32 %v580, %v586
    %v594 = vld [vmem:[%s31] sm:$0xff]
    %v595 = vld [vmem:[%s31 + $0x8] sm:$0xff]
    %v596 = vld [vmem:[%s31 + $0x10] sm:$0xff]
    %v597 = vld [vmem:[%s31 + $0x18] sm:$0xff]
    %v598 = vld [vmem:[%s33] sm:$0x1]
    %v600 = vlaneseq
    %v601 = vshrl.u32 %v600, 7
    %v602 = vsub.s32 0, %v601
    %v603 = vrot.slane %v598, %v602
    %v606 = vsel %vm349, %v588, 0
    %v609 = vsel %vm349, %v589, 0
    %v612 = vsel %vm349, %v590, 0
    %v615 = vsel %vm349, %v591, 0
    %v618 = vsel %vm349, %v592, 0
    %v621 = vsel %vm349, %v593, 0
    %623 = vmatprep.subr.mxu0 0.0
    %624 = vmatpush1.msra.mxu0 %v594
    %625 = vmatprep.subr.mxu0 0.0
    %626 = vmatpush1.msra.mxu0 %v595
    %627 = vmatprep.subr.mxu0 0.0
    %628 = vmatpush1.msra.mxu0 %v596
    %629 = vmatprep.subr.mxu0 0.0
    %630 = vmatpush1.msra.mxu0 %v597
    %631 = vmatprep.subr.mxu0 0.0
    %632 = vmatpush1.msra.mxu0 0.0
    %633 = vmatprep.subr.mxu0 0.0
    %634 = vmatpush1.msra.mxu0 0.0
    %635 = vmatprep.subr.mxu0 0.0
    %636 = vmatpush1.msra.mxu0 0.0
    %637 = vmatprep.subr.mxu0 0.0
    %638 = vmatpush1.msra.mxu0 0.0
    %639 = vmatprep.subr.mxu0 0.0
    %640 = vmatpush1.msra.mxu0 0.0
    %641 = vmatprep.subr.mxu0 0.0
    %642 = vmatpush1.msra.mxu0 0.0
    %643 = vmatprep.subr.mxu0 0.0
    %644 = vmatpush1.msra.mxu0 0.0
    %645 = vmatprep.subr.mxu0 0.0
    %646 = vmatpush1.msra.mxu0 0.0
    %647 = vmatprep.subr.mxu0 0.0
    %648 = vmatpush1.msra.mxu0 0.0
    %649 = vmatprep.subr.mxu0 0.0
    %650 = vmatpush1.msra.mxu0 0.0
    %651 = vmatprep.subr.mxu0 0.0
    %652 = vmatpush1.msra.mxu0 0.0
    %653 = vmatprep.subr.mxu0 0.0
    %654 = vmatpush1.msra.mxu0 0.0
    %655 = vmatprep.subr.mxu0 0.0
    %656 = vmatpush1.msra.mxu0 0.0
    %657 = vmatprep.subr.mxu0 0.0
    %658 = vmatpush1.msra.mxu0 0.0
    %659 = vmatprep.subr.mxu0 0.0
    %660 = vmatpush1.msra.mxu0 0.0
    %661 = vmatprep.subr.mxu0 0.0
    %662 = vmatpush1.msra.mxu0 0.0
    %663 = vmatprep.subr.mxu0 0.0
    %664 = vmatpush1.msra.mxu0 0.0
    %665 = vmatprep.subr.mxu0 0.0
    %666 = vmatpush1.msra.mxu0 0.0
    %667 = vmatprep.subr.mxu0 0.0
    %668 = vmatpush1.msra.mxu0 0.0
    %669 = vmatprep.subr.mxu0 0.0
    %670 = vmatpush1.msra.mxu0 0.0
    %671 = vmatprep.subr.mxu0 0.0
    %672 = vmatpush1.msra.mxu0 0.0
    %673 = vmatprep.subr.mxu0 0.0
    %674 = vmatpush1.msra.mxu0 0.0
    %675 = vmatprep.subr.mxu0 0.0
    %676 = vmatpush1.msra.mxu0 0.0
    %677 = vmatprep.subr.mxu0 0.0
    %678 = vmatpush1.msra.mxu0 0.0
    %679 = vmatprep.subr.mxu0 0.0
    %680 = vmatpush1.msra.mxu0 0.0
    %681 = vmatprep.subr.mxu0 0.0
    %682 = vmatpush1.msra.mxu0 0.0
    %683 = vmatprep.subr.mxu0 0.0
    %684 = vmatpush1.msra.mxu0 0.0
    %685 = vmatprep.subr.mxu0 0.0
    %686 = vmatpush1.msra.mxu0 0.0
    %687 = vmatprep.mubr.f32.mxu0 0.0
    %688 = vmatmul.mubr.f32.gmra.mrb[0].mxu0 %v606
    %v689 = vpop.f32.mrb[0].mxu0
    %v690 = vadd.f32 %v603, %v689
    %v691 = vpop.f32.mrb[0].mxu0
    %692 = vmatprep.mubr.f32.mxu0 0.0
    %693 = vmatmul.mubr.f32.gmra.mrb[0].mxu0 %v609
    %v694 = vpop.f32.mrb[0].mxu0
    %v695 = vadd.f32 %v603, %v694
    %v696 = vpop.f32.mrb[0].mxu0
    %697 = vmatprep.mubr.f32.mxu0 0.0
    %698 = vmatmul.mubr.f32.gmra.mrb[0].mxu0 %v612
    %v699 = vpop.f32.mrb[0].mxu0
    %v700 = vadd.f32 %v603, %v699
    %v701 = vpop.f32.mrb[0].mxu0
    %702 = vmatprep.mubr.f32.mxu0 0.0
    %703 = vmatmul.mubr.f32.gmra.mrb[0].mxu0 %v615
    %v704 = vpop.f32.mrb[0].mxu0
    %v705 = vadd.f32 %v603, %v704
    %v706 = vpop.f32.mrb[0].mxu0
    %707 = vmatprep.mubr.f32.mxu0 0.0
    %708 = vmatmul.mubr.f32.gmra.mrb[0].mxu0 %v618
    %v709 = vpop.f32.mrb[0].mxu0
    %v710 = vadd.f32 %v603, %v709
    %v711 = vpop.f32.mrb[0].mxu0
    %712 = vmatprep.mubr.f32.mxu0 0.0
    %713 = vmatmul.mubr.f32.gmra.mrb[0].mxu0 %v621
    %v714 = vpop.f32.mrb[0].mxu0
    %v715 = vadd.f32 %v603, %v714
    %v716 = vpop.f32.mrb[0].mxu0
    %717 = vdwg.mxu0
    %v718 = vld [vmem:[%s35] sm:$0xff]
    %v719 = vld [vmem:[%s35 + $0x8] sm:$0xff]
    %v720 = vld [vmem:[%s35 + $0x10] sm:$0xff]
    %v721 = vld [vmem:[%s35 + $0x18] sm:$0xff]
    %725 = vrot.lane.b32.xlu0 %v690, 96
    %v726 = vpop.permute.xlu0 %725
    %727 = vrot.lane.b32.xlu0 %v695, 96
    %v728 = vpop.permute.xlu0 %727
    %729 = vrot.lane.b32.xlu0 %v700, 96
    %v730 = vpop.permute.xlu0 %729
    %vm731 = vcmask 130048
    %v732 = vsel %vm731, %v690, 0
    %v734 = vsel %vm731, %v695, 0
    %v736 = vsel %vm731, %v700, 0
    %v738 = vsel %vm731, %v726, 0
    %v740 = vsel %vm731, %v728, 0
    %v742 = vsel %vm731, %v730, 0
    %744 = vmatprep.subr.mxu0 0.0
    %745 = vmatpush1.xpose.msra.mxu0 %v738
    %746 = vmatprep.subr.mxu0 0.0
    %747 = vmatpush1.xpose.msra.mxu0 %v740
    %748 = vmatprep.subr.mxu0 0.0
    %749 = vmatpush1.xpose.msra.mxu0 %v742
    %750 = vmatprep.subr.mxu0 0.0
    %751 = vmatpush1.xpose.msra.mxu0 0.0
    %752 = vmatprep.subr.mxu0 0.0
    %753 = vmatpush1.xpose.msra.mxu0 0.0
    %754 = vmatprep.subr.mxu0 0.0
    %755 = vmatpush1.xpose.msra.mxu0 0.0
    %756 = vmatprep.subr.mxu0 0.0
    %757 = vmatpush1.xpose.msra.mxu0 0.0
    %758 = vmatprep.subr.mxu0 0.0
    %759 = vmatpush1.xpose.msra.mxu0 0.0
    %760 = vmatprep.subr.mxu0 0.0
    %761 = vmatpush1.xpose.msra.mxu0 0.0
    %762 = vmatprep.subr.mxu0 0.0
    %763 = vmatpush1.xpose.msra.mxu0 0.0
    %764 = vmatprep.subr.mxu0 0.0
    %765 = vmatpush1.xpose.msra.mxu0 0.0
    %766 = vmatprep.subr.mxu0 0.0
    %767 = vmatpush1.xpose.msra.mxu0 0.0
    %768 = vmatprep.subr.mxu0 0.0
    %769 = vmatpush1.xpose.msra.mxu0 0.0
    %770 = vmatprep.subr.mxu0 0.0
    %771 = vmatpush1.xpose.msra.mxu0 0.0
    %772 = vmatprep.subr.mxu0 0.0
    %773 = vmatpush1.xpose.msra.mxu0 0.0
    %774 = vmatprep.subr.mxu0 0.0
    %775 = vmatpush1.xpose.msra.mxu0 0.0
    %776 = vmatprep.subr.mxu0 0.0
    %777 = vmatpush1.xpose.msra.mxu0 0.0
    %778 = vmatprep.subr.mxu0 0.0
    %779 = vmatpush1.xpose.msra.mxu0 0.0
    %780 = vmatprep.subr.mxu0 0.0
    %781 = vmatpush1.xpose.msra.mxu0 0.0
    %782 = vmatprep.subr.mxu0 0.0
    %783 = vmatpush1.xpose.msra.mxu0 0.0
    %784 = vmatprep.subr.mxu0 0.0
    %785 = vmatpush1.xpose.msra.mxu0 0.0
    %786 = vmatprep.subr.mxu0 0.0
    %787 = vmatpush1.xpose.msra.mxu0 0.0
    %788 = vmatprep.subr.mxu0 0.0
    %789 = vmatpush1.xpose.msra.mxu0 0.0
    %790 = vmatprep.subr.mxu0 0.0
    %791 = vmatpush1.xpose.msra.mxu0 0.0
    %792 = vmatprep.subr.mxu0 0.0
    %793 = vmatpush1.xpose.msra.mxu0 0.0
    %794 = vmatprep.subr.mxu0 0.0
    %795 = vmatpush1.xpose.msra.mxu0 0.0
    %796 = vmatprep.subr.mxu0 0.0
    %797 = vmatpush1.xpose.msra.mxu0 0.0
    %798 = vmatprep.subr.mxu0 0.0
    %799 = vmatpush1.xpose.msra.mxu0 0.0
    %800 = vmatprep.subr.mxu0 0.0
    %801 = vmatpush1.xpose.msra.mxu0 0.0
    %802 = vmatprep.subr.mxu0 0.0
    %803 = vmatpush1.xpose.msra.mxu0 0.0
    %804 = vmatprep.subr.mxu0 0.0
    %805 = vmatpush1.xpose.msra.mxu0 0.0
    %806 = vmatprep.subr.mxu0 0.0
    %807 = vmatpush1.xpose.msra.mxu0 0.0
    %808 = vmatprep.mubr.f32.mxu0 0.0
    %809 = vmatmul.mubr.f32.gmra.mrb[0].mxu0 %v732
    %v810 = vpop.f32.mrb[0].mxu0
    %v811 = vadd.f32 0.0, %v810
    %v812 = vpop.f32.mrb[0].mxu0
    %813 = vmatprep.mubr.f32.mxu0 0.0
    %814 = vmatmul.mubr.f32.gmra.mrb[0].mxu0 %v734
    %v815 = vpop.f32.mrb[0].mxu0
    %v816 = vadd.f32 0.0, %v815
    %v817 = vpop.f32.mrb[0].mxu0
    %818 = vmatprep.mubr.f32.mxu0 0.0
    %819 = vmatmul.mubr.f32.gmra.mrb[0].mxu0 %v736
    %v820 = vpop.f32.mrb[0].mxu0
    %v821 = vadd.f32 0.0, %v820
    %v822 = vpop.f32.mrb[0].mxu0
    %823 = vdwg.mxu0
    %v824 = vmul.f32 %v811, 0.25
    %v825 = vmul.f32 %v816, 0.25
    %v826 = vmul.f32 %v821, 0.25
    %v827 = vadd.f32 %v824, %v486
    %v828 = vadd.f32 %v825, %v487
    %v829 = vadd.f32 %v826, %v488
    %v830 = vsel %vm251, %v827, -inf
    %831 = vmax.xlane.f32.xlu0 %v830
    %v832 = vpop.xlane.xlu0 %831
    %v833 = vsel %vm251, %v828, -inf
    %834 = vmax.xlane.f32.xlu0 %v833
    %v835 = vpop.xlane.xlu0 %834
    %v836 = vsel %vm251, %v829, -inf
    %837 = vmax.xlane.f32.xlu0 %v836
    %v838 = vpop.xlane.xlu0 %837
    %v839 = vsub.f32 %v827, %v832
    %v840 = vsub.f32 %v828, %v835
    %v841 = vsub.f32 %v829, %v838
    %v842 = vmul.f32 %v839, 1.442695
    %v843 = vpow.pop %v842
    %v844 = vmul.f32 %v840, 1.442695
    %v845 = vpow.pop %v844
    %v846 = vmul.f32 %v841, 1.442695
    %v847 = vpow.pop %v846
    %v848 = vsel %vm251, %v843, 0.0
    %849 = vadd.xlane.f32.xlu0 %v848
    %v850 = vpop.xlane.xlu0 %849
    %v851 = vsel %vm251, %v845, 0.0
    %852 = vadd.xlane.f32.xlu0 %v851
    %v853 = vpop.xlane.xlu0 %852
    %v854 = vsel %vm251, %v847, 0.0
    %855 = vadd.xlane.f32.xlu0 %v854
    %v856 = vpop.xlane.xlu0 %855
    %v857 = vrcp.pop %v850
    %v858 = vrcp.pop %v853
    %v859 = vrcp.pop %v856
    %v860 = vmul.f32 %v843, %v857
    %v861 = vmul.f32 %v845, %v858
    %v862 = vmul.f32 %v847, %v859
    %863 = vrot.lane.b32.xlu0 %v690, 64
    %v864 = vpop.permute.xlu0 %863
    %865 = vrot.lane.b32.xlu0 %v695, 64
    %v866 = vpop.permute.xlu0 %865
    %867 = vrot.lane.b32.xlu0 %v700, 64
    %v868 = vpop.permute.xlu0 %867
    %v873 = vsel %vm251, %v860, 0
    %v876 = vsel %vm251, %v861, 0
    %v879 = vsel %vm251, %v862, 0
    %881 = vmatprep.subr.mxu0 0.0
    %882 = vmatpush1.msra.mxu0 %v864
    %883 = vmatprep.subr.mxu0 0.0
    %884 = vmatpush1.msra.mxu0 %v866
    %885 = vmatprep.subr.mxu0 0.0
    %886 = vmatpush1.msra.mxu0 %v868
    %887 = vmatprep.subr.mxu0 0.0
    %888 = vmatpush1.msra.mxu0 0.0
    %889 = vmatprep.subr.mxu0 0.0
    %890 = vmatpush1.msra.mxu0 0.0
    %891 = vmatprep.subr.mxu0 0.0
    %892 = vmatpush1.msra.mxu0 0.0
    %893 = vmatprep.subr.mxu0 0.0
    %894 = vmatpush1.msra.mxu0 0.0
    %895 = vmatprep.subr.mxu0 0.0
    %896 = vmatpush1.msra.mxu0 0.0
    %897 = vmatprep.subr.mxu0 0.0
    %898 = vmatpush1.msra.mxu0 0.0
    %899 = vmatprep.subr.mxu0 0.0
    %900 = vmatpush1.msra.mxu0 0.0
    %901 = vmatprep.subr.mxu0 0.0
    %902 = vmatpush1.msra.mxu0 0.0
    %903 = vmatprep.subr.mxu0 0.0
    %904 = vmatpush1.msra.mxu0 0.0
    %905 = vmatprep.subr.mxu0 0.0
    %906 = vmatpush1.msra.mxu0 0.0
    %907 = vmatprep.subr.mxu0 0.0
    %908 = vmatpush1.msra.mxu0 0.0
    %909 = vmatprep.subr.mxu0 0.0
    %910 = vmatpush1.msra.mxu0 0.0
    %911 = vmatprep.subr.mxu0 0.0
    %912 = vmatpush1.msra.mxu0 0.0
    %913 = vmatprep.subr.mxu0 0.0
    %914 = vmatpush1.msra.mxu0 0.0
    %915 = vmatprep.subr.mxu0 0.0
    %916 = vmatpush1.msra.mxu0 0.0
    %917 = vmatprep.subr.mxu0 0.0
    %918 = vmatpush1.msra.mxu0 0.0
    %919 = vmatprep.subr.mxu0 0.0
    %920 = vmatpush1.msra.mxu0 0.0
    %921 = vmatprep.subr.mxu0 0.0
    %922 = vmatpush1.msra.mxu0 0.0
    %923 = vmatprep.subr.mxu0 0.0
    %924 = vmatpush1.msra.mxu0 0.0
    %925 = vmatprep.subr.mxu0 0.0
    %926 = vmatpush1.msra.mxu0 0.0
    %927 = vmatprep.subr.mxu0 0.0
    %928 = vmatpush1.msra.mxu0 0.0
    %929 = vmatprep.subr.mxu0 0.0
    %930 = vmatpush1.msra.mxu0 0.0
    %931 = vmatprep.subr.mxu0 0.0
    %932 = vmatpush1.msra.mxu0 0.0
    %933 = vmatprep.subr.mxu0 0.0
    %934 = vmatpush1.msra.mxu0 0.0
    %935 = vmatprep.subr.mxu0 0.0
    %936 = vmatpush1.msra.mxu0 0.0
    %937 = vmatprep.subr.mxu0 0.0
    %938 = vmatpush1.msra.mxu0 0.0
    %939 = vmatprep.subr.mxu0 0.0
    %940 = vmatpush1.msra.mxu0 0.0
    %941 = vmatprep.subr.mxu0 0.0
    %942 = vmatpush1.msra.mxu0 0.0
    %943 = vmatprep.subr.mxu0 0.0
    %944 = vmatpush1.msra.mxu0 0.0
    %945 = vmatprep.mubr.f32.mxu0 0.0
    %946 = vmatmul.mubr.f32.gmra.mrb[0].mxu0 %v873
    %v947 = vpop.f32.mrb[0].mxu0
    %v948 = vadd.f32 0.0, %v947
    %v949 = vpop.f32.mrb[0].mxu0
    %950 = vmatprep.mubr.f32.mxu0 0.0
    %951 = vmatmul.mubr.f32.gmra.mrb[0].mxu0 %v876
    %v952 = vpop.f32.mrb[0].mxu0
    %v953 = vadd.f32 0.0, %v952
    %v954 = vpop.f32.mrb[0].mxu0
    %955 = vmatprep.mubr.f32.mxu0 0.0
    %956 = vmatmul.mubr.f32.gmra.mrb[0].mxu0 %v879
    %v957 = vpop.f32.mrb[0].mxu0
    %v958 = vadd.f32 0.0, %v957
    %v959 = vpop.f32.mrb[0].mxu0
    %960 = vdwg.mxu0
    %961 = vrot.lane.b32.xlu0 %v690, 112
    %v962 = vpop.permute.xlu0 %961
    %963 = vrot.lane.b32.xlu0 %v695, 112
    %v964 = vpop.permute.xlu0 %963
    %965 = vrot.lane.b32.xlu0 %v700, 112
    %v966 = vpop.permute.xlu0 %965
    %967 = vrot.lane.b32.xlu0 %v690, 80
    %v968 = vpop.permute.xlu0 %967
    %969 = vrot.lane.b32.xlu0 %v695, 80
    %v970 = vpop.permute.xlu0 %969
    %971 = vrot.lane.b32.xlu0 %v700, 80
    %v972 = vpop.permute.xlu0 %971
    %v973 = vsel %vm731, %v962, 0
    %v975 = vsel %vm731, %v964, 0
    %v977 = vsel %vm731, %v966, 0
    %v979 = vsel %vm731, %v968, 0
    %v981 = vsel %vm731, %v970, 0
    %v983 = vsel %vm731, %v972, 0
    %985 = vmatprep.subr.mxu0 0.0
    %986 = vmatpush1.xpose.msra.mxu0 %v979
    %987 = vmatprep.subr.mxu0 0.0
    %988 = vmatpush1.xpose.msra.mxu0 %v981
    %989 = vmatprep.subr.mxu0 0.0
    %990 = vmatpush1.xpose.msra.mxu0 %v983
    %991 = vmatprep.subr.mxu0 0.0
    %992 = vmatpush1.xpose.msra.mxu0 0.0
    %993 = vmatprep.subr.mxu0 0.0
    %994 = vmatpush1.xpose.msra.mxu0 0.0
    %995 = vmatprep.subr.mxu0 0.0
    %996 = vmatpush1.xpose.msra.mxu0 0.0
    %997 = vmatprep.subr.mxu0 0.0
    %998 = vmatpush1.xpose.msra.mxu0 0.0
    %999 = vmatprep.subr.mxu0 0.0
    %1000 = vmatpush1.xpose.msra.mxu0 0.0
    %1001 = vmatprep.subr.mxu0 0.0
    %1002 = vmatpush1.xpose.msra.mxu0 0.0
    %1003 = vmatprep.subr.mxu0 0.0
    %1004 = vmatpush1.xpose.msra.mxu0 0.0
    %1005 = vmatprep.subr.mxu0 0.0
    %1006 = vmatpush1.xpose.msra.mxu0 0.0
    %1007 = vmatprep.subr.mxu0 0.0
    %1008 = vmatpush1.xpose.msra.mxu0 0.0
    %1009 = vmatprep.subr.mxu0 0.0
    %1010 = vmatpush1.xpose.msra.mxu0 0.0
    %1011 = vmatprep.subr.mxu0 0.0
    %1012 = vmatpush1.xpose.msra.mxu0 0.0
    %1013 = vmatprep.subr.mxu0 0.0
    %1014 = vmatpush1.xpose.msra.mxu0 0.0
    %1015 = vmatprep.subr.mxu0 0.0
    %1016 = vmatpush1.xpose.msra.mxu0 0.0
    %1017 = vmatprep.subr.mxu0 0.0
    %1018 = vmatpush1.xpose.msra.mxu0 0.0
    %1019 = vmatprep.subr.mxu0 0.0
    %1020 = vmatpush1.xpose.msra.mxu0 0.0
    %1021 = vmatprep.subr.mxu0 0.0
    %1022 = vmatpush1.xpose.msra.mxu0 0.0
    %1023 = vmatprep.subr.mxu0 0.0
    %1024 = vmatpush1.xpose.msra.mxu0 0.0
    %1025 = vmatprep.subr.mxu0 0.0
    %1026 = vmatpush1.xpose.msra.mxu0 0.0
    %1027 = vmatprep.subr.mxu0 0.0
    %1028 = vmatpush1.xpose.msra.mxu0 0.0
    %1029 = vmatprep.subr.mxu0 0.0
    %1030 = vmatpush1.xpose.msra.mxu0 0.0
    %1031 = vmatprep.subr.mxu0 0.0
    %1032 = vmatpush1.xpose.msra.mxu0 0.0
    %1033 = vmatprep.subr.mxu0 0.0
    %1034 = vmatpush1.xpose.msra.mxu0 0.0
    %1035 = vmatprep.subr.mxu0 0.0
    %1036 = vmatpush1.xpose.msra.mxu0 0.0
    %1037 = vmatprep.subr.mxu0 0.0
    %1038 = vmatpush1.xpose.msra.mxu0 0.0
    %1039 = vmatprep.subr.mxu0 0.0
    %1040 = vmatpush1.xpose.msra.mxu0 0.0
    %1041 = vmatprep.subr.mxu0 0.0
    %1042 = vmatpush1.xpose.msra.mxu0 0.0
    %1043 = vmatprep.subr.mxu0 0.0
    %1044 = vmatpush1.xpose.msra.mxu0 0.0
    %1045 = vmatprep.subr.mxu0 0.0
    %1046 = vmatpush1.xpose.msra.mxu0 0.0
    %1047 = vmatprep.subr.mxu0 0.0
    %1048 = vmatpush1.xpose.msra.mxu0 0.0
    %1049 = vmatprep.mubr.f32.mxu0 0.0
    %1050 = vmatmul.mubr.f32.gmra.mrb[0].mxu0 %v973
    %v1051 = vpop.f32.mrb[0].mxu0
    %v1052 = vadd.f32 0.0, %v1051
    %v1053 = vpop.f32.mrb[0].mxu0
    %1054 = vmatprep.mubr.f32.mxu0 0.0
    %1055 = vmatmul.mubr.f32.gmra.mrb[0].mxu0 %v975
    %v1056 = vpop.f32.mrb[0].mxu0
    %v1057 = vadd.f32 0.0, %v1056
    %v1058 = vpop.f32.mrb[0].mxu0
    %1059 = vmatprep.mubr.f32.mxu0 0.0
    %1060 = vmatmul.mubr.f32.gmra.mrb[0].mxu0 %v977
    %v1061 = vpop.f32.mrb[0].mxu0
    %v1062 = vadd.f32 0.0, %v1061
    %v1063 = vpop.f32.mrb[0].mxu0
    %1064 = vdwg.mxu0
    %v1065 = vmul.f32 %v1052, 0.25
    %v1066 = vmul.f32 %v1057, 0.25
    %v1067 = vmul.f32 %v1062, 0.25
    %v1068 = vadd.f32 %v1065, %v486
    %v1069 = vadd.f32 %v1066, %v487
    %v1070 = vadd.f32 %v1067, %v488
    %v1071 = vsel %vm251, %v1068, -inf
    %1072 = vmax.xlane.f32.xlu0 %v1071
    %v1073 = vpop.xlane.xlu0 %1072
    %v1074 = vsel %vm251, %v1069, -inf
    %1075 = vmax.xlane.f32.xlu0 %v1074
    %v1076 = vpop.xlane.xlu0 %1075
    %v1077 = vsel %vm251, %v1070, -inf
    %1078 = vmax.xlane.f32.xlu0 %v1077
    %v1079 = vpop.xlane.xlu0 %1078
    %v1080 = vsub.f32 %v1068, %v1073
    %v1081 = vsub.f32 %v1069, %v1076
    %v1082 = vsub.f32 %v1070, %v1079
    %v1083 = vmul.f32 %v1080, 1.442695
    %v1084 = vpow.pop %v1083
    %v1085 = vmul.f32 %v1081, 1.442695
    %v1086 = vpow.pop %v1085
    %v1087 = vmul.f32 %v1082, 1.442695
    %v1088 = vpow.pop %v1087
    %v1089 = vsel %vm251, %v1084, 0.0
    %1090 = vadd.xlane.f32.xlu0 %v1089
    %v1091 = vpop.xlane.xlu0 %1090
    %v1092 = vsel %vm251, %v1086, 0.0
    %1093 = vadd.xlane.f32.xlu0 %v1092
    %v1094 = vpop.xlane.xlu0 %1093
    %v1095 = vsel %vm251, %v1088, 0.0
    %1096 = vadd.xlane.f32.xlu0 %v1095
    %v1097 = vpop.xlane.xlu0 %1096
    %v1098 = vrcp.pop %v1091
    %v1099 = vrcp.pop %v1094
    %v1100 = vrcp.pop %v1097
    %v1101 = vmul.f32 %v1084, %v1098
    %v1102 = vmul.f32 %v1086, %v1099
    %v1103 = vmul.f32 %v1088, %v1100
    %1104 = vrot.lane.b32.xlu0 %v690, 48
    %v1105 = vpop.permute.xlu0 %1104
    %1106 = vrot.lane.b32.xlu0 %v695, 48
    %v1107 = vpop.permute.xlu0 %1106
    %1108 = vrot.lane.b32.xlu0 %v700, 48
    %v1109 = vpop.permute.xlu0 %1108
    %v1114 = vsel %vm251, %v1101, 0
    %v1117 = vsel %vm251, %v1102, 0
    %v1120 = vsel %vm251, %v1103, 0
    %1122 = vmatprep.subr.mxu0 0.0
    %1123 = vmatpush1.msra.mxu0 %v1105
    %1124 = vmatprep.subr.mxu0 0.0
    %1125 = vmatpush1.msra.mxu0 %v1107
    %1126 = vmatprep.subr.mxu0 0.0
    %1127 = vmatpush1.msra.mxu0 %v1109
    %1128 = vmatprep.subr.mxu0 0.0
    %1129 = vmatpush1.msra.mxu0 0.0
    %1130 = vmatprep.subr.mxu0 0.0
    %1131 = vmatpush1.msra.mxu0 0.0
    %1132 = vmatprep.subr.mxu0 0.0
    %1133 = vmatpush1.msra.mxu0 0.0
    %1134 = vmatprep.subr.mxu0 0.0
    %1135 = vmatpush1.msra.mxu0 0.0
    %1136 = vmatprep.subr.mxu0 0.0
    %1137 = vmatpush1.msra.mxu0 0.0
    %1138 = vmatprep.subr.mxu0 0.0
    %1139 = vmatpush1.msra.mxu0 0.0
    %1140 = vmatprep.subr.mxu0 0.0
    %1141 = vmatpush1.msra.mxu0 0.0
    %1142 = vmatprep.subr.mxu0 0.0
    %1143 = vmatpush1.msra.mxu0 0.0
    %1144 = vmatprep.subr.mxu0 0.0
    %1145 = vmatpush1.msra.mxu0 0.0
    %1146 = vmatprep.subr.mxu0 0.0
    %1147 = vmatpush1.msra.mxu0 0.0
    %1148 = vmatprep.subr.mxu0 0.0
    %1149 = vmatpush1.msra.mxu0 0.0
    %1150 = vmatprep.subr.mxu0 0.0
    %1151 = vmatpush1.msra.mxu0 0.0
    %1152 = vmatprep.subr.mxu0 0.0
    %1153 = vmatpush1.msra.mxu0 0.0
    %1154 = vmatprep.subr.mxu0 0.0
    %1155 = vmatpush1.msra.mxu0 0.0
    %1156 = vmatprep.subr.mxu0 0.0
    %1157 = vmatpush1.msra.mxu0 0.0
    %1158 = vmatprep.subr.mxu0 0.0
    %1159 = vmatpush1.msra.mxu0 0.0
    %1160 = vmatprep.subr.mxu0 0.0
    %1161 = vmatpush1.msra.mxu0 0.0
    %1162 = vmatprep.subr.mxu0 0.0
    %1163 = vmatpush1.msra.mxu0 0.0
    %1164 = vmatprep.subr.mxu0 0.0
    %1165 = vmatpush1.msra.mxu0 0.0
    %1166 = vmatprep.subr.mxu0 0.0
    %1167 = vmatpush1.msra.mxu0 0.0
    %1168 = vmatprep.subr.mxu0 0.0
    %1169 = vmatpush1.msra.mxu0 0.0
    %1170 = vmatprep.subr.mxu0 0.0
    %1171 = vmatpush1.msra.mxu0 0.0
    %1172 = vmatprep.subr.mxu0 0.0
    %1173 = vmatpush1.msra.mxu0 0.0
    %1174 = vmatprep.subr.mxu0 0.0
    %1175 = vmatpush1.msra.mxu0 0.0
    %1176 = vmatprep.subr.mxu0 0.0
    %1177 = vmatpush1.msra.mxu0 0.0
    %1178 = vmatprep.subr.mxu0 0.0
    %1179 = vmatpush1.msra.mxu0 0.0
    %1180 = vmatprep.subr.mxu0 0.0
    %1181 = vmatpush1.msra.mxu0 0.0
    %1182 = vmatprep.subr.mxu0 0.0
    %1183 = vmatpush1.msra.mxu0 0.0
    %1184 = vmatprep.subr.mxu0 0.0
    %1185 = vmatpush1.msra.mxu0 0.0
    %1186 = vmatprep.mubr.f32.mxu0 0.0
    %1187 = vmatmul.mubr.f32.gmra.mrb[0].mxu0 %v1114
    %v1188 = vpop.f32.mrb[0].mxu0
    %v1189 = vadd.f32 0.0, %v1188
    %v1190 = vpop.f32.mrb[0].mxu0
    %1191 = vmatprep.mubr.f32.mxu0 0.0
    %1192 = vmatmul.mubr.f32.gmra.mrb[0].mxu0 %v1117
    %v1193 = vpop.f32.mrb[0].mxu0
    %v1194 = vadd.f32 0.0, %v1193
    %v1195 = vpop.f32.mrb[0].mxu0
    %1196 = vmatprep.mubr.f32.mxu0 0.0
    %1197 = vmatmul.mubr.f32.gmra.mrb[0].mxu0 %v1120
    %v1198 = vpop.f32.mrb[0].mxu0
    %v1199 = vadd.f32 0.0, %v1198
    %v1200 = vpop.f32.mrb[0].mxu0
    %1201 = vdwg.mxu0
    %v1203 = vsel %vm731, %v1189, 0
    %v1206 = vsel %vm731, %v1194, 0
    %v1209 = vsel %vm731, %v1199, 0
    %1211 = vmatprep.subr.mxu0 0.0
    %1212 = vmatpush1.msra.mxu0 %v720
    %1213 = vmatprep.subr.mxu0 0.0
    %1214 = vmatpush1.msra.mxu0 %v721
    %1215 = vmatprep.subr.mxu0 0.0
    %1216 = vmatpush1.msra.mxu0 0.0
    %1217 = vmatprep.subr.mxu0 0.0
    %1218 = vmatpush1.msra.mxu0 0.0
    %1219 = vmatprep.subr.mxu0 0.0
    %1220 = vmatpush1.msra.mxu0 0.0
    %1221 = vmatprep.subr.mxu0 0.0
    %1222 = vmatpush1.msra.mxu0 0.0
    %1223 = vmatprep.subr.mxu0 0.0
    %1224 = vmatpush1.msra.mxu0 0.0
    %1225 = vmatprep.subr.mxu0 0.0
    %1226 = vmatpush1.msra.mxu0 0.0
    %1227 = vmatprep.subr.mxu0 0.0
    %1228 = vmatpush1.msra.mxu0 0.0
    %1229 = vmatprep.subr.mxu0 0.0
    %1230 = vmatpush1.msra.mxu0 0.0
    %1231 = vmatprep.subr.mxu0 0.0
    %1232 = vmatpush1.msra.mxu0 0.0
    %1233 = vmatprep.subr.mxu0 0.0
    %1234 = vmatpush1.msra.mxu0 0.0
    %1235 = vmatprep.subr.mxu0 0.0
    %1236 = vmatpush1.msra.mxu0 0.0
    %1237 = vmatprep.subr.mxu0 0.0
    %1238 = vmatpush1.msra.mxu0 0.0
    %1239 = vmatprep.subr.mxu0 0.0
    %1240 = vmatpush1.msra.mxu0 0.0
    %1241 = vmatprep.subr.mxu0 0.0
    %1242 = vmatpush1.msra.mxu0 0.0
    %1243 = vmatprep.subr.mxu0 0.0
    %1244 = vmatpush1.msra.mxu0 0.0
    %1245 = vmatprep.subr.mxu0 0.0
    %1246 = vmatpush1.msra.mxu0 0.0
    %1247 = vmatprep.subr.mxu0 0.0
    %1248 = vmatpush1.msra.mxu0 0.0
    %1249 = vmatprep.subr.mxu0 0.0
    %1250 = vmatpush1.msra.mxu0 0.0
    %1251 = vmatprep.subr.mxu0 0.0
    %1252 = vmatpush1.msra.mxu0 0.0
    %1253 = vmatprep.subr.mxu0 0.0
    %1254 = vmatpush1.msra.mxu0 0.0
    %1255 = vmatprep.subr.mxu0 0.0
    %1256 = vmatpush1.msra.mxu0 0.0
    %1257 = vmatprep.subr.mxu0 0.0
    %1258 = vmatpush1.msra.mxu0 0.0
    %1259 = vmatprep.subr.mxu0 0.0
    %1260 = vmatpush1.msra.mxu0 0.0
    %1261 = vmatprep.subr.mxu0 0.0
    %1262 = vmatpush1.msra.mxu0 0.0
    %1263 = vmatprep.subr.mxu0 0.0
    %1264 = vmatpush1.msra.mxu0 0.0
    %1265 = vmatprep.subr.mxu0 0.0
    %1266 = vmatpush1.msra.mxu0 0.0
    %1267 = vmatprep.subr.mxu0 0.0
    %1268 = vmatpush1.msra.mxu0 0.0
    %1269 = vmatprep.subr.mxu0 0.0
    %1270 = vmatpush1.msra.mxu0 0.0
    %1271 = vmatprep.subr.mxu0 0.0
    %1272 = vmatpush1.msra.mxu0 0.0
    %1273 = vmatprep.subr.mxu0 0.0
    %1274 = vmatpush1.msra.mxu0 0.0
    %1275 = vmatprep.mubr.f32.mxu0 0.0
    %1276 = vmatmul.mubr.f32.gmra.mrb[0].mxu0 %v1203
    %v1277 = vpop.f32.mrb[0].mxu0
    %v1278 = vadd.f32 0.0, %v1277
    %v1279 = vpop.f32.mrb[0].mxu0
    %1280 = vmatprep.mubr.f32.mxu0 0.0
    %1281 = vmatmul.mubr.f32.gmra.mrb[0].mxu0 %v1206
    %v1282 = vpop.f32.mrb[0].mxu0
    %v1283 = vadd.f32 0.0, %v1282
    %v1284 = vpop.f32.mrb[0].mxu0
    %1285 = vmatprep.mubr.f32.mxu0 0.0
    %1286 = vmatmul.mubr.f32.gmra.mrb[0].mxu0 %v1209
    %v1287 = vpop.f32.mrb[0].mxu0
    %v1288 = vadd.f32 0.0, %v1287
    %v1289 = vpop.f32.mrb[0].mxu0
    %1290 = vdwg.mxu0
    %v1292 = vsel %vm731, %v948, 0
    %v1295 = vsel %vm731, %v953, 0
    %v1298 = vsel %vm731, %v958, 0
    %1300 = vmatprep.subr.mxu0 0.0
    %1301 = vmatpush1.msra.mxu0 %v718
    %1302 = vmatprep.subr.mxu0 0.0
    %1303 = vmatpush1.msra.mxu0 %v719
    %1304 = vmatprep.subr.mxu0 0.0
    %1305 = vmatpush1.msra.mxu0 0.0
    %1306 = vmatprep.subr.mxu0 0.0
    %1307 = vmatpush1.msra.mxu0 0.0
    %1308 = vmatprep.subr.mxu0 0.0
    %1309 = vmatpush1.msra.mxu0 0.0
    %1310 = vmatprep.subr.mxu0 0.0
    %1311 = vmatpush1.msra.mxu0 0.0
    %1312 = vmatprep.subr.mxu0 0.0
    %1313 = vmatpush1.msra.mxu0 0.0
    %1314 = vmatprep.subr.mxu0 0.0
    %1315 = vmatpush1.msra.mxu0 0.0
    %1316 = vmatprep.subr.mxu0 0.0
    %1317 = vmatpush1.msra.mxu0 0.0
    %1318 = vmatprep.subr.mxu0 0.0
    %1319 = vmatpush1.msra.mxu0 0.0
    %1320 = vmatprep.subr.mxu0 0.0
    %1321 = vmatpush1.msra.mxu0 0.0
    %1322 = vmatprep.subr.mxu0 0.0
    %1323 = vmatpush1.msra.mxu0 0.0
    %1324 = vmatprep.subr.mxu0 0.0
    %1325 = vmatpush1.msra.mxu0 0.0
    %1326 = vmatprep.subr.mxu0 0.0
    %1327 = vmatpush1.msra.mxu0 0.0
    %1328 = vmatprep.subr.mxu0 0.0
    %1329 = vmatpush1.msra.mxu0 0.0
    %1330 = vmatprep.subr.mxu0 0.0
    %1331 = vmatpush1.msra.mxu0 0.0
    %1332 = vmatprep.subr.mxu0 0.0
    %1333 = vmatpush1.msra.mxu0 0.0
    %1334 = vmatprep.subr.mxu0 0.0
    %1335 = vmatpush1.msra.mxu0 0.0
    %1336 = vmatprep.subr.mxu0 0.0
    %1337 = vmatpush1.msra.mxu0 0.0
    %1338 = vmatprep.subr.mxu0 0.0
    %1339 = vmatpush1.msra.mxu0 0.0
    %1340 = vmatprep.subr.mxu0 0.0
    %1341 = vmatpush1.msra.mxu0 0.0
    %1342 = vmatprep.subr.mxu0 0.0
    %1343 = vmatpush1.msra.mxu0 0.0
    %1344 = vmatprep.subr.mxu0 0.0
    %1345 = vmatpush1.msra.mxu0 0.0
    %1346 = vmatprep.subr.mxu0 0.0
    %1347 = vmatpush1.msra.mxu0 0.0
    %1348 = vmatprep.subr.mxu0 0.0
    %1349 = vmatpush1.msra.mxu0 0.0
    %1350 = vmatprep.subr.mxu0 0.0
    %1351 = vmatpush1.msra.mxu0 0.0
    %1352 = vmatprep.subr.mxu0 0.0
    %1353 = vmatpush1.msra.mxu0 0.0
    %1354 = vmatprep.subr.mxu0 0.0
    %1355 = vmatpush1.msra.mxu0 0.0
    %1356 = vmatprep.subr.mxu0 0.0
    %1357 = vmatpush1.msra.mxu0 0.0
    %1358 = vmatprep.subr.mxu0 0.0
    %1359 = vmatpush1.msra.mxu0 0.0
    %1360 = vmatprep.subr.mxu0 0.0
    %1361 = vmatpush1.msra.mxu0 0.0
    %1362 = vmatprep.subr.mxu0 0.0
    %1363 = vmatpush1.msra.mxu0 0.0
    %1364 = vmatprep.mubr.f32.mxu0 0.0
    %1365 = vmatmul.mubr.f32.gmra.mrb[0].mxu0 %v1292
    %v1366 = vpop.f32.mrb[0].mxu0
    %v1367 = vadd.f32 %v1278, %v1366
    %v1368 = vpop.f32.mrb[0].mxu0
    %1369 = vmatprep.mubr.f32.mxu0 0.0
    %1370 = vmatmul.mubr.f32.gmra.mrb[0].mxu0 %v1295
    %v1371 = vpop.f32.mrb[0].mxu0
    %v1372 = vadd.f32 %v1283, %v1371
    %v1373 = vpop.f32.mrb[0].mxu0
    %1374 = vmatprep.mubr.f32.mxu0 0.0
    %1375 = vmatmul.mubr.f32.gmra.mrb[0].mxu0 %v1298
    %v1376 = vpop.f32.mrb[0].mxu0
    %v1377 = vadd.f32 %v1288, %v1376
    %v1378 = vpop.f32.mrb[0].mxu0
    %1379 = vdwg.mxu0
    %1383 = vrot.lane.b32.xlu0 %v705, 96
    %v1384 = vpop.permute.xlu0 %1383
    %1385 = vrot.lane.b32.xlu0 %v710, 96
    %v1386 = vpop.permute.xlu0 %1385
    %1387 = vrot.lane.b32.xlu0 %v715, 96
    %v1388 = vpop.permute.xlu0 %1387
    %v1389 = vsel %vm731, %v705, 0
    %v1391 = vsel %vm731, %v710, 0
    %v1393 = vsel %vm731, %v715, 0
    %v1395 = vsel %vm731, %v1384, 0
    %v1397 = vsel %vm731, %v1386, 0
    %v1399 = vsel %vm731, %v1388, 0
    %1401 = vmatprep.subr.mxu0 0.0
    %1402 = vmatpush1.xpose.msra.mxu0 %v1395
    %1403 = vmatprep.subr.mxu0 0.0
    %1404 = vmatpush1.xpose.msra.mxu0 %v1397
    %1405 = vmatprep.subr.mxu0 0.0
    %1406 = vmatpush1.xpose.msra.mxu0 %v1399
    %1407 = vmatprep.subr.mxu0 0.0
    %1408 = vmatpush1.xpose.msra.mxu0 0.0
    %1409 = vmatprep.subr.mxu0 0.0
    %1410 = vmatpush1.xpose.msra.mxu0 0.0
    %1411 = vmatprep.subr.mxu0 0.0
    %1412 = vmatpush1.xpose.msra.mxu0 0.0
    %1413 = vmatprep.subr.mxu0 0.0
    %1414 = vmatpush1.xpose.msra.mxu0 0.0
    %1415 = vmatprep.subr.mxu0 0.0
    %1416 = vmatpush1.xpose.msra.mxu0 0.0
    %1417 = vmatprep.subr.mxu0 0.0
    %1418 = vmatpush1.xpose.msra.mxu0 0.0
    %1419 = vmatprep.subr.mxu0 0.0
    %1420 = vmatpush1.xpose.msra.mxu0 0.0
    %1421 = vmatprep.subr.mxu0 0.0
    %1422 = vmatpush1.xpose.msra.mxu0 0.0
    %1423 = vmatprep.subr.mxu0 0.0
    %1424 = vmatpush1.xpose.msra.mxu0 0.0
    %1425 = vmatprep.subr.mxu0 0.0
    %1426 = vmatpush1.xpose.msra.mxu0 0.0
    %1427 = vmatprep.subr.mxu0 0.0
    %1428 = vmatpush1.xpose.msra.mxu0 0.0
    %1429 = vmatprep.subr.mxu0 0.0
    %1430 = vmatpush1.xpose.msra.mxu0 0.0
    %1431 = vmatprep.subr.mxu0 0.0
    %1432 = vmatpush1.xpose.msra.mxu0 0.0
    %1433 = vmatprep.subr.mxu0 0.0
    %1434 = vmatpush1.xpose.msra.mxu0 0.0
    %1435 = vmatprep.subr.mxu0 0.0
    %1436 = vmatpush1.xpose.msra.mxu0 0.0
    %1437 = vmatprep.subr.mxu0 0.0
    %1438 = vmatpush1.xpose.msra.mxu0 0.0
    %1439 = vmatprep.subr.mxu0 0.0
    %1440 = vmatpush1.xpose.msra.mxu0 0.0
    %1441 = vmatprep.subr.mxu0 0.0
    %1442 = vmatpush1.xpose.msra.mxu0 0.0
    %1443 = vmatprep.subr.mxu0 0.0
    %1444 = vmatpush1.xpose.msra.mxu0 0.0
    %1445 = vmatprep.subr.mxu0 0.0
    %1446 = vmatpush1.xpose.msra.mxu0 0.0
    %1447 = vmatprep.subr.mxu0 0.0
    %1448 = vmatpush1.xpose.msra.mxu0 0.0
    %1449 = vmatprep.subr.mxu0 0.0
    %1450 = vmatpush1.xpose.msra.mxu0 0.0
    %1451 = vmatprep.subr.mxu0 0.0
    %1452 = vmatpush1.xpose.msra.mxu0 0.0
    %1453 = vmatprep.subr.mxu0 0.0
    %1454 = vmatpush1.xpose.msra.mxu0 0.0
    %1455 = vmatprep.subr.mxu0 0.0
    %1456 = vmatpush1.xpose.msra.mxu0 0.0
    %1457 = vmatprep.subr.mxu0 0.0
    %1458 = vmatpush1.xpose.msra.mxu0 0.0
    %1459 = vmatprep.subr.mxu0 0.0
    %1460 = vmatpush1.xpose.msra.mxu0 0.0
    %1461 = vmatprep.subr.mxu0 0.0
    %1462 = vmatpush1.xpose.msra.mxu0 0.0
    %1463 = vmatprep.subr.mxu0 0.0
    %1464 = vmatpush1.xpose.msra.mxu0 0.0
    %1465 = vmatprep.mubr.f32.mxu0 0.0
    %1466 = vmatmul.mubr.f32.gmra.mrb[0].mxu0 %v1389
    %v1467 = vpop.f32.mrb[0].mxu0
    %v1468 = vadd.f32 0.0, %v1467
    %v1469 = vpop.f32.mrb[0].mxu0
    %1470 = vmatprep.mubr.f32.mxu0 0.0
    %1471 = vmatmul.mubr.f32.gmra.mrb[0].mxu0 %v1391
    %v1472 = vpop.f32.mrb[0].mxu0
    %v1473 = vadd.f32 0.0, %v1472
    %v1474 = vpop.f32.mrb[0].mxu0
    %1475 = vmatprep.mubr.f32.mxu0 0.0
    %1476 = vmatmul.mubr.f32.gmra.mrb[0].mxu0 %v1393
    %v1477 = vpop.f32.mrb[0].mxu0
    %v1478 = vadd.f32 0.0, %v1477
    %v1479 = vpop.f32.mrb[0].mxu0
    %1480 = vdwg.mxu0
    %v1481 = vmul.f32 %v1468, 0.25
    %v1482 = vmul.f32 %v1473, 0.25
    %v1483 = vmul.f32 %v1478, 0.25
    %v1484 = vadd.f32 %v1481, %v486
    %v1485 = vadd.f32 %v1482, %v487
    %v1486 = vadd.f32 %v1483, %v488
    %v1487 = vsel %vm251, %v1484, -inf
    %1488 = vmax.xlane.f32.xlu0 %v1487
    %v1489 = vpop.xlane.xlu0 %1488
    %v1490 = vsel %vm251, %v1485, -inf
    %1491 = vmax.xlane.f32.xlu0 %v1490
    %v1492 = vpop.xlane.xlu0 %1491
    %v1493 = vsel %vm251, %v1486, -inf
    %1494 = vmax.xlane.f32.xlu0 %v1493
    %v1495 = vpop.xlane.xlu0 %1494
    %v1496 = vsub.f32 %v1484, %v1489
    %v1497 = vsub.f32 %v1485, %v1492
    %v1498 = vsub.f32 %v1486, %v1495
    %v1499 = vmul.f32 %v1496, 1.442695
    %v1500 = vpow.pop %v1499
    %v1501 = vmul.f32 %v1497, 1.442695
    %v1502 = vpow.pop %v1501
    %v1503 = vmul.f32 %v1498, 1.442695
    %v1504 = vpow.pop %v1503
    %v1505 = vsel %vm251, %v1500, 0.0
    %1506 = vadd.xlane.f32.xlu0 %v1505
    %v1507 = vpop.xlane.xlu0 %1506
    %v1508 = vsel %vm251, %v1502, 0.0
    %1509 = vadd.xlane.f32.xlu0 %v1508
    %v1510 = vpop.xlane.xlu0 %1509
    %v1511 = vsel %vm251, %v1504, 0.0
    %1512 = vadd.xlane.f32.xlu0 %v1511
    %v1513 = vpop.xlane.xlu0 %1512
    %v1514 = vrcp.pop %v1507
    %v1515 = vrcp.pop %v1510
    %v1516 = vrcp.pop %v1513
    %v1517 = vmul.f32 %v1500, %v1514
    %v1518 = vmul.f32 %v1502, %v1515
    %v1519 = vmul.f32 %v1504, %v1516
    %1520 = vrot.lane.b32.xlu0 %v705, 64
    %v1521 = vpop.permute.xlu0 %1520
    %1522 = vrot.lane.b32.xlu0 %v710, 64
    %v1523 = vpop.permute.xlu0 %1522
    %1524 = vrot.lane.b32.xlu0 %v715, 64
    %v1525 = vpop.permute.xlu0 %1524
    %v1530 = vsel %vm251, %v1517, 0
    %v1533 = vsel %vm251, %v1518, 0
    %v1536 = vsel %vm251, %v1519, 0
    %1538 = vmatprep.subr.mxu0 0.0
    %1539 = vmatpush1.msra.mxu0 %v1521
    %1540 = vmatprep.subr.mxu0 0.0
    %1541 = vmatpush1.msra.mxu0 %v1523
    %1542 = vmatprep.subr.mxu0 0.0
    %1543 = vmatpush1.msra.mxu0 %v1525
    %1544 = vmatprep.subr.mxu0 0.0
    %1545 = vmatpush1.msra.mxu0 0.0
    %1546 = vmatprep.subr.mxu0 0.0
    %1547 = vmatpush1.msra.mxu0 0.0
    %1548 = vmatprep.subr.mxu0 0.0
    %1549 = vmatpush1.msra.mxu0 0.0
    %1550 = vmatprep.subr.mxu0 0.0
    %1551 = vmatpush1.msra.mxu0 0.0
    %1552 = vmatprep.subr.mxu0 0.0
    %1553 = vmatpush1.msra.mxu0 0.0
    %1554 = vmatprep.subr.mxu0 0.0
    %1555 = vmatpush1.msra.mxu0 0.0
    %1556 = vmatprep.subr.mxu0 0.0
    %1557 = vmatpush1.msra.mxu0 0.0
    %1558 = vmatprep.subr.mxu0 0.0
    %1559 = vmatpush1.msra.mxu0 0.0
    %1560 = vmatprep.subr.mxu0 0.0
    %1561 = vmatpush1.msra.mxu0 0.0
    %1562 = vmatprep.subr.mxu0 0.0
    %1563 = vmatpush1.msra.mxu0 0.0
    %1564 = vmatprep.subr.mxu0 0.0
    %1565 = vmatpush1.msra.mxu0 0.0
    %1566 = vmatprep.subr.mxu0 0.0
    %1567 = vmatpush1.msra.mxu0 0.0
    %1568 = vmatprep.subr.mxu0 0.0
    %1569 = vmatpush1.msra.mxu0 0.0
    %1570 = vmatprep.subr.mxu0 0.0
    %1571 = vmatpush1.msra.mxu0 0.0
    %1572 = vmatprep.subr.mxu0 0.0
    %1573 = vmatpush1.msra.mxu0 0.0
    %1574 = vmatprep.subr.mxu0 0.0
    %1575 = vmatpush1.msra.mxu0 0.0
    %1576 = vmatprep.subr.mxu0 0.0
    %1577 = vmatpush1.msra.mxu0 0.0
    %1578 = vmatprep.subr.mxu0 0.0
    %1579 = vmatpush1.msra.mxu0 0.0
    %1580 = vmatprep.subr.mxu0 0.0
    %1581 = vmatpush1.msra.mxu0 0.0
    %1582 = vmatprep.subr.mxu0 0.0
    %1583 = vmatpush1.msra.mxu0 0.0
    %1584 = vmatprep.subr.mxu0 0.0
    %1585 = vmatpush1.msra.mxu0 0.0
    %1586 = vmatprep.subr.mxu0 0.0
    %1587 = vmatpush1.msra.mxu0 0.0
    %1588 = vmatprep.subr.mxu0 0.0
    %1589 = vmatpush1.msra.mxu0 0.0
    %1590 = vmatprep.subr.mxu0 0.0
    %1591 = vmatpush1.msra.mxu0 0.0
    %1592 = vmatprep.subr.mxu0 0.0
    %1593 = vmatpush1.msra.mxu0 0.0
    %1594 = vmatprep.subr.mxu0 0.0
    %1595 = vmatpush1.msra.mxu0 0.0
    %1596 = vmatprep.subr.mxu0 0.0
    %1597 = vmatpush1.msra.mxu0 0.0
    %1598 = vmatprep.subr.mxu0 0.0
    %1599 = vmatpush1.msra.mxu0 0.0
    %1600 = vmatprep.subr.mxu0 0.0
    %1601 = vmatpush1.msra.mxu0 0.0
    %1602 = vmatprep.mubr.f32.mxu0 0.0
    %1603 = vmatmul.mubr.f32.gmra.mrb[0].mxu0 %v1530
    %v1604 = vpop.f32.mrb[0].mxu0
    %v1605 = vadd.f32 0.0, %v1604
    %v1606 = vpop.f32.mrb[0].mxu0
    %1607 = vmatprep.mubr.f32.mxu0 0.0
    %1608 = vmatmul.mubr.f32.gmra.mrb[0].mxu0 %v1533
    %v1609 = vpop.f32.mrb[0].mxu0
    %v1610 = vadd.f32 0.0, %v1609
    %v1611 = vpop.f32.mrb[0].mxu0
    %1612 = vmatprep.mubr.f32.mxu0 0.0
    %1613 = vmatmul.mubr.f32.gmra.mrb[0].mxu0 %v1536
    %v1614 = vpop.f32.mrb[0].mxu0
    %v1615 = vadd.f32 0.0, %v1614
    %v1616 = vpop.f32.mrb[0].mxu0
    %1617 = vdwg.mxu0
    %1618 = vrot.lane.b32.xlu0 %v705, 112
    %v1619 = vpop.permute.xlu0 %1618
    %1620 = vrot.lane.b32.xlu0 %v710, 112
    %v1621 = vpop.permute.xlu0 %1620
    %1622 = vrot.lane.b32.xlu0 %v715, 112
    %v1623 = vpop.permute.xlu0 %1622
    %1624 = vrot.lane.b32.xlu0 %v705, 80
    %v1625 = vpop.permute.xlu0 %1624
    %1626 = vrot.lane.b32.xlu0 %v710, 80
    %v1627 = vpop.permute.xlu0 %1626
    %1628 = vrot.lane.b32.xlu0 %v715, 80
    %v1629 = vpop.permute.xlu0 %1628
    %v1630 = vsel %vm731, %v1619, 0
    %v1632 = vsel %vm731, %v1621, 0
    %v1634 = vsel %vm731, %v1623, 0
    %v1636 = vsel %vm731, %v1625, 0
    %v1638 = vsel %vm731, %v1627, 0
    %v1640 = vsel %vm731, %v1629, 0
    %1642 = vmatprep.subr.mxu0 0.0
    %1643 = vmatpush1.xpose.msra.mxu0 %v1636
    %1644 = vmatprep.subr.mxu0 0.0
    %1645 = vmatpush1.xpose.msra.mxu0 %v1638
    %1646 = vmatprep.subr.mxu0 0.0
    %1647 = vmatpush1.xpose.msra.mxu0 %v1640
    %1648 = vmatprep.subr.mxu0 0.0
    %1649 = vmatpush1.xpose.msra.mxu0 0.0
    %1650 = vmatprep.subr.mxu0 0.0
    %1651 = vmatpush1.xpose.msra.mxu0 0.0
    %1652 = vmatprep.subr.mxu0 0.0
    %1653 = vmatpush1.xpose.msra.mxu0 0.0
    %1654 = vmatprep.subr.mxu0 0.0
    %1655 = vmatpush1.xpose.msra.mxu0 0.0
    %1656 = vmatprep.subr.mxu0 0.0
    %1657 = vmatpush1.xpose.msra.mxu0 0.0
    %1658 = vmatprep.subr.mxu0 0.0
    %1659 = vmatpush1.xpose.msra.mxu0 0.0
    %1660 = vmatprep.subr.mxu0 0.0
    %1661 = vmatpush1.xpose.msra.mxu0 0.0
    %1662 = vmatprep.subr.mxu0 0.0
    %1663 = vmatpush1.xpose.msra.mxu0 0.0
    %1664 = vmatprep.subr.mxu0 0.0
    %1665 = vmatpush1.xpose.msra.mxu0 0.0
    %1666 = vmatprep.subr.mxu0 0.0
    %1667 = vmatpush1.xpose.msra.mxu0 0.0
    %1668 = vmatprep.subr.mxu0 0.0
    %1669 = vmatpush1.xpose.msra.mxu0 0.0
    %1670 = vmatprep.subr.mxu0 0.0
    %1671 = vmatpush1.xpose.msra.mxu0 0.0
    %1672 = vmatprep.subr.mxu0 0.0
    %1673 = vmatpush1.xpose.msra.mxu0 0.0
    %1674 = vmatprep.subr.mxu0 0.0
    %1675 = vmatpush1.xpose.msra.mxu0 0.0
    %1676 = vmatprep.subr.mxu0 0.0
    %1677 = vmatpush1.xpose.msra.mxu0 0.0
    %1678 = vmatprep.subr.mxu0 0.0
    %1679 = vmatpush1.xpose.msra.mxu0 0.0
    %1680 = vmatprep.subr.mxu0 0.0
    %1681 = vmatpush1.xpose.msra.mxu0 0.0
    %1682 = vmatprep.subr.mxu0 0.0
    %1683 = vmatpush1.xpose.msra.mxu0 0.0
    %1684 = vmatprep.subr.mxu0 0.0
    %1685 = vmatpush1.xpose.msra.mxu0 0.0
    %1686 = vmatprep.subr.mxu0 0.0
    %1687 = vmatpush1.xpose.msra.mxu0 0.0
    %1688 = vmatprep.subr.mxu0 0.0
    %1689 = vmatpush1.xpose.msra.mxu0 0.0
    %1690 = vmatprep.subr.mxu0 0.0
    %1691 = vmatpush1.xpose.msra.mxu0 0.0
    %1692 = vmatprep.subr.mxu0 0.0
    %1693 = vmatpush1.xpose.msra.mxu0 0.0
    %1694 = vmatprep.subr.mxu0 0.0
    %1695 = vmatpush1.xpose.msra.mxu0 0.0
    %1696 = vmatprep.subr.mxu0 0.0
    %1697 = vmatpush1.xpose.msra.mxu0 0.0
    %1698 = vmatprep.subr.mxu0 0.0
    %1699 = vmatpush1.xpose.msra.mxu0 0.0
    %1700 = vmatprep.subr.mxu0 0.0
    %1701 = vmatpush1.xpose.msra.mxu0 0.0
    %1702 = vmatprep.subr.mxu0 0.0
    %1703 = vmatpush1.xpose.msra.mxu0 0.0
    %1704 = vmatprep.subr.mxu0 0.0
    %1705 = vmatpush1.xpose.msra.mxu0 0.0
    %1706 = vmatprep.mubr.f32.mxu0 0.0
    %1707 = vmatmul.mubr.f32.gmra.mrb[0].mxu0 %v1630
    %v1708 = vpop.f32.mrb[0].mxu0
    %v1709 = vadd.f32 0.0, %v1708
    %v1710 = vpop.f32.mrb[0].mxu0
    %1711 = vmatprep.mubr.f32.mxu0 0.0
    %1712 = vmatmul.mubr.f32.gmra.mrb[0].mxu0 %v1632
    %v1713 = vpop.f32.mrb[0].mxu0
    %v1714 = vadd.f32 0.0, %v1713
    %v1715 = vpop.f32.mrb[0].mxu0
    %1716 = vmatprep.mubr.f32.mxu0 0.0
    %1717 = vmatmul.mubr.f32.gmra.mrb[0].mxu0 %v1634
    %v1718 = vpop.f32.mrb[0].mxu0
    %v1719 = vadd.f32 0.0, %v1718
    %v1720 = vpop.f32.mrb[0].mxu0
    %1721 = vdwg.mxu0
    %v1722 = vmul.f32 %v1709, 0.25
    %v1723 = vmul.f32 %v1714, 0.25
    %v1724 = vmul.f32 %v1719, 0.25
    %v1725 = vadd.f32 %v1722, %v486
    %v1726 = vadd.f32 %v1723, %v487
    %v1727 = vadd.f32 %v1724, %v488
    %v1728 = vsel %vm251, %v1725, -inf
    %1729 = vmax.xlane.f32.xlu0 %v1728
    %v1730 = vpop.xlane.xlu0 %1729
    %v1731 = vsel %vm251, %v1726, -inf
    %1732 = vmax.xlane.f32.xlu0 %v1731
    %v1733 = vpop.xlane.xlu0 %1732
    %v1734 = vsel %vm251, %v1727, -inf
    %1735 = vmax.xlane.f32.xlu0 %v1734
    %v1736 = vpop.xlane.xlu0 %1735
    %v1737 = vsub.f32 %v1725, %v1730
    %v1738 = vsub.f32 %v1726, %v1733
    %v1739 = vsub.f32 %v1727, %v1736
    %v1740 = vmul.f32 %v1737, 1.442695
    %v1741 = vpow.pop %v1740
    %v1742 = vmul.f32 %v1738, 1.442695
    %v1743 = vpow.pop %v1742
    %v1744 = vmul.f32 %v1739, 1.442695
    %v1745 = vpow.pop %v1744
    %v1746 = vsel %vm251, %v1741, 0.0
    %1747 = vadd.xlane.f32.xlu0 %v1746
    %v1748 = vpop.xlane.xlu0 %1747
    %v1749 = vsel %vm251, %v1743, 0.0
    %1750 = vadd.xlane.f32.xlu0 %v1749
    %v1751 = vpop.xlane.xlu0 %1750
    %v1752 = vsel %vm251, %v1745, 0.0
    %1753 = vadd.xlane.f32.xlu0 %v1752
    %v1754 = vpop.xlane.xlu0 %1753
    %v1755 = vrcp.pop %v1748
    %v1756 = vrcp.pop %v1751
    %v1757 = vrcp.pop %v1754
    %v1758 = vmul.f32 %v1741, %v1755
    %v1759 = vmul.f32 %v1743, %v1756
    %v1760 = vmul.f32 %v1745, %v1757
    %1761 = vrot.lane.b32.xlu0 %v705, 48
    %v1762 = vpop.permute.xlu0 %1761
    %1763 = vrot.lane.b32.xlu0 %v710, 48
    %v1764 = vpop.permute.xlu0 %1763
    %1765 = vrot.lane.b32.xlu0 %v715, 48
    %v1766 = vpop.permute.xlu0 %1765
    %v1771 = vsel %vm251, %v1758, 0
    %v1774 = vsel %vm251, %v1759, 0
    %v1777 = vsel %vm251, %v1760, 0
    %1779 = vmatprep.subr.mxu0 0.0
    %1780 = vmatpush1.msra.mxu0 %v1762
    %1781 = vmatprep.subr.mxu0 0.0
    %1782 = vmatpush1.msra.mxu0 %v1764
    %1783 = vmatprep.subr.mxu0 0.0
    %1784 = vmatpush1.msra.mxu0 %v1766
    %1785 = vmatprep.subr.mxu0 0.0
    %1786 = vmatpush1.msra.mxu0 0.0
    %1787 = vmatprep.subr.mxu0 0.0
    %1788 = vmatpush1.msra.mxu0 0.0
    %1789 = vmatprep.subr.mxu0 0.0
    %1790 = vmatpush1.msra.mxu0 0.0
    %1791 = vmatprep.subr.mxu0 0.0
    %1792 = vmatpush1.msra.mxu0 0.0
    %1793 = vmatprep.subr.mxu0 0.0
    %1794 = vmatpush1.msra.mxu0 0.0
    %1795 = vmatprep.subr.mxu0 0.0
    %1796 = vmatpush1.msra.mxu0 0.0
    %1797 = vmatprep.subr.mxu0 0.0
    %1798 = vmatpush1.msra.mxu0 0.0
    %1799 = vmatprep.subr.mxu0 0.0
    %1800 = vmatpush1.msra.mxu0 0.0
    %1801 = vmatprep.subr.mxu0 0.0
    %1802 = vmatpush1.msra.mxu0 0.0
    %1803 = vmatprep.subr.mxu0 0.0
    %1804 = vmatpush1.msra.mxu0 0.0
    %1805 = vmatprep.subr.mxu0 0.0
    %1806 = vmatpush1.msra.mxu0 0.0
    %1807 = vmatprep.subr.mxu0 0.0
    %1808 = vmatpush1.msra.mxu0 0.0
    %1809 = vmatprep.subr.mxu0 0.0
    %1810 = vmatpush1.msra.mxu0 0.0
    %1811 = vmatprep.subr.mxu0 0.0
    %1812 = vmatpush1.msra.mxu0 0.0
    %1813 = vmatprep.subr.mxu0 0.0
    %1814 = vmatpush1.msra.mxu0 0.0
    %1815 = vmatprep.subr.mxu0 0.0
    %1816 = vmatpush1.msra.mxu0 0.0
    %1817 = vmatprep.subr.mxu0 0.0
    %1818 = vmatpush1.msra.mxu0 0.0
    %1819 = vmatprep.subr.mxu0 0.0
    %1820 = vmatpush1.msra.mxu0 0.0
    %1821 = vmatprep.subr.mxu0 0.0
    %1822 = vmatpush1.msra.mxu0 0.0
    %1823 = vmatprep.subr.mxu0 0.0
    %1824 = vmatpush1.msra.mxu0 0.0
    %1825 = vmatprep.subr.mxu0 0.0
    %1826 = vmatpush1.msra.mxu0 0.0
    %1827 = vmatprep.subr.mxu0 0.0
    %1828 = vmatpush1.msra.mxu0 0.0
    %1829 = vmatprep.subr.mxu0 0.0
    %1830 = vmatpush1.msra.mxu0 0.0
    %1831 = vmatprep.subr.mxu0 0.0
    %1832 = vmatpush1.msra.mxu0 0.0
    %1833 = vmatprep.subr.mxu0 0.0
    %1834 = vmatpush1.msra.mxu0 0.0
    %1835 = vmatprep.subr.mxu0 0.0
    %1836 = vmatpush1.msra.mxu0 0.0
    %1837 = vmatprep.subr.mxu0 0.0
    %1838 = vmatpush1.msra.mxu0 0.0
    %1839 = vmatprep.subr.mxu0 0.0
    %1840 = vmatpush1.msra.mxu0 0.0
    %1841 = vmatprep.subr.mxu0 0.0
    %1842 = vmatpush1.msra.mxu0 0.0
    %1843 = vmatprep.mubr.f32.mxu0 0.0
    %1844 = vmatmul.mubr.f32.gmra.mrb[0].mxu0 %v1771
    %v1845 = vpop.f32.mrb[0].mxu0
    %v1846 = vadd.f32 0.0, %v1845
    %v1847 = vpop.f32.mrb[0].mxu0
    %1848 = vmatprep.mubr.f32.mxu0 0.0
    %1849 = vmatmul.mubr.f32.gmra.mrb[0].mxu0 %v1774
    %v1850 = vpop.f32.mrb[0].mxu0
    %v1851 = vadd.f32 0.0, %v1850
    %v1852 = vpop.f32.mrb[0].mxu0
    %1853 = vmatprep.mubr.f32.mxu0 0.0
    %1854 = vmatmul.mubr.f32.gmra.mrb[0].mxu0 %v1777
    %v1855 = vpop.f32.mrb[0].mxu0
    %v1856 = vadd.f32 0.0, %v1855
    %v1857 = vpop.f32.mrb[0].mxu0
    %1858 = vdwg.mxu0
    %v1860 = vsel %vm731, %v1846, 0
    %v1863 = vsel %vm731, %v1851, 0
    %v1866 = vsel %vm731, %v1856, 0
    %1868 = vmatprep.subr.mxu0 0.0
    %1869 = vmatpush1.msra.mxu0 %v720
    %1870 = vmatprep.subr.mxu0 0.0
    %1871 = vmatpush1.msra.mxu0 %v721
    %1872 = vmatprep.subr.mxu0 0.0
    %1873 = vmatpush1.msra.mxu0 0.0
    %1874 = vmatprep.subr.mxu0 0.0
    %1875 = vmatpush1.msra.mxu0 0.0
    %1876 = vmatprep.subr.mxu0 0.0
    %1877 = vmatpush1.msra.mxu0 0.0
    %1878 = vmatprep.subr.mxu0 0.0
    %1879 = vmatpush1.msra.mxu0 0.0
    %1880 = vmatprep.subr.mxu0 0.0
    %1881 = vmatpush1.msra.mxu0 0.0
    %1882 = vmatprep.subr.mxu0 0.0
    %1883 = vmatpush1.msra.mxu0 0.0
    %1884 = vmatprep.subr.mxu0 0.0
    %1885 = vmatpush1.msra.mxu0 0.0
    %1886 = vmatprep.subr.mxu0 0.0
    %1887 = vmatpush1.msra.mxu0 0.0
    %1888 = vmatprep.subr.mxu0 0.0
    %1889 = vmatpush1.msra.mxu0 0.0
    %1890 = vmatprep.subr.mxu0 0.0
    %1891 = vmatpush1.msra.mxu0 0.0
    %1892 = vmatprep.subr.mxu0 0.0
    %1893 = vmatpush1.msra.mxu0 0.0
    %1894 = vmatprep.subr.mxu0 0.0
    %1895 = vmatpush1.msra.mxu0 0.0
    %1896 = vmatprep.subr.mxu0 0.0
    %1897 = vmatpush1.msra.mxu0 0.0
    %1898 = vmatprep.subr.mxu0 0.0
    %1899 = vmatpush1.msra.mxu0 0.0
    %1900 = vmatprep.subr.mxu0 0.0
    %1901 = vmatpush1.msra.mxu0 0.0
    %1902 = vmatprep.subr.mxu0 0.0
    %1903 = vmatpush1.msra.mxu0 0.0
    %1904 = vmatprep.subr.mxu0 0.0
    %1905 = vmatpush1.msra.mxu0 0.0
    %1906 = vmatprep.subr.mxu0 0.0
    %1907 = vmatpush1.msra.mxu0 0.0
    %1908 = vmatprep.subr.mxu0 0.0
    %1909 = vmatpush1.msra.mxu0 0.0
    %1910 = vmatprep.subr.mxu0 0.0
    %1911 = vmatpush1.msra.mxu0 0.0
    %1912 = vmatprep.subr.mxu0 0.0
    %1913 = vmatpush1.msra.mxu0 0.0
    %1914 = vmatprep.subr.mxu0 0.0
    %1915 = vmatpush1.msra.mxu0 0.0
    %1916 = vmatprep.subr.mxu0 0.0
    %1917 = vmatpush1.msra.mxu0 0.0
    %1918 = vmatprep.subr.mxu0 0.0
    %1919 = vmatpush1.msra.mxu0 0.0
    %1920 = vmatprep.subr.mxu0 0.0
    %1921 = vmatpush1.msra.mxu0 0.0
    %1922 = vmatprep.subr.mxu0 0.0
    %1923 = vmatpush1.msra.mxu0 0.0
    %1924 = vmatprep.subr.mxu0 0.0
    %1925 = vmatpush1.msra.mxu0 0.0
    %1926 = vmatprep.subr.mxu0 0.0
    %1927 = vmatpush1.msra.mxu0 0.0
    %1928 = vmatprep.subr.mxu0 0.0
    %1929 = vmatpush1.msra.mxu0 0.0
    %1930 = vmatprep.subr.mxu0 0.0
    %1931 = vmatpush1.msra.mxu0 0.0
    %1932 = vmatprep.mubr.f32.mxu0 0.0
    %1933 = vmatmul.mubr.f32.gmra.mrb[0].mxu0 %v1860
    %v1934 = vpop.f32.mrb[0].mxu0
    %v1935 = vadd.f32 0.0, %v1934
    %v1936 = vpop.f32.mrb[0].mxu0
    %1937 = vmatprep.mubr.f32.mxu0 0.0
    %1938 = vmatmul.mubr.f32.gmra.mrb[0].mxu0 %v1863
    %v1939 = vpop.f32.mrb[0].mxu0
    %v1940 = vadd.f32 0.0, %v1939
    %v1941 = vpop.f32.mrb[0].mxu0
    %1942 = vmatprep.mubr.f32.mxu0 0.0
    %1943 = vmatmul.mubr.f32.gmra.mrb[0].mxu0 %v1866
    %v1944 = vpop.f32.mrb[0].mxu0
    %v1945 = vadd.f32 0.0, %v1944
    %v1946 = vpop.f32.mrb[0].mxu0
    %1947 = vdwg.mxu0
    %v1949 = vsel %vm731, %v1605, 0
    %v1952 = vsel %vm731, %v1610, 0
    %v1955 = vsel %vm731, %v1615, 0
    %1957 = vmatprep.subr.mxu0 0.0
    %1958 = vmatpush1.msra.mxu0 %v718
    %1959 = vmatprep.subr.mxu0 0.0
    %1960 = vmatpush1.msra.mxu0 %v719
    %1961 = vmatprep.subr.mxu0 0.0
    %1962 = vmatpush1.msra.mxu0 0.0
    %1963 = vmatprep.subr.mxu0 0.0
    %1964 = vmatpush1.msra.mxu0 0.0
    %1965 = vmatprep.subr.mxu0 0.0
    %1966 = vmatpush1.msra.mxu0 0.0
    %1967 = vmatprep.subr.mxu0 0.0
    %1968 = vmatpush1.msra.mxu0 0.0
    %1969 = vmatprep.subr.mxu0 0.0
    %1970 = vmatpush1.msra.mxu0 0.0
    %1971 = vmatprep.subr.mxu0 0.0
    %1972 = vmatpush1.msra.mxu0 0.0
    %1973 = vmatprep.subr.mxu0 0.0
    %1974 = vmatpush1.msra.mxu0 0.0
    %1975 = vmatprep.subr.mxu0 0.0
    %1976 = vmatpush1.msra.mxu0 0.0
    %1977 = vmatprep.subr.mxu0 0.0
    %1978 = vmatpush1.msra.mxu0 0.0
    %1979 = vmatprep.subr.mxu0 0.0
    %1980 = vmatpush1.msra.mxu0 0.0
    %1981 = vmatprep.subr.mxu0 0.0
    %1982 = vmatpush1.msra.mxu0 0.0
    %1983 = vmatprep.subr.mxu0 0.0
    %1984 = vmatpush1.msra.mxu0 0.0
    %1985 = vmatprep.subr.mxu0 0.0
    %1986 = vmatpush1.msra.mxu0 0.0
    %1987 = vmatprep.subr.mxu0 0.0
    %1988 = vmatpush1.msra.mxu0 0.0
    %1989 = vmatprep.subr.mxu0 0.0
    %1990 = vmatpush1.msra.mxu0 0.0
    %1991 = vmatprep.subr.mxu0 0.0
    %1992 = vmatpush1.msra.mxu0 0.0
    %1993 = vmatprep.subr.mxu0 0.0
    %1994 = vmatpush1.msra.mxu0 0.0
    %1995 = vmatprep.subr.mxu0 0.0
    %1996 = vmatpush1.msra.mxu0 0.0
    %1997 = vmatprep.subr.mxu0 0.0
    %1998 = vmatpush1.msra.mxu0 0.0
    %1999 = vmatprep.subr.mxu0 0.0
    %2000 = vmatpush1.msra.mxu0 0.0
    %2001 = vmatprep.subr.mxu0 0.0
    %2002 = vmatpush1.msra.mxu0 0.0
    %2003 = vmatprep.subr.mxu0 0.0
    %2004 = vmatpush1.msra.mxu0 0.0
    %2005 = vmatprep.subr.mxu0 0.0
    %2006 = vmatpush1.msra.mxu0 0.0
    %2007 = vmatprep.subr.mxu0 0.0
    %2008 = vmatpush1.msra.mxu0 0.0
    %2009 = vmatprep.subr.mxu0 0.0
    %2010 = vmatpush1.msra.mxu0 0.0
    %2011 = vmatprep.subr.mxu0 0.0
    %2012 = vmatpush1.msra.mxu0 0.0
    %2013 = vmatprep.subr.mxu0 0.0
    %2014 = vmatpush1.msra.mxu0 0.0
    %2015 = vmatprep.subr.mxu0 0.0
    %2016 = vmatpush1.msra.mxu0 0.0
    %2017 = vmatprep.subr.mxu0 0.0
    %2018 = vmatpush1.msra.mxu0 0.0
    %2019 = vmatprep.subr.mxu0 0.0
    %2020 = vmatpush1.msra.mxu0 0.0
    %2021 = vmatprep.mubr.f32.mxu0 0.0
    %2022 = vmatmul.mubr.f32.gmra.mrb[0].mxu0 %v1949
    %v2023 = vpop.f32.mrb[0].mxu0
    %v2024 = vadd.f32 %v1935, %v2023
    %v2025 = vpop.f32.mrb[0].mxu0
    %2026 = vmatprep.mubr.f32.mxu0 0.0
    %2027 = vmatmul.mubr.f32.gmra.mrb[0].mxu0 %v1952
    %v2028 = vpop.f32.mrb[0].mxu0
    %v2029 = vadd.f32 %v1940, %v2028
    %v2030 = vpop.f32.mrb[0].mxu0
    %2031 = vmatprep.mubr.f32.mxu0 0.0
    %2032 = vmatmul.mubr.f32.gmra.mrb[0].mxu0 %v1955
    %v2033 = vpop.f32.mrb[0].mxu0
    %v2034 = vadd.f32 %v1945, %v2033
    %v2035 = vpop.f32.mrb[0].mxu0
    %2036 = vdwg.mxu0
    %v2037 = vadd.f32 %v463, %v1367
    %v2038 = vadd.f32 %v464, %v1372
    %v2039 = vadd.f32 %v465, %v1377
    %v2040 = vadd.f32 %v466, %v2024
    %v2041 = vadd.f32 %v467, %v2029
    %v2042 = vadd.f32 %v468, %v2034
    %v2043 = vld [vmem:[%s37] sm:$0x1]
    %v2045 = vlaneseq
    %v2046 = vshrl.u32 %v2045, 7
    %v2047 = vsub.s32 0, %v2046
    %v2048 = vrot.slane %v2043, %v2047
    %v2050 = vadd.f32 %v2037, %v2048
    %v2051 = vadd.f32 %v2038, %v2048
    %v2052 = vadd.f32 %v2039, %v2048
    %v2053 = vadd.f32 %v2040, %v2048
    %v2054 = vadd.f32 %v2041, %v2048
    %v2055 = vadd.f32 %v2042, %v2048
    %v2056 = vsel %vm349, %v2050, 0.0
    %2057 = vadd.xlane.f32.xlu0 %v2056
    %v2058 = vpop.xlane.xlu0 %2057
    %v2059 = vsel %vm349, %v2051, 0.0
    %2060 = vadd.xlane.f32.xlu0 %v2059
    %v2061 = vpop.xlane.xlu0 %2060
    %v2062 = vsel %vm349, %v2052, 0.0
    %2063 = vadd.xlane.f32.xlu0 %v2062
    %v2064 = vpop.xlane.xlu0 %2063
    %v2065 = vsel %vm349, %v2053, 0.0
    %2066 = vadd.xlane.f32.xlu0 %v2065
    %v2067 = vpop.xlane.xlu0 %2066
    %v2068 = vsel %vm349, %v2054, 0.0
    %2069 = vadd.xlane.f32.xlu0 %v2068
    %v2070 = vpop.xlane.xlu0 %2069
    %v2071 = vsel %vm349, %v2055, 0.0
    %2072 = vadd.xlane.f32.xlu0 %v2071
    %v2073 = vpop.xlane.xlu0 %2072
    %v2074 = vmul.f32 %v2058, %v507
    %v2075 = vmul.f32 %v2061, %v507
    %v2076 = vmul.f32 %v2064, %v507
    %v2077 = vmul.f32 %v2067, %v507
    %v2078 = vmul.f32 %v2070, %v507
    %v2079 = vmul.f32 %v2073, %v507
    %v2080 = vsub.f32 %v2050, %v2074
    %v2081 = vsub.f32 %v2051, %v2075
    %v2082 = vsub.f32 %v2052, %v2076
    %v2083 = vsub.f32 %v2053, %v2077
    %v2084 = vsub.f32 %v2054, %v2078
    %v2085 = vsub.f32 %v2055, %v2079
    %v2086 = vmul.f32 %v2080, %v2080
    %v2087 = vmul.f32 %v2081, %v2081
    %v2088 = vmul.f32 %v2082, %v2082
    %v2089 = vmul.f32 %v2083, %v2083
    %v2090 = vmul.f32 %v2084, %v2084
    %v2091 = vmul.f32 %v2085, %v2085
    %v2092 = vsel %vm349, %v2086, 0.0
    %2093 = vadd.xlane.f32.xlu0 %v2092
    %v2094 = vpop.xlane.xlu0 %2093
    %v2095 = vsel %vm349, %v2087, 0.0
    %2096 = vadd.xlane.f32.xlu0 %v2095
    %v2097 = vpop.xlane.xlu0 %2096
    %v2098 = vsel %vm349, %v2088, 0.0
    %2099 = vadd.xlane.f32.xlu0 %v2098
    %v2100 = vpop.xlane.xlu0 %2099
    %v2101 = vsel %vm349, %v2089, 0.0
    %2102 = vadd.xlane.f32.xlu0 %v2101
    %v2103 = vpop.xlane.xlu0 %2102
    %v2104 = vsel %vm349, %v2090, 0.0
    %2105 = vadd.xlane.f32.xlu0 %v2104
    %v2106 = vpop.xlane.xlu0 %2105
    %v2107 = vsel %vm349, %v2091, 0.0
    %2108 = vadd.xlane.f32.xlu0 %v2107
    %v2109 = vpop.xlane.xlu0 %2108
    %v2110 = vmul.f32 %v2094, %v507
    %v2111 = vmul.f32 %v2097, %v507
    %v2112 = vmul.f32 %v2100, %v507
    %v2113 = vmul.f32 %v2103, %v507
    %v2114 = vmul.f32 %v2106, %v507
    %v2115 = vmul.f32 %v2109, %v507
    %v2116 = vadd.f32 %v2110, 1e-05
    %v2117 = vadd.f32 %v2111, 1e-05
    %v2118 = vadd.f32 %v2112, 1e-05
    %v2119 = vadd.f32 %v2113, 1e-05
    %v2120 = vadd.f32 %v2114, 1e-05
    %v2121 = vadd.f32 %v2115, 1e-05
    %v2122 = vrsqrt.pop %v2116
    %v2123 = vrsqrt.pop %v2117
    %v2124 = vrsqrt.pop %v2118
    %v2125 = vrsqrt.pop %v2119
    %v2126 = vrsqrt.pop %v2120
    %v2127 = vrsqrt.pop %v2121
    %v2128 = vmul.f32 %v2080, %v2122
    %v2129 = vmul.f32 %v2081, %v2123
    %v2130 = vmul.f32 %v2082, %v2124
    %v2131 = vmul.f32 %v2083, %v2125
    %v2132 = vmul.f32 %v2084, %v2126
    %v2133 = vmul.f32 %v2085, %v2127
    %v2134 = vld [vmem:[%s19] sm:$0x1]
    %v2136 = vlaneseq
    %v2137 = vshrl.u32 %v2136, 7
    %v2138 = vsub.s32 0, %v2137
    %v2139 = vrot.slane %v2134, %v2138
    %v2141 = vmul.f32 %v2128, %v2139
    %v2142 = vmul.f32 %v2129, %v2139
    %v2143 = vmul.f32 %v2130, %v2139
    %v2144 = vmul.f32 %v2131, %v2139
    %v2145 = vmul.f32 %v2132, %v2139
    %v2146 = vmul.f32 %v2133, %v2139
    %v2147 = vld [vmem:[%s21] sm:$0x1]
    %v2149 = vlaneseq
    %v2150 = vshrl.u32 %v2149, 7
    %v2151 = vsub.s32 0, %v2150
    %v2152 = vrot.slane %v2147, %v2151
    %v2154 = vadd.f32 %v2141, %v2152
    %v2155 = vadd.f32 %v2142, %v2152
    %v2156 = vadd.f32 %v2143, %v2152
    %v2157 = vadd.f32 %v2144, %v2152
    %v2158 = vadd.f32 %v2145, %v2152
    %v2159 = vadd.f32 %v2146, %v2152
    %v2160 = vld [vmem:[%s39] sm:$0xff]
    %v2161 = vld [vmem:[%s39 + $0x8] sm:$0xff]
    %v2162 = vld [vmem:[%s39 + $0x10] sm:$0xff]
    %v2163 = vld [vmem:[%s39 + $0x18] sm:$0xff]
    %v2164 = vld [vmem:[%s41] sm:$0x1]
    %v2166 = vlaneseq
    %v2167 = vshrl.u32 %v2166, 7
    %v2168 = vsub.s32 0, %v2167
    %v2169 = vrot.slane %v2164, %v2168
    %v2172 = vsel %vm349, %v2154, 0
    %v2175 = vsel %vm349, %v2155, 0
    %v2178 = vsel %vm349, %v2156, 0
    %v2181 = vsel %vm349, %v2157, 0
    %v2184 = vsel %vm349, %v2158, 0
    %v2187 = vsel %vm349, %v2159, 0
    %2189 = vmatprep.subr.mxu0 0.0
    %2190 = vmatpush1.msra.mxu0 %v2160
    %2191 = vmatprep.subr.mxu0 0.0
    %2192 = vmatpush1.msra.mxu0 %v2161
    %2193 = vmatprep.subr.mxu0 0.0
    %2194 = vmatpush1.msra.mxu0 %v2162
    %2195 = vmatprep.subr.mxu0 0.0
    %2196 = vmatpush1.msra.mxu0 %v2163
    %2197 = vmatprep.subr.mxu0 0.0
    %2198 = vmatpush1.msra.mxu0 0.0
    %2199 = vmatprep.subr.mxu0 0.0
    %2200 = vmatpush1.msra.mxu0 0.0
    %2201 = vmatprep.subr.mxu0 0.0
    %2202 = vmatpush1.msra.mxu0 0.0
    %2203 = vmatprep.subr.mxu0 0.0
    %2204 = vmatpush1.msra.mxu0 0.0
    %2205 = vmatprep.subr.mxu0 0.0
    %2206 = vmatpush1.msra.mxu0 0.0
    %2207 = vmatprep.subr.mxu0 0.0
    %2208 = vmatpush1.msra.mxu0 0.0
    %2209 = vmatprep.subr.mxu0 0.0
    %2210 = vmatpush1.msra.mxu0 0.0
    %2211 = vmatprep.subr.mxu0 0.0
    %2212 = vmatpush1.msra.mxu0 0.0
    %2213 = vmatprep.subr.mxu0 0.0
    %2214 = vmatpush1.msra.mxu0 0.0
    %2215 = vmatprep.subr.mxu0 0.0
    %2216 = vmatpush1.msra.mxu0 0.0
    %2217 = vmatprep.subr.mxu0 0.0
    %2218 = vmatpush1.msra.mxu0 0.0
    %2219 = vmatprep.subr.mxu0 0.0
    %2220 = vmatpush1.msra.mxu0 0.0
    %2221 = vmatprep.subr.mxu0 0.0
    %2222 = vmatpush1.msra.mxu0 0.0
    %2223 = vmatprep.subr.mxu0 0.0
    %2224 = vmatpush1.msra.mxu0 0.0
    %2225 = vmatprep.subr.mxu0 0.0
    %2226 = vmatpush1.msra.mxu0 0.0
    %2227 = vmatprep.subr.mxu0 0.0
    %2228 = vmatpush1.msra.mxu0 0.0
    %2229 = vmatprep.subr.mxu0 0.0
    %2230 = vmatpush1.msra.mxu0 0.0
    %2231 = vmatprep.subr.mxu0 0.0
    %2232 = vmatpush1.msra.mxu0 0.0
    %2233 = vmatprep.subr.mxu0 0.0
    %2234 = vmatpush1.msra.mxu0 0.0
    %2235 = vmatprep.subr.mxu0 0.0
    %2236 = vmatpush1.msra.mxu0 0.0
    %2237 = vmatprep.subr.mxu0 0.0
    %2238 = vmatpush1.msra.mxu0 0.0
    %2239 = vmatprep.subr.mxu0 0.0
    %2240 = vmatpush1.msra.mxu0 0.0
    %2241 = vmatprep.subr.mxu0 0.0
    %2242 = vmatpush1.msra.mxu0 0.0
    %2243 = vmatprep.subr.mxu0 0.0
    %2244 = vmatpush1.msra.mxu0 0.0
    %2245 = vmatprep.subr.mxu0 0.0
    %2246 = vmatpush1.msra.mxu0 0.0
    %2247 = vmatprep.subr.mxu0 0.0
    %2248 = vmatpush1.msra.mxu0 0.0
    %2249 = vmatprep.subr.mxu0 0.0
    %2250 = vmatpush1.msra.mxu0 0.0
    %2251 = vmatprep.subr.mxu0 0.0
    %2252 = vmatpush1.msra.mxu0 0.0
    %2253 = vmatprep.mubr.f32.mxu0 0.0
    %2254 = vmatmul.mubr.f32.gmra.mrb[0].mxu0 %v2172
    %v2255 = vpop.f32.mrb[0].mxu0
    %v2256 = vadd.f32 %v2169, %v2255
    %v2257 = vpop.f32.mrb[0].mxu0
    %2258 = vmatprep.mubr.f32.mxu0 0.0
    %2259 = vmatmul.mubr.f32.gmra.mrb[0].mxu0 %v2175
    %v2260 = vpop.f32.mrb[0].mxu0
    %v2261 = vadd.f32 %v2169, %v2260
    %v2262 = vpop.f32.mrb[0].mxu0
    %2263 = vmatprep.mubr.f32.mxu0 0.0
    %2264 = vmatmul.mubr.f32.gmra.mrb[0].mxu0 %v2178
    %v2265 = vpop.f32.mrb[0].mxu0
    %v2266 = vadd.f32 %v2169, %v2265
    %v2267 = vpop.f32.mrb[0].mxu0
    %2268 = vmatprep.mubr.f32.mxu0 0.0
    %2269 = vmatmul.mubr.f32.gmra.mrb[0].mxu0 %v2181
    %v2270 = vpop.f32.mrb[0].mxu0
    %v2271 = vadd.f32 %v2169, %v2270
    %v2272 = vpop.f32.mrb[0].mxu0
    %2273 = vmatprep.mubr.f32.mxu0 0.0
    %2274 = vmatmul.mubr.f32.gmra.mrb[0].mxu0 %v2184
    %v2275 = vpop.f32.mrb[0].mxu0
    %v2276 = vadd.f32 %v2169, %v2275
    %v2277 = vpop.f32.mrb[0].mxu0
    %2278 = vmatprep.mubr.f32.mxu0 0.0
    %2279 = vmatmul.mubr.f32.gmra.mrb[0].mxu0 %v2187
    %v2280 = vpop.f32.mrb[0].mxu0
    %v2281 = vadd.f32 %v2169, %v2280
    %v2282 = vpop.f32.mrb[0].mxu0
    %2283 = vdwg.mxu0
    %v2284 = vld [vmem:[%s43] sm:$0xff]
    %v2285 = vld [vmem:[%s43 + $0x8] sm:$0xff]
    %v2286 = vld [vmem:[%s43 + $0x10] sm:$0xff]
    %v2287 = vld [vmem:[%s43 + $0x18] sm:$0xff]
    %v2288 = vld [vmem:[%s45] sm:$0x1]
    %v2290 = vlaneseq
    %v2291 = vshrl.u32 %v2290, 7
    %v2292 = vsub.s32 0, %v2291
    %v2293 = vrot.slane %v2288, %v2292
    %v2296 = vsel %vm349, %v331, 0
    %v2299 = vsel %vm349, %v336, 0
    %v2302 = vsel %vm349, %v341, 0
    %v2305 = vsel %vm349, %v346, 0
    %2307 = vmatprep.subr.mxu0 0.0
    %2308 = vmatpush1.msra.mxu0 %v2284
    %2309 = vmatprep.subr.mxu0 0.0
    %2310 = vmatpush1.msra.mxu0 %v2285
    %2311 = vmatprep.subr.mxu0 0.0
    %2312 = vmatpush1.msra.mxu0 %v2286
    %2313 = vmatprep.subr.mxu0 0.0
    %2314 = vmatpush1.msra.mxu0 %v2287
    %2315 = vmatprep.subr.mxu0 0.0
    %2316 = vmatpush1.msra.mxu0 0.0
    %2317 = vmatprep.subr.mxu0 0.0
    %2318 = vmatpush1.msra.mxu0 0.0
    %2319 = vmatprep.subr.mxu0 0.0
    %2320 = vmatpush1.msra.mxu0 0.0
    %2321 = vmatprep.subr.mxu0 0.0
    %2322 = vmatpush1.msra.mxu0 0.0
    %2323 = vmatprep.subr.mxu0 0.0
    %2324 = vmatpush1.msra.mxu0 0.0
    %2325 = vmatprep.subr.mxu0 0.0
    %2326 = vmatpush1.msra.mxu0 0.0
    %2327 = vmatprep.subr.mxu0 0.0
    %2328 = vmatpush1.msra.mxu0 0.0
    %2329 = vmatprep.subr.mxu0 0.0
    %2330 = vmatpush1.msra.mxu0 0.0
    %2331 = vmatprep.subr.mxu0 0.0
    %2332 = vmatpush1.msra.mxu0 0.0
    %2333 = vmatprep.subr.mxu0 0.0
    %2334 = vmatpush1.msra.mxu0 0.0
    %2335 = vmatprep.subr.mxu0 0.0
    %2336 = vmatpush1.msra.mxu0 0.0
    %2337 = vmatprep.subr.mxu0 0.0
    %2338 = vmatpush1.msra.mxu0 0.0
    %2339 = vmatprep.subr.mxu0 0.0
    %2340 = vmatpush1.msra.mxu0 0.0
    %2341 = vmatprep.subr.mxu0 0.0
    %2342 = vmatpush1.msra.mxu0 0.0
    %2343 = vmatprep.subr.mxu0 0.0
    %2344 = vmatpush1.msra.mxu0 0.0
    %2345 = vmatprep.subr.mxu0 0.0
    %2346 = vmatpush1.msra.mxu0 0.0
    %2347 = vmatprep.subr.mxu0 0.0
    %2348 = vmatpush1.msra.mxu0 0.0
    %2349 = vmatprep.subr.mxu0 0.0
    %2350 = vmatpush1.msra.mxu0 0.0
    %2351 = vmatprep.subr.mxu0 0.0
    %2352 = vmatpush1.msra.mxu0 0.0
    %2353 = vmatprep.subr.mxu0 0.0
    %2354 = vmatpush1.msra.mxu0 0.0
    %2355 = vmatprep.subr.mxu0 0.0
    %2356 = vmatpush1.msra.mxu0 0.0
    %2357 = vmatprep.subr.mxu0 0.0
    %2358 = vmatpush1.msra.mxu0 0.0
    %2359 = vmatprep.subr.mxu0 0.0
    %2360 = vmatpush1.msra.mxu0 0.0
    %2361 = vmatprep.subr.mxu0 0.0
    %2362 = vmatpush1.msra.mxu0 0.0
    %2363 = vmatprep.subr.mxu0 0.0
    %2364 = vmatpush1.msra.mxu0 0.0
    %2365 = vmatprep.subr.mxu0 0.0
    %2366 = vmatpush1.msra.mxu0 0.0
    %2367 = vmatprep.subr.mxu0 0.0
    %2368 = vmatpush1.msra.mxu0 0.0
    %2369 = vmatprep.subr.mxu0 0.0
    %2370 = vmatpush1.msra.mxu0 0.0
    %2371 = vmatprep.mubr.f32.mxu0 0.0
    %2372 = vmatmul.mubr.f32.gmra.mrb[0].mxu0 %v2296
    %v2373 = vpop.f32.mrb[0].mxu0
    %v2374 = vadd.f32 %v2293, %v2373
    %v2375 = vpop.f32.mrb[0].mxu0
    %2376 = vmatprep.mubr.f32.mxu0 0.0
    %2377 = vmatmul.mubr.f32.gmra.mrb[0].mxu0 %v2299
    %v2378 = vpop.f32.mrb[0].mxu0
    %v2379 = vadd.f32 %v2293, %v2378
    %v2380 = vpop.f32.mrb[0].mxu0
    %2381 = vmatprep.mubr.f32.mxu0 0.0
    %2382 = vmatmul.mubr.f32.gmra.mrb[0].mxu0 %v2302
    %v2383 = vpop.f32.mrb[0].mxu0
    %v2384 = vadd.f32 %v2293, %v2383
    %v2385 = vpop.f32.mrb[0].mxu0
    %2386 = vmatprep.mubr.f32.mxu0 0.0
    %2387 = vmatmul.mubr.f32.gmra.mrb[0].mxu0 %v2305
    %v2388 = vpop.f32.mrb[0].mxu0
    %v2389 = vadd.f32 %v2293, %v2388
    %v2390 = vpop.f32.mrb[0].mxu0
    %2391 = vdwg.mxu0
    %v2392 = vld [vmem:[%s47] sm:$0xff]
    %v2393 = vld [vmem:[%s47 + $0x8] sm:$0xff]
    %v2394 = vld [vmem:[%s47 + $0x10] sm:$0xff]
    %v2395 = vld [vmem:[%s47 + $0x18] sm:$0xff]
    %v2397 = vsel %vm731, %v2256, 0
    %v2400 = vsel %vm731, %v2261, 0
    %v2403 = vsel %vm731, %v2266, 0
    %v2406 = vsel %vm731, %v2374, 0
    %v2409 = vsel %vm731, %v2379, 0
    %2411 = vmatprep.subr.mxu0 0.0
    %2412 = vmatpush1.xpose.msra.mxu0 %v2406
    %2413 = vmatprep.subr.mxu0 0.0
    %2414 = vmatpush1.xpose.msra.mxu0 %v2409
    %2415 = vmatprep.subr.mxu0 0.0
    %2416 = vmatpush1.xpose.msra.mxu0 0.0
    %2417 = vmatprep.subr.mxu0 0.0
    %2418 = vmatpush1.xpose.msra.mxu0 0.0
    %2419 = vmatprep.subr.mxu0 0.0
    %2420 = vmatpush1.xpose.msra.mxu0 0.0
    %2421 = vmatprep.subr.mxu0 0.0
    %2422 = vmatpush1.xpose.msra.mxu0 0.0
    %2423 = vmatprep.subr.mxu0 0.0
    %2424 = vmatpush1.xpose.msra.mxu0 0.0
    %2425 = vmatprep.subr.mxu0 0.0
    %2426 = vmatpush1.xpose.msra.mxu0 0.0
    %2427 = vmatprep.subr.mxu0 0.0
    %2428 = vmatpush1.xpose.msra.mxu0 0.0
    %2429 = vmatprep.subr.mxu0 0.0
    %2430 = vmatpush1.xpose.msra.mxu0 0.0
    %2431 = vmatprep.subr.mxu0 0.0
    %2432 = vmatpush1.xpose.msra.mxu0 0.0
    %2433 = vmatprep.subr.mxu0 0.0
    %2434 = vmatpush1.xpose.msra.mxu0 0.0
    %2435 = vmatprep.subr.mxu0 0.0
    %2436 = vmatpush1.xpose.msra.mxu0 0.0
    %2437 = vmatprep.subr.mxu0 0.0
    %2438 = vmatpush1.xpose.msra.mxu0 0.0
    %2439 = vmatprep.subr.mxu0 0.0
    %2440 = vmatpush1.xpose.msra.mxu0 0.0
    %2441 = vmatprep.subr.mxu0 0.0
    %2442 = vmatpush1.xpose.msra.mxu0 0.0
    %2443 = vmatprep.subr.mxu0 0.0
    %2444 = vmatpush1.xpose.msra.mxu0 0.0
    %2445 = vmatprep.subr.mxu0 0.0
    %2446 = vmatpush1.xpose.msra.mxu0 0.0
    %2447 = vmatprep.subr.mxu0 0.0
    %2448 = vmatpush1.xpose.msra.mxu0 0.0
    %2449 = vmatprep.subr.mxu0 0.0
    %2450 = vmatpush1.xpose.msra.mxu0 0.0
    %2451 = vmatprep.subr.mxu0 0.0
    %2452 = vmatpush1.xpose.msra.mxu0 0.0
    %2453 = vmatprep.subr.mxu0 0.0
    %2454 = vmatpush1.xpose.msra.mxu0 0.0
    %2455 = vmatprep.subr.mxu0 0.0
    %2456 = vmatpush1.xpose.msra.mxu0 0.0
    %2457 = vmatprep.subr.mxu0 0.0
    %2458 = vmatpush1.xpose.msra.mxu0 0.0
    %2459 = vmatprep.subr.mxu0 0.0
    %2460 = vmatpush1.xpose.msra.mxu0 0.0
    %2461 = vmatprep.subr.mxu0 0.0
    %2462 = vmatpush1.xpose.msra.mxu0 0.0
    %2463 = vmatprep.subr.mxu0 0.0
    %2464 = vmatpush1.xpose.msra.mxu0 0.0
    %2465 = vmatprep.subr.mxu0 0.0
    %2466 = vmatpush1.xpose.msra.mxu0 0.0
    %2467 = vmatprep.subr.mxu0 0.0
    %2468 = vmatpush1.xpose.msra.mxu0 0.0
    %2469 = vmatprep.subr.mxu0 0.0
    %2470 = vmatpush1.xpose.msra.mxu0 0.0
    %2471 = vmatprep.subr.mxu0 0.0
    %2472 = vmatpush1.xpose.msra.mxu0 0.0
    %2473 = vmatprep.subr.mxu0 0.0
    %2474 = vmatpush1.xpose.msra.mxu0 0.0
    %2475 = vmatprep.mubr.f32.mxu0 0.0
    %2476 = vmatmul.mubr.f32.gmra.mrb[0].mxu0 %v2397
    %v2477 = vpop.f32.mrb[0].mxu0
    %v2478 = vadd.f32 0.0, %v2477
    %v2479 = vpop.f32.mrb[0].mxu0
    %2480 = vmatprep.mubr.f32.mxu0 0.0
    %2481 = vmatmul.mubr.f32.gmra.mrb[0].mxu0 %v2400
    %v2482 = vpop.f32.mrb[0].mxu0
    %v2483 = vadd.f32 0.0, %v2482
    %v2484 = vpop.f32.mrb[0].mxu0
    %2485 = vmatprep.mubr.f32.mxu0 0.0
    %2486 = vmatmul.mubr.f32.gmra.mrb[0].mxu0 %v2403
    %v2487 = vpop.f32.mrb[0].mxu0
    %v2488 = vadd.f32 0.0, %v2487
    %v2489 = vpop.f32.mrb[0].mxu0
    %2490 = vdwg.mxu0
    %v2491 = vmul.f32 %v2478, 0.25
    %v2492 = vmul.f32 %v2483, 0.25
    %v2493 = vmul.f32 %v2488, 0.25
    %v2494 = vsel %vm731, %v2491, -inf
    %2495 = vmax.xlane.f32.xlu0 %v2494
    %v2496 = vpop.xlane.xlu0 %2495
    %v2497 = vsel %vm731, %v2492, -inf
    %2498 = vmax.xlane.f32.xlu0 %v2497
    %v2499 = vpop.xlane.xlu0 %2498
    %v2500 = vsel %vm731, %v2493, -inf
    %2501 = vmax.xlane.f32.xlu0 %v2500
    %v2502 = vpop.xlane.xlu0 %2501
    %v2503 = vsub.f32 %v2491, %v2496
    %v2504 = vsub.f32 %v2492, %v2499
    %v2505 = vsub.f32 %v2493, %v2502
    %v2506 = vmul.f32 %v2503, 1.442695
    %v2507 = vpow.pop %v2506
    %v2508 = vmul.f32 %v2504, 1.442695
    %v2509 = vpow.pop %v2508
    %v2510 = vmul.f32 %v2505, 1.442695
    %v2511 = vpow.pop %v2510
    %v2512 = vsel %vm731, %v2507, 0.0
    %2513 = vadd.xlane.f32.xlu0 %v2512
    %v2514 = vpop.xlane.xlu0 %2513
    %v2515 = vsel %vm731, %v2509, 0.0
    %2516 = vadd.xlane.f32.xlu0 %v2515
    %v2517 = vpop.xlane.xlu0 %2516
    %v2518 = vsel %vm731, %v2511, 0.0
    %2519 = vadd.xlane.f32.xlu0 %v2518
    %v2520 = vpop.xlane.xlu0 %2519
    %v2521 = vrcp.pop %v2514
    %v2522 = vrcp.pop %v2517
    %v2523 = vrcp.pop %v2520
    %v2524 = vmul.f32 %v2507, %v2521
    %v2525 = vmul.f32 %v2509, %v2522
    %v2526 = vmul.f32 %v2511, %v2523
    %2527 = vrot.lane.b32.xlu0 %v2374, 96
    %v2528 = vpop.permute.xlu0 %2527
    %2529 = vrot.lane.b32.xlu0 %v2379, 96
    %v2530 = vpop.permute.xlu0 %2529
    %v2534 = vsel %vm731, %v2524, 0
    %v2537 = vsel %vm731, %v2525, 0
    %v2540 = vsel %vm731, %v2526, 0
    %2542 = vmatprep.subr.mxu0 0.0
    %2543 = vmatpush1.msra.mxu0 %v2528
    %2544 = vmatprep.subr.mxu0 0.0
    %2545 = vmatpush1.msra.mxu0 %v2530
    %2546 = vmatprep.subr.mxu0 0.0
    %2547 = vmatpush1.msra.mxu0 0.0
    %2548 = vmatprep.subr.mxu0 0.0
    %2549 = vmatpush1.msra.mxu0 0.0
    %2550 = vmatprep.subr.mxu0 0.0
    %2551 = vmatpush1.msra.mxu0 0.0
    %2552 = vmatprep.subr.mxu0 0.0
    %2553 = vmatpush1.msra.mxu0 0.0
    %2554 = vmatprep.subr.mxu0 0.0
    %2555 = vmatpush1.msra.mxu0 0.0
    %2556 = vmatprep.subr.mxu0 0.0
    %2557 = vmatpush1.msra.mxu0 0.0
    %2558 = vmatprep.subr.mxu0 0.0
    %2559 = vmatpush1.msra.mxu0 0.0
    %2560 = vmatprep.subr.mxu0 0.0
    %2561 = vmatpush1.msra.mxu0 0.0
    %2562 = vmatprep.subr.mxu0 0.0
    %2563 = vmatpush1.msra.mxu0 0.0
    %2564 = vmatprep.subr.mxu0 0.0
    %2565 = vmatpush1.msra.mxu0 0.0
    %2566 = vmatprep.subr.mxu0 0.0
    %2567 = vmatpush1.msra.mxu0 0.0
    %2568 = vmatprep.subr.mxu0 0.0
    %2569 = vmatpush1.msra.mxu0 0.0
    %2570 = vmatprep.subr.mxu0 0.0
    %2571 = vmatpush1.msra.mxu0 0.0
    %2572 = vmatprep.subr.mxu0 0.0
    %2573 = vmatpush1.msra.mxu0 0.0
    %2574 = vmatprep.subr.mxu0 0.0
    %2575 = vmatpush1.msra.mxu0 0.0
    %2576 = vmatprep.subr.mxu0 0.0
    %2577 = vmatpush1.msra.mxu0 0.0
    %2578 = vmatprep.subr.mxu0 0.0
    %2579 = vmatpush1.msra.mxu0 0.0
    %2580 = vmatprep.subr.mxu0 0.0
    %2581 = vmatpush1.msra.mxu0 0.0
    %2582 = vmatprep.subr.mxu0 0.0
    %2583 = vmatpush1.msra.mxu0 0.0
    %2584 = vmatprep.subr.mxu0 0.0
    %2585 = vmatpush1.msra.mxu0 0.0
    %2586 = vmatprep.subr.mxu0 0.0
    %2587 = vmatpush1.msra.mxu0 0.0
    %2588 = vmatprep.subr.mxu0 0.0
    %2589 = vmatpush1.msra.mxu0 0.0
    %2590 = vmatprep.subr.mxu0 0.0
    %2591 = vmatpush1.msra.mxu0 0.0
    %2592 = vmatprep.subr.mxu0 0.0
    %2593 = vmatpush1.msra.mxu0 0.0
    %2594 = vmatprep.subr.mxu0 0.0
    %2595 = vmatpush1.msra.mxu0 0.0
    %2596 = vmatprep.subr.mxu0 0.0
    %2597 = vmatpush1.msra.mxu0 0.0
    %2598 = vmatprep.subr.mxu0 0.0
    %2599 = vmatpush1.msra.mxu0 0.0
    %2600 = vmatprep.subr.mxu0 0.0
    %2601 = vmatpush1.msra.mxu0 0.0
    %2602 = vmatprep.subr.mxu0 0.0
    %2603 = vmatpush1.msra.mxu0 0.0
    %2604 = vmatprep.subr.mxu0 0.0
    %2605 = vmatpush1.msra.mxu0 0.0
    %2606 = vmatprep.mubr.f32.mxu0 0.0
    %2607 = vmatmul.mubr.f32.gmra.mrb[0].mxu0 %v2534
    %v2608 = vpop.f32.mrb[0].mxu0
    %v2609 = vadd.f32 0.0, %v2608
    %v2610 = vpop.f32.mrb[0].mxu0
    %2611 = vmatprep.mubr.f32.mxu0 0.0
    %2612 = vmatmul.mubr.f32.gmra.mrb[0].mxu0 %v2537
    %v2613 = vpop.f32.mrb[0].mxu0
    %v2614 = vadd.f32 0.0, %v2613
    %v2615 = vpop.f32.mrb[0].mxu0
    %2616 = vmatprep.mubr.f32.mxu0 0.0
    %2617 = vmatmul.mubr.f32.gmra.mrb[0].mxu0 %v2540
    %v2618 = vpop.f32.mrb[0].mxu0
    %v2619 = vadd.f32 0.0, %v2618
    %v2620 = vpop.f32.mrb[0].mxu0
    %2621 = vdwg.mxu0
    %2622 = vrot.lane.b32.xlu0 %v2256, 112
    %v2623 = vpop.permute.xlu0 %2622
    %2624 = vrot.lane.b32.xlu0 %v2261, 112
    %v2625 = vpop.permute.xlu0 %2624
    %2626 = vrot.lane.b32.xlu0 %v2266, 112
    %v2627 = vpop.permute.xlu0 %2626
    %2628 = vrot.lane.b32.xlu0 %v2374, 112
    %v2629 = vpop.permute.xlu0 %2628
    %2630 = vrot.lane.b32.xlu0 %v2379, 112
    %v2631 = vpop.permute.xlu0 %2630
    %v2632 = vsel %vm731, %v2623, 0
    %v2634 = vsel %vm731, %v2625, 0
    %v2636 = vsel %vm731, %v2627, 0
    %v2638 = vsel %vm731, %v2629, 0
    %v2640 = vsel %vm731, %v2631, 0
    %2642 = vmatprep.subr.mxu0 0.0
    %2643 = vmatpush1.xpose.msra.mxu0 %v2638
    %2644 = vmatprep.subr.mxu0 0.0
    %2645 = vmatpush1.xpose.msra.mxu0 %v2640
    %2646 = vmatprep.subr.mxu0 0.0
    %2647 = vmatpush1.xpose.msra.mxu0 0.0
    %2648 = vmatprep.subr.mxu0 0.0
    %2649 = vmatpush1.xpose.msra.mxu0 0.0
    %2650 = vmatprep.subr.mxu0 0.0
    %2651 = vmatpush1.xpose.msra.mxu0 0.0
    %2652 = vmatprep.subr.mxu0 0.0
    %2653 = vmatpush1.xpose.msra.mxu0 0.0
    %2654 = vmatprep.subr.mxu0 0.0
    %2655 = vmatpush1.xpose.msra.mxu0 0.0
    %2656 = vmatprep.subr.mxu0 0.0
    %2657 = vmatpush1.xpose.msra.mxu0 0.0
    %2658 = vmatprep.subr.mxu0 0.0
    %2659 = vmatpush1.xpose.msra.mxu0 0.0
    %2660 = vmatprep.subr.mxu0 0.0
    %2661 = vmatpush1.xpose.msra.mxu0 0.0
    %2662 = vmatprep.subr.mxu0 0.0
    %2663 = vmatpush1.xpose.msra.mxu0 0.0
    %2664 = vmatprep.subr.mxu0 0.0
    %2665 = vmatpush1.xpose.msra.mxu0 0.0
    %2666 = vmatprep.subr.mxu0 0.0
    %2667 = vmatpush1.xpose.msra.mxu0 0.0
    %2668 = vmatprep.subr.mxu0 0.0
    %2669 = vmatpush1.xpose.msra.mxu0 0.0
    %2670 = vmatprep.subr.mxu0 0.0
    %2671 = vmatpush1.xpose.msra.mxu0 0.0
    %2672 = vmatprep.subr.mxu0 0.0
    %2673 = vmatpush1.xpose.msra.mxu0 0.0
    %2674 = vmatprep.subr.mxu0 0.0
    %2675 = vmatpush1.xpose.msra.mxu0 0.0
    %2676 = vmatprep.subr.mxu0 0.0
    %2677 = vmatpush1.xpose.msra.mxu0 0.0
    %2678 = vmatprep.subr.mxu0 0.0
    %2679 = vmatpush1.xpose.msra.mxu0 0.0
    %2680 = vmatprep.subr.mxu0 0.0
    %2681 = vmatpush1.xpose.msra.mxu0 0.0
    %2682 = vmatprep.subr.mxu0 0.0
    %2683 = vmatpush1.xpose.msra.mxu0 0.0
    %2684 = vmatprep.subr.mxu0 0.0
    %2685 = vmatpush1.xpose.msra.mxu0 0.0
    %2686 = vmatprep.subr.mxu0 0.0
    %2687 = vmatpush1.xpose.msra.mxu0 0.0
    %2688 = vmatprep.subr.mxu0 0.0
    %2689 = vmatpush1.xpose.msra.mxu0 0.0
    %2690 = vmatprep.subr.mxu0 0.0
    %2691 = vmatpush1.xpose.msra.mxu0 0.0
    %2692 = vmatprep.subr.mxu0 0.0
    %2693 = vmatpush1.xpose.msra.mxu0 0.0
    %2694 = vmatprep.subr.mxu0 0.0
    %2695 = vmatpush1.xpose.msra.mxu0 0.0
    %2696 = vmatprep.subr.mxu0 0.0
    %2697 = vmatpush1.xpose.msra.mxu0 0.0
    %2698 = vmatprep.subr.mxu0 0.0
    %2699 = vmatpush1.xpose.msra.mxu0 0.0
    %2700 = vmatprep.subr.mxu0 0.0
    %2701 = vmatpush1.xpose.msra.mxu0 0.0
    %2702 = vmatprep.subr.mxu0 0.0
    %2703 = vmatpush1.xpose.msra.mxu0 0.0
    %2704 = vmatprep.subr.mxu0 0.0
    %2705 = vmatpush1.xpose.msra.mxu0 0.0
    %2706 = vmatprep.mubr.f32.mxu0 0.0
    %2707 = vmatmul.mubr.f32.gmra.mrb[0].mxu0 %v2632
    %v2708 = vpop.f32.mrb[0].mxu0
    %v2709 = vadd.f32 0.0, %v2708
    %v2710 = vpop.f32.mrb[0].mxu0
    %2711 = vmatprep.mubr.f32.mxu0 0.0
    %2712 = vmatmul.mubr.f32.gmra.mrb[0].mxu0 %v2634
    %v2713 = vpop.f32.mrb[0].mxu0
    %v2714 = vadd.f32 0.0, %v2713
    %v2715 = vpop.f32.mrb[0].mxu0
    %2716 = vmatprep.mubr.f32.mxu0 0.0
    %2717 = vmatmul.mubr.f32.gmra.mrb[0].mxu0 %v2636
    %v2718 = vpop.f32.mrb[0].mxu0
    %v2719 = vadd.f32 0.0, %v2718
    %v2720 = vpop.f32.mrb[0].mxu0
    %2721 = vdwg.mxu0
    %v2722 = vmul.f32 %v2709, 0.25
    %v2723 = vmul.f32 %v2714, 0.25
    %v2724 = vmul.f32 %v2719, 0.25
    %v2725 = vsel %vm731, %v2722, -inf
    %2726 = vmax.xlane.f32.xlu0 %v2725
    %v2727 = vpop.xlane.xlu0 %2726
    %v2728 = vsel %vm731, %v2723, -inf
    %2729 = vmax.xlane.f32.xlu0 %v2728
    %v2730 = vpop.xlane.xlu0 %2729
    %v2731 = vsel %vm731, %v2724, -inf
    %2732 = vmax.xlane.f32.xlu0 %v2731
    %v2733 = vpop.xlane.xlu0 %2732
    %v2734 = vsub.f32 %v2722, %v2727
    %v2735 = vsub.f32 %v2723, %v2730
    %v2736 = vsub.f32 %v2724, %v2733
    %v2737 = vmul.f32 %v2734, 1.442695
    %v2738 = vpow.pop %v2737
    %v2739 = vmul.f32 %v2735, 1.442695
    %v2740 = vpow.pop %v2739
    %v2741 = vmul.f32 %v2736, 1.442695
    %v2742 = vpow.pop %v2741
    %v2743 = vsel %vm731, %v2738, 0.0
    %2744 = vadd.xlane.f32.xlu0 %v2743
    %v2745 = vpop.xlane.xlu0 %2744
    %v2746 = vsel %vm731, %v2740, 0.0
    %2747 = vadd.xlane.f32.xlu0 %v2746
    %v2748 = vpop.xlane.xlu0 %2747
    %v2749 = vsel %vm731, %v2742, 0.0
    %2750 = vadd.xlane.f32.xlu0 %v2749
    %v2751 = vpop.xlane.xlu0 %2750
    %v2752 = vrcp.pop %v2745
    %v2753 = vrcp.pop %v2748
    %v2754 = vrcp.pop %v2751
    %v2755 = vmul.f32 %v2738, %v2752
    %v2756 = vmul.f32 %v2740, %v2753
    %v2757 = vmul.f32 %v2742, %v2754
    %2758 = vrot.lane.b32.xlu0 %v2374, 80
    %v2759 = vpop.permute.xlu0 %2758
    %2760 = vrot.lane.b32.xlu0 %v2379, 80
    %v2761 = vpop.permute.xlu0 %2760
    %v2765 = vsel %vm731, %v2755, 0
    %v2768 = vsel %vm731, %v2756, 0
    %v2771 = vsel %vm731, %v2757, 0
    %2773 = vmatprep.subr.mxu0 0.0
    %2774 = vmatpush1.msra.mxu0 %v2759
    %2775 = vmatprep.subr.mxu0 0.0
    %2776 = vmatpush1.msra.mxu0 %v2761
    %2777 = vmatprep.subr.mxu0 0.0
    %2778 = vmatpush1.msra.mxu0 0.0
    %2779 = vmatprep.subr.mxu0 0.0
    %2780 = vmatpush1.msra.mxu0 0.0
    %2781 = vmatprep.subr.mxu0 0.0
    %2782 = vmatpush1.msra.mxu0 0.0
    %2783 = vmatprep.subr.mxu0 0.0
    %2784 = vmatpush1.msra.mxu0 0.0
    %2785 = vmatprep.subr.mxu0 0.0
    %2786 = vmatpush1.msra.mxu0 0.0
    %2787 = vmatprep.subr.mxu0 0.0
    %2788 = vmatpush1.msra.mxu0 0.0
    %2789 = vmatprep.subr.mxu0 0.0
    %2790 = vmatpush1.msra.mxu0 0.0
    %2791 = vmatprep.subr.mxu0 0.0
    %2792 = vmatpush1.msra.mxu0 0.0
    %2793 = vmatprep.subr.mxu0 0.0
    %2794 = vmatpush1.msra.mxu0 0.0
    %2795 = vmatprep.subr.mxu0 0.0
    %2796 = vmatpush1.msra.mxu0 0.0
    %2797 = vmatprep.subr.mxu0 0.0
    %2798 = vmatpush1.msra.mxu0 0.0
    %2799 = vmatprep.subr.mxu0 0.0
    %2800 = vmatpush1.msra.mxu0 0.0
    %2801 = vmatprep.subr.mxu0 0.0
    %2802 = vmatpush1.msra.mxu0 0.0
    %2803 = vmatprep.subr.mxu0 0.0
    %2804 = vmatpush1.msra.mxu0 0.0
    %2805 = vmatprep.subr.mxu0 0.0
    %2806 = vmatpush1.msra.mxu0 0.0
    %2807 = vmatprep.subr.mxu0 0.0
    %2808 = vmatpush1.msra.mxu0 0.0
    %2809 = vmatprep.subr.mxu0 0.0
    %2810 = vmatpush1.msra.mxu0 0.0
    %2811 = vmatprep.subr.mxu0 0.0
    %2812 = vmatpush1.msra.mxu0 0.0
    %2813 = vmatprep.subr.mxu0 0.0
    %2814 = vmatpush1.msra.mxu0 0.0
    %2815 = vmatprep.subr.mxu0 0.0
    %2816 = vmatpush1.msra.mxu0 0.0
    %2817 = vmatprep.subr.mxu0 0.0
    %2818 = vmatpush1.msra.mxu0 0.0
    %2819 = vmatprep.subr.mxu0 0.0
    %2820 = vmatpush1.msra.mxu0 0.0
    %2821 = vmatprep.subr.mxu0 0.0
    %2822 = vmatpush1.msra.mxu0 0.0
    %2823 = vmatprep.subr.mxu0 0.0
    %2824 = vmatpush1.msra.mxu0 0.0
    %2825 = vmatprep.subr.mxu0 0.0
    %2826 = vmatpush1.msra.mxu0 0.0
    %2827 = vmatprep.subr.mxu0 0.0
    %2828 = vmatpush1.msra.mxu0 0.0
    %2829 = vmatprep.subr.mxu0 0.0
    %2830 = vmatpush1.msra.mxu0 0.0
    %2831 = vmatprep.subr.mxu0 0.0
    %2832 = vmatpush1.msra.mxu0 0.0
    %2833 = vmatprep.subr.mxu0 0.0
    %2834 = vmatpush1.msra.mxu0 0.0
    %2835 = vmatprep.subr.mxu0 0.0
    %2836 = vmatpush1.msra.mxu0 0.0
    %2837 = vmatprep.mubr.f32.mxu0 0.0
    %2838 = vmatmul.mubr.f32.gmra.mrb[0].mxu0 %v2765
    %v2839 = vpop.f32.mrb[0].mxu0
    %v2840 = vadd.f32 0.0, %v2839
    %v2841 = vpop.f32.mrb[0].mxu0
    %2842 = vmatprep.mubr.f32.mxu0 0.0
    %2843 = vmatmul.mubr.f32.gmra.mrb[0].mxu0 %v2768
    %v2844 = vpop.f32.mrb[0].mxu0
    %v2845 = vadd.f32 0.0, %v2844
    %v2846 = vpop.f32.mrb[0].mxu0
    %2847 = vmatprep.mubr.f32.mxu0 0.0
    %2848 = vmatmul.mubr.f32.gmra.mrb[0].mxu0 %v2771
    %v2849 = vpop.f32.mrb[0].mxu0
    %v2850 = vadd.f32 0.0, %v2849
    %v2851 = vpop.f32.mrb[0].mxu0
    %2852 = vdwg.mxu0
    %v2854 = vsel %vm731, %v2840, 0
    %v2857 = vsel %vm731, %v2845, 0
    %v2860 = vsel %vm731, %v2850, 0
    %2862 = vmatprep.subr.mxu0 0.0
    %2863 = vmatpush1.msra.mxu0 %v2394
    %2864 = vmatprep.subr.mxu0 0.0
    %2865 = vmatpush1.msra.mxu0 %v2395
    %2866 = vmatprep.subr.mxu0 0.0
    %2867 = vmatpush1.msra.mxu0 0.0
    %2868 = vmatprep.subr.mxu0 0.0
    %2869 = vmatpush1.msra.mxu0 0.0
    %2870 = vmatprep.subr.mxu0 0.0
    %2871 = vmatpush1.msra.mxu0 0.0
    %2872 = vmatprep.subr.mxu0 0.0
    %2873 = vmatpush1.msra.mxu0 0.0
    %2874 = vmatprep.subr.mxu0 0.0
    %2875 = vmatpush1.msra.mxu0 0.0
    %2876 = vmatprep.subr.mxu0 0.0
    %2877 = vmatpush1.msra.mxu0 0.0
    %2878 = vmatprep.subr.mxu0 0.0
    %2879 = vmatpush1.msra.mxu0 0.0
    %2880 = vmatprep.subr.mxu0 0.0
    %2881 = vmatpush1.msra.mxu0 0.0
    %2882 = vmatprep.subr.mxu0 0.0
    %2883 = vmatpush1.msra.mxu0 0.0
    %2884 = vmatprep.subr.mxu0 0.0
    %2885 = vmatpush1.msra.mxu0 0.0
    %2886 = vmatprep.subr.mxu0 0.0
    %2887 = vmatpush1.msra.mxu0 0.0
    %2888 = vmatprep.subr.mxu0 0.0
    %2889 = vmatpush1.msra.mxu0 0.0
    %2890 = vmatprep.subr.mxu0 0.0
    %2891 = vmatpush1.msra.mxu0 0.0
    %2892 = vmatprep.subr.mxu0 0.0
    %2893 = vmatpush1.msra.mxu0 0.0
    %2894 = vmatprep.subr.mxu0 0.0
    %2895 = vmatpush1.msra.mxu0 0.0
    %2896 = vmatprep.subr.mxu0 0.0
    %2897 = vmatpush1.msra.mxu0 0.0
    %2898 = vmatprep.subr.mxu0 0.0
    %2899 = vmatpush1.msra.mxu0 0.0
    %2900 = vmatprep.subr.mxu0 0.0
    %2901 = vmatpush1.msra.mxu0 0.0
    %2902 = vmatprep.subr.mxu0 0.0
    %2903 = vmatpush1.msra.mxu0 0.0
    %2904 = vmatprep.subr.mxu0 0.0
    %2905 = vmatpush1.msra.mxu0 0.0
    %2906 = vmatprep.subr.mxu0 0.0
    %2907 = vmatpush1.msra.mxu0 0.0
    %2908 = vmatprep.subr.mxu0 0.0
    %2909 = vmatpush1.msra.mxu0 0.0
    %2910 = vmatprep.subr.mxu0 0.0
    %2911 = vmatpush1.msra.mxu0 0.0
    %2912 = vmatprep.subr.mxu0 0.0
    %2913 = vmatpush1.msra.mxu0 0.0
    %2914 = vmatprep.subr.mxu0 0.0
    %2915 = vmatpush1.msra.mxu0 0.0
    %2916 = vmatprep.subr.mxu0 0.0
    %2917 = vmatpush1.msra.mxu0 0.0
    %2918 = vmatprep.subr.mxu0 0.0
    %2919 = vmatpush1.msra.mxu0 0.0
    %2920 = vmatprep.subr.mxu0 0.0
    %2921 = vmatpush1.msra.mxu0 0.0
    %2922 = vmatprep.subr.mxu0 0.0
    %2923 = vmatpush1.msra.mxu0 0.0
    %2924 = vmatprep.subr.mxu0 0.0
    %2925 = vmatpush1.msra.mxu0 0.0
    %2926 = vmatprep.mubr.f32.mxu0 0.0
    %2927 = vmatmul.mubr.f32.gmra.mrb[0].mxu0 %v2854
    %v2928 = vpop.f32.mrb[0].mxu0
    %v2929 = vadd.f32 0.0, %v2928
    %v2930 = vpop.f32.mrb[0].mxu0
    %2931 = vmatprep.mubr.f32.mxu0 0.0
    %2932 = vmatmul.mubr.f32.gmra.mrb[0].mxu0 %v2857
    %v2933 = vpop.f32.mrb[0].mxu0
    %v2934 = vadd.f32 0.0, %v2933
    %v2935 = vpop.f32.mrb[0].mxu0
    %2936 = vmatprep.mubr.f32.mxu0 0.0
    %2937 = vmatmul.mubr.f32.gmra.mrb[0].mxu0 %v2860
    %v2938 = vpop.f32.mrb[0].mxu0
    %v2939 = vadd.f32 0.0, %v2938
    %v2940 = vpop.f32.mrb[0].mxu0
    %2941 = vdwg.mxu0
    %v2943 = vsel %vm731, %v2609, 0
    %v2946 = vsel %vm731, %v2614, 0
    %v2949 = vsel %vm731, %v2619, 0
    %2951 = vmatprep.subr.mxu0 0.0
    %2952 = vmatpush1.msra.mxu0 %v2392
    %2953 = vmatprep.subr.mxu0 0.0
    %2954 = vmatpush1.msra.mxu0 %v2393
    %2955 = vmatprep.subr.mxu0 0.0
    %2956 = vmatpush1.msra.mxu0 0.0
    %2957 = vmatprep.subr.mxu0 0.0
    %2958 = vmatpush1.msra.mxu0 0.0
    %2959 = vmatprep.subr.mxu0 0.0
    %2960 = vmatpush1.msra.mxu0 0.0
    %2961 = vmatprep.subr.mxu0 0.0
    %2962 = vmatpush1.msra.mxu0 0.0
    %2963 = vmatprep.subr.mxu0 0.0
    %2964 = vmatpush1.msra.mxu0 0.0
    %2965 = vmatprep.subr.mxu0 0.0
    %2966 = vmatpush1.msra.mxu0 0.0
    %2967 = vmatprep.subr.mxu0 0.0
    %2968 = vmatpush1.msra.mxu0 0.0
    %2969 = vmatprep.subr.mxu0 0.0
    %2970 = vmatpush1.msra.mxu0 0.0
    %2971 = vmatprep.subr.mxu0 0.0
    %2972 = vmatpush1.msra.mxu0 0.0
    %2973 = vmatprep.subr.mxu0 0.0
    %2974 = vmatpush1.msra.mxu0 0.0
    %2975 = vmatprep.subr.mxu0 0.0
    %2976 = vmatpush1.msra.mxu0 0.0
    %2977 = vmatprep.subr.mxu0 0.0
    %2978 = vmatpush1.msra.mxu0 0.0
    %2979 = vmatprep.subr.mxu0 0.0
    %2980 = vmatpush1.msra.mxu0 0.0
    %2981 = vmatprep.subr.mxu0 0.0
    %2982 = vmatpush1.msra.mxu0 0.0
    %2983 = vmatprep.subr.mxu0 0.0
    %2984 = vmatpush1.msra.mxu0 0.0
    %2985 = vmatprep.subr.mxu0 0.0
    %2986 = vmatpush1.msra.mxu0 0.0
    %2987 = vmatprep.subr.mxu0 0.0
    %2988 = vmatpush1.msra.mxu0 0.0
    %2989 = vmatprep.subr.mxu0 0.0
    %2990 = vmatpush1.msra.mxu0 0.0
    %2991 = vmatprep.subr.mxu0 0.0
    %2992 = vmatpush1.msra.mxu0 0.0
    %2993 = vmatprep.subr.mxu0 0.0
    %2994 = vmatpush1.msra.mxu0 0.0
    %2995 = vmatprep.subr.mxu0 0.0
    %2996 = vmatpush1.msra.mxu0 0.0
    %2997 = vmatprep.subr.mxu0 0.0
    %2998 = vmatpush1.msra.mxu0 0.0
    %2999 = vmatprep.subr.mxu0 0.0
    %3000 = vmatpush1.msra.mxu0 0.0
    %3001 = vmatprep.subr.mxu0 0.0
    %3002 = vmatpush1.msra.mxu0 0.0
    %3003 = vmatprep.subr.mxu0 0.0
    %3004 = vmatpush1.msra.mxu0 0.0
    %3005 = vmatprep.subr.mxu0 0.0
    %3006 = vmatpush1.msra.mxu0 0.0
    %3007 = vmatprep.subr.mxu0 0.0
    %3008 = vmatpush1.msra.mxu0 0.0
    %3009 = vmatprep.subr.mxu0 0.0
    %3010 = vmatpush1.msra.mxu0 0.0
    %3011 = vmatprep.subr.mxu0 0.0
    %3012 = vmatpush1.msra.mxu0 0.0
    %3013 = vmatprep.subr.mxu0 0.0
    %3014 = vmatpush1.msra.mxu0 0.0
    %3015 = vmatprep.mubr.f32.mxu0 0.0
    %3016 = vmatmul.mubr.f32.gmra.mrb[0].mxu0 %v2943
    %v3017 = vpop.f32.mrb[0].mxu0
    %v3018 = vadd.f32 %v2929, %v3017
    %v3019 = vpop.f32.mrb[0].mxu0
    %3020 = vmatprep.mubr.f32.mxu0 0.0
    %3021 = vmatmul.mubr.f32.gmra.mrb[0].mxu0 %v2946
    %v3022 = vpop.f32.mrb[0].mxu0
    %v3023 = vadd.f32 %v2934, %v3022
    %v3024 = vpop.f32.mrb[0].mxu0
    %3025 = vmatprep.mubr.f32.mxu0 0.0
    %3026 = vmatmul.mubr.f32.gmra.mrb[0].mxu0 %v2949
    %v3027 = vpop.f32.mrb[0].mxu0
    %v3028 = vadd.f32 %v2939, %v3027
    %v3029 = vpop.f32.mrb[0].mxu0
    %3030 = vdwg.mxu0
    %v3032 = vsel %vm731, %v2271, 0
    %v3035 = vsel %vm731, %v2276, 0
    %v3038 = vsel %vm731, %v2281, 0
    %v3041 = vsel %vm731, %v2384, 0
    %v3044 = vsel %vm731, %v2389, 0
    %3046 = vmatprep.subr.mxu0 0.0
    %3047 = vmatpush1.xpose.msra.mxu0 %v3041
    %3048 = vmatprep.subr.mxu0 0.0
    %3049 = vmatpush1.xpose.msra.mxu0 %v3044
    %3050 = vmatprep.subr.mxu0 0.0
    %3051 = vmatpush1.xpose.msra.mxu0 0.0
    %3052 = vmatprep.subr.mxu0 0.0
    %3053 = vmatpush1.xpose.msra.mxu0 0.0
    %3054 = vmatprep.subr.mxu0 0.0
    %3055 = vmatpush1.xpose.msra.mxu0 0.0
    %3056 = vmatprep.subr.mxu0 0.0
    %3057 = vmatpush1.xpose.msra.mxu0 0.0
    %3058 = vmatprep.subr.mxu0 0.0
    %3059 = vmatpush1.xpose.msra.mxu0 0.0
    %3060 = vmatprep.subr.mxu0 0.0
    %3061 = vmatpush1.xpose.msra.mxu0 0.0
    %3062 = vmatprep.subr.mxu0 0.0
    %3063 = vmatpush1.xpose.msra.mxu0 0.0
    %3064 = vmatprep.subr.mxu0 0.0
    %3065 = vmatpush1.xpose.msra.mxu0 0.0
    %3066 = vmatprep.subr.mxu0 0.0
    %3067 = vmatpush1.xpose.msra.mxu0 0.0
    %3068 = vmatprep.subr.mxu0 0.0
    %3069 = vmatpush1.xpose.msra.mxu0 0.0
    %3070 = vmatprep.subr.mxu0 0.0
    %3071 = vmatpush1.xpose.msra.mxu0 0.0
    %3072 = vmatprep.subr.mxu0 0.0
    %3073 = vmatpush1.xpose.msra.mxu0 0.0
    %3074 = vmatprep.subr.mxu0 0.0
    %3075 = vmatpush1.xpose.msra.mxu0 0.0
    %3076 = vmatprep.subr.mxu0 0.0
    %3077 = vmatpush1.xpose.msra.mxu0 0.0
    %3078 = vmatprep.subr.mxu0 0.0
    %3079 = vmatpush1.xpose.msra.mxu0 0.0
    %3080 = vmatprep.subr.mxu0 0.0
    %3081 = vmatpush1.xpose.msra.mxu0 0.0
    %3082 = vmatprep.subr.mxu0 0.0
    %3083 = vmatpush1.xpose.msra.mxu0 0.0
    %3084 = vmatprep.subr.mxu0 0.0
    %3085 = vmatpush1.xpose.msra.mxu0 0.0
    %3086 = vmatprep.subr.mxu0 0.0
    %3087 = vmatpush1.xpose.msra.mxu0 0.0
    %3088 = vmatprep.subr.mxu0 0.0
    %3089 = vmatpush1.xpose.msra.mxu0 0.0
    %3090 = vmatprep.subr.mxu0 0.0
    %3091 = vmatpush1.xpose.msra.mxu0 0.0
    %3092 = vmatprep.subr.mxu0 0.0
    %3093 = vmatpush1.xpose.msra.mxu0 0.0
    %3094 = vmatprep.subr.mxu0 0.0
    %3095 = vmatpush1.xpose.msra.mxu0 0.0
    %3096 = vmatprep.subr.mxu0 0.0
    %3097 = vmatpush1.xpose.msra.mxu0 0.0
    %3098 = vmatprep.subr.mxu0 0.0
    %3099 = vmatpush1.xpose.msra.mxu0 0.0
    %3100 = vmatprep.subr.mxu0 0.0
    %3101 = vmatpush1.xpose.msra.mxu0 0.0
    %3102 = vmatprep.subr.mxu0 0.0
    %3103 = vmatpush1.xpose.msra.mxu0 0.0
    %3104 = vmatprep.subr.mxu0 0.0
    %3105 = vmatpush1.xpose.msra.mxu0 0.0
    %3106 = vmatprep.subr.mxu0 0.0
    %3107 = vmatpush1.xpose.msra.mxu0 0.0
    %3108 = vmatprep.subr.mxu0 0.0
    %3109 = vmatpush1.xpose.msra.mxu0 0.0
    %3110 = vmatprep.mubr.f32.mxu0 0.0
    %3111 = vmatmul.mubr.f32.gmra.mrb[0].mxu0 %v3032
    %v3112 = vpop.f32.mrb[0].mxu0
    %v3113 = vadd.f32 0.0, %v3112
    %v3114 = vpop.f32.mrb[0].mxu0
    %3115 = vmatprep.mubr.f32.mxu0 0.0
    %3116 = vmatmul.mubr.f32.gmra.mrb[0].mxu0 %v3035
    %v3117 = vpop.f32.mrb[0].mxu0
    %v3118 = vadd.f32 0.0, %v3117
    %v3119 = vpop.f32.mrb[0].mxu0
    %3120 = vmatprep.mubr.f32.mxu0 0.0
    %3121 = vmatmul.mubr.f32.gmra.mrb[0].mxu0 %v3038
    %v3122 = vpop.f32.mrb[0].mxu0
    %v3123 = vadd.f32 0.0, %v3122
    %v3124 = vpop.f32.mrb[0].mxu0
    %3125 = vdwg.mxu0
    %v3126 = vmul.f32 %v3113, 0.25
    %v3127 = vmul.f32 %v3118, 0.25
    %v3128 = vmul.f32 %v3123, 0.25
    %v3129 = vsel %vm731, %v3126, -inf
    %3130 = vmax.xlane.f32.xlu0 %v3129
    %v3131 = vpop.xlane.xlu0 %3130
    %v3132 = vsel %vm731, %v3127, -inf
    %3133 = vmax.xlane.f32.xlu0 %v3132
    %v3134 = vpop.xlane.xlu0 %3133
    %v3135 = vsel %vm731, %v3128, -inf
    %3136 = vmax.xlane.f32.xlu0 %v3135
    %v3137 = vpop.xlane.xlu0 %3136
    %v3138 = vsub.f32 %v3126, %v3131
    %v3139 = vsub.f32 %v3127, %v3134
    %v3140 = vsub.f32 %v3128, %v3137
    %v3141 = vmul.f32 %v3138, 1.442695
    %v3142 = vpow.pop %v3141
    %v3143 = vmul.f32 %v3139, 1.442695
    %v3144 = vpow.pop %v3143
    %v3145 = vmul.f32 %v3140, 1.442695
    %v3146 = vpow.pop %v3145
    %v3147 = vsel %vm731, %v3142, 0.0
    %3148 = vadd.xlane.f32.xlu0 %v3147
    %v3149 = vpop.xlane.xlu0 %3148
    %v3150 = vsel %vm731, %v3144, 0.0
    %3151 = vadd.xlane.f32.xlu0 %v3150
    %v3152 = vpop.xlane.xlu0 %3151
    %v3153 = vsel %vm731, %v3146, 0.0
    %3154 = vadd.xlane.f32.xlu0 %v3153
    %v3155 = vpop.xlane.xlu0 %3154
    %v3156 = vrcp.pop %v3149
    %v3157 = vrcp.pop %v3152
    %v3158 = vrcp.pop %v3155
    %v3159 = vmul.f32 %v3142, %v3156
    %v3160 = vmul.f32 %v3144, %v3157
    %v3161 = vmul.f32 %v3146, %v3158
    %3162 = vrot.lane.b32.xlu0 %v2384, 96
    %v3163 = vpop.permute.xlu0 %3162
    %3164 = vrot.lane.b32.xlu0 %v2389, 96
    %v3165 = vpop.permute.xlu0 %3164
    %v3169 = vsel %vm731, %v3159, 0
    %v3172 = vsel %vm731, %v3160, 0
    %v3175 = vsel %vm731, %v3161, 0
    %3177 = vmatprep.subr.mxu0 0.0
    %3178 = vmatpush1.msra.mxu0 %v3163
    %3179 = vmatprep.subr.mxu0 0.0
    %3180 = vmatpush1.msra.mxu0 %v3165
    %3181 = vmatprep.subr.mxu0 0.0
    %3182 = vmatpush1.msra.mxu0 0.0
    %3183 = vmatprep.subr.mxu0 0.0
    %3184 = vmatpush1.msra.mxu0 0.0
    %3185 = vmatprep.subr.mxu0 0.0
    %3186 = vmatpush1.msra.mxu0 0.0
    %3187 = vmatprep.subr.mxu0 0.0
    %3188 = vmatpush1.msra.mxu0 0.0
    %3189 = vmatprep.subr.mxu0 0.0
    %3190 = vmatpush1.msra.mxu0 0.0
    %3191 = vmatprep.subr.mxu0 0.0
    %3192 = vmatpush1.msra.mxu0 0.0
    %3193 = vmatprep.subr.mxu0 0.0
    %3194 = vmatpush1.msra.mxu0 0.0
    %3195 = vmatprep.subr.mxu0 0.0
    %3196 = vmatpush1.msra.mxu0 0.0
    %3197 = vmatprep.subr.mxu0 0.0
    %3198 = vmatpush1.msra.mxu0 0.0
    %3199 = vmatprep.subr.mxu0 0.0
    %3200 = vmatpush1.msra.mxu0 0.0
    %3201 = vmatprep.subr.mxu0 0.0
    %3202 = vmatpush1.msra.mxu0 0.0
    %3203 = vmatprep.subr.mxu0 0.0
    %3204 = vmatpush1.msra.mxu0 0.0
    %3205 = vmatprep.subr.mxu0 0.0
    %3206 = vmatpush1.msra.mxu0 0.0
    %3207 = vmatprep.subr.mxu0 0.0
    %3208 = vmatpush1.msra.mxu0 0.0
    %3209 = vmatprep.subr.mxu0 0.0
    %3210 = vmatpush1.msra.mxu0 0.0
    %3211 = vmatprep.subr.mxu0 0.0
    %3212 = vmatpush1.msra.mxu0 0.0
    %3213 = vmatprep.subr.mxu0 0.0
    %3214 = vmatpush1.msra.mxu0 0.0
    %3215 = vmatprep.subr.mxu0 0.0
    %3216 = vmatpush1.msra.mxu0 0.0
    %3217 = vmatprep.subr.mxu0 0.0
    %3218 = vmatpush1.msra.mxu0 0.0
    %3219 = vmatprep.subr.mxu0 0.0
    %3220 = vmatpush1.msra.mxu0 0.0
    %3221 = vmatprep.subr.mxu0 0.0
    %3222 = vmatpush1.msra.mxu0 0.0
    %3223 = vmatprep.subr.mxu0 0.0
    %3224 = vmatpush1.msra.mxu0 0.0
    %3225 = vmatprep.subr.mxu0 0.0
    %3226 = vmatpush1.msra.mxu0 0.0
    %3227 = vmatprep.subr.mxu0 0.0
    %3228 = vmatpush1.msra.mxu0 0.0
    %3229 = vmatprep.subr.mxu0 0.0
    %3230 = vmatpush1.msra.mxu0 0.0
    %3231 = vmatprep.subr.mxu0 0.0
    %3232 = vmatpush1.msra.mxu0 0.0
    %3233 = vmatprep.subr.mxu0 0.0
    %3234 = vmatpush1.msra.mxu0 0.0
    %3235 = vmatprep.subr.mxu0 0.0
    %3236 = vmatpush1.msra.mxu0 0.0
    %3237 = vmatprep.subr.mxu0 0.0
    %3238 = vmatpush1.msra.mxu0 0.0
    %3239 = vmatprep.subr.mxu0 0.0
    %3240 = vmatpush1.msra.mxu0 0.0
    %3241 = vmatprep.mubr.f32.mxu0 0.0
    %3242 = vmatmul.mubr.f32.gmra.mrb[0].mxu0 %v3169
    %v3243 = vpop.f32.mrb[0].mxu0
    %v3244 = vadd.f32 0.0, %v3243
    %v3245 = vpop.f32.mrb[0].mxu0
    %3246 = vmatprep.mubr.f32.mxu0 0.0
    %3247 = vmatmul.mubr.f32.gmra.mrb[0].mxu0 %v3172
    %v3248 = vpop.f32.mrb[0].mxu0
    %v3249 = vadd.f32 0.0, %v3248
    %v3250 = vpop.f32.mrb[0].mxu0
    %3251 = vmatprep.mubr.f32.mxu0 0.0
    %3252 = vmatmul.mubr.f32.gmra.mrb[0].mxu0 %v3175
    %v3253 = vpop.f32.mrb[0].mxu0
    %v3254 = vadd.f32 0.0, %v3253
    %v3255 = vpop.f32.mrb[0].mxu0
    %3256 = vdwg.mxu0
    %3257 = vrot.lane.b32.xlu0 %v2271, 112
    %v3258 = vpop.permute.xlu0 %3257
    %3259 = vrot.lane.b32.xlu0 %v2276, 112
    %v3260 = vpop.permute.xlu0 %3259
    %3261 = vrot.lane.b32.xlu0 %v2281, 112
    %v3262 = vpop.permute.xlu0 %3261
    %3263 = vrot.lane.b32.xlu0 %v2384, 112
    %v3264 = vpop.permute.xlu0 %3263
    %3265 = vrot.lane.b32.xlu0 %v2389, 112
    %v3266 = vpop.permute.xlu0 %3265
    %v3267 = vsel %vm731, %v3258, 0
    %v3269 = vsel %vm731, %v3260, 0
    %v3271 = vsel %vm731, %v3262, 0
    %v3273 = vsel %vm731, %v3264, 0
    %v3275 = vsel %vm731, %v3266, 0
    %3277 = vmatprep.subr.mxu0 0.0
    %3278 = vmatpush1.xpose.msra.mxu0 %v3273
    %3279 = vmatprep.subr.mxu0 0.0
    %3280 = vmatpush1.xpose.msra.mxu0 %v3275
    %3281 = vmatprep.subr.mxu0 0.0
    %3282 = vmatpush1.xpose.msra.mxu0 0.0
    %3283 = vmatprep.subr.mxu0 0.0
    %3284 = vmatpush1.xpose.msra.mxu0 0.0
    %3285 = vmatprep.subr.mxu0 0.0
    %3286 = vmatpush1.xpose.msra.mxu0 0.0
    %3287 = vmatprep.subr.mxu0 0.0
    %3288 = vmatpush1.xpose.msra.mxu0 0.0
    %3289 = vmatprep.subr.mxu0 0.0
    %3290 = vmatpush1.xpose.msra.mxu0 0.0
    %3291 = vmatprep.subr.mxu0 0.0
    %3292 = vmatpush1.xpose.msra.mxu0 0.0
    %3293 = vmatprep.subr.mxu0 0.0
    %3294 = vmatpush1.xpose.msra.mxu0 0.0
    %3295 = vmatprep.subr.mxu0 0.0
    %3296 = vmatpush1.xpose.msra.mxu0 0.0
    %3297 = vmatprep.subr.mxu0 0.0
    %3298 = vmatpush1.xpose.msra.mxu0 0.0
    %3299 = vmatprep.subr.mxu0 0.0
    %3300 = vmatpush1.xpose.msra.mxu0 0.0
    %3301 = vmatprep.subr.mxu0 0.0
    %3302 = vmatpush1.xpose.msra.mxu0 0.0
    %3303 = vmatprep.subr.mxu0 0.0
    %3304 = vmatpush1.xpose.msra.mxu0 0.0
    %3305 = vmatprep.subr.mxu0 0.0
    %3306 = vmatpush1.xpose.msra.mxu0 0.0
    %3307 = vmatprep.subr.mxu0 0.0
    %3308 = vmatpush1.xpose.msra.mxu0 0.0
    %3309 = vmatprep.subr.mxu0 0.0
    %3310 = vmatpush1.xpose.msra.mxu0 0.0
    %3311 = vmatprep.subr.mxu0 0.0
    %3312 = vmatpush1.xpose.msra.mxu0 0.0
    %3313 = vmatprep.subr.mxu0 0.0
    %3314 = vmatpush1.xpose.msra.mxu0 0.0
    %3315 = vmatprep.subr.mxu0 0.0
    %3316 = vmatpush1.xpose.msra.mxu0 0.0
    %3317 = vmatprep.subr.mxu0 0.0
    %3318 = vmatpush1.xpose.msra.mxu0 0.0
    %3319 = vmatprep.subr.mxu0 0.0
    %3320 = vmatpush1.xpose.msra.mxu0 0.0
    %3321 = vmatprep.subr.mxu0 0.0
    %3322 = vmatpush1.xpose.msra.mxu0 0.0
    %3323 = vmatprep.subr.mxu0 0.0
    %3324 = vmatpush1.xpose.msra.mxu0 0.0
    %3325 = vmatprep.subr.mxu0 0.0
    %3326 = vmatpush1.xpose.msra.mxu0 0.0
    %3327 = vmatprep.subr.mxu0 0.0
    %3328 = vmatpush1.xpose.msra.mxu0 0.0
    %3329 = vmatprep.subr.mxu0 0.0
    %3330 = vmatpush1.xpose.msra.mxu0 0.0
    %3331 = vmatprep.subr.mxu0 0.0
    %3332 = vmatpush1.xpose.msra.mxu0 0.0
    %3333 = vmatprep.subr.mxu0 0.0
    %3334 = vmatpush1.xpose.msra.mxu0 0.0
    %3335 = vmatprep.subr.mxu0 0.0
    %3336 = vmatpush1.xpose.msra.mxu0 0.0
    %3337 = vmatprep.subr.mxu0 0.0
    %3338 = vmatpush1.xpose.msra.mxu0 0.0
    %3339 = vmatprep.subr.mxu0 0.0
    %3340 = vmatpush1.xpose.msra.mxu0 0.0
    %3341 = vmatprep.mubr.f32.mxu0 0.0
    %3342 = vmatmul.mubr.f32.gmra.mrb[0].mxu0 %v3267
    %v3343 = vpop.f32.mrb[0].mxu0
    %v3344 = vadd.f32 0.0, %v3343
    %v3345 = vpop.f32.mrb[0].mxu0
    %3346 = vmatprep.mubr.f32.mxu0 0.0
    %3347 = vmatmul.mubr.f32.gmra.mrb[0].mxu0 %v3269
    %v3348 = vpop.f32.mrb[0].mxu0
    %v3349 = vadd.f32 0.0, %v3348
    %v3350 = vpop.f32.mrb[0].mxu0
    %3351 = vmatprep.mubr.f32.mxu0 0.0
    %3352 = vmatmul.mubr.f32.gmra.mrb[0].mxu0 %v3271
    %v3353 = vpop.f32.mrb[0].mxu0
    %v3354 = vadd.f32 0.0, %v3353
    %v3355 = vpop.f32.mrb[0].mxu0
    %3356 = vdwg.mxu0
    %v3357 = vmul.f32 %v3344, 0.25
    %v3358 = vmul.f32 %v3349, 0.25
    %v3359 = vmul.f32 %v3354, 0.25
    %v3360 = vsel %vm731, %v3357, -inf
    %3361 = vmax.xlane.f32.xlu0 %v3360
    %v3362 = vpop.xlane.xlu0 %3361
    %v3363 = vsel %vm731, %v3358, -inf
    %3364 = vmax.xlane.f32.xlu0 %v3363
    %v3365 = vpop.xlane.xlu0 %3364
    %v3366 = vsel %vm731, %v3359, -inf
    %3367 = vmax.xlane.f32.xlu0 %v3366
    %v3368 = vpop.xlane.xlu0 %3367
    %v3369 = vsub.f32 %v3357, %v3362
    %v3370 = vsub.f32 %v3358, %v3365
    %v3371 = vsub.f32 %v3359, %v3368
    %v3372 = vmul.f32 %v3369, 1.442695
    %v3373 = vpow.pop %v3372
    %v3374 = vmul.f32 %v3370, 1.442695
    %v3375 = vpow.pop %v3374
    %v3376 = vmul.f32 %v3371, 1.442695
    %v3377 = vpow.pop %v3376
    %v3378 = vsel %vm731, %v3373, 0.0
    %3379 = vadd.xlane.f32.xlu0 %v3378
    %v3380 = vpop.xlane.xlu0 %3379
    %v3381 = vsel %vm731, %v3375, 0.0
    %3382 = vadd.xlane.f32.xlu0 %v3381
    %v3383 = vpop.xlane.xlu0 %3382
    %v3384 = vsel %vm731, %v3377, 0.0
    %3385 = vadd.xlane.f32.xlu0 %v3384
    %v3386 = vpop.xlane.xlu0 %3385
    %v3387 = vrcp.pop %v3380
    %v3388 = vrcp.pop %v3383
    %v3389 = vrcp.pop %v3386
    %v3390 = vmul.f32 %v3373, %v3387
    %v3391 = vmul.f32 %v3375, %v3388
    %v3392 = vmul.f32 %v3377, %v3389
    %3393 = vrot.lane.b32.xlu0 %v2384, 80
    %v3394 = vpop.permute.xlu0 %3393
    %3395 = vrot.lane.b32.xlu0 %v2389, 80
    %v3396 = vpop.permute.xlu0 %3395
    %v3400 = vsel %vm731, %v3390, 0
    %v3403 = vsel %vm731, %v3391, 0
    %v3406 = vsel %vm731, %v3392, 0
    %3408 = vmatprep.subr.mxu0 0.0
    %3409 = vmatpush1.msra.mxu0 %v3394
    %3410 = vmatprep.subr.mxu0 0.0
    %3411 = vmatpush1.msra.mxu0 %v3396
    %3412 = vmatprep.subr.mxu0 0.0
    %3413 = vmatpush1.msra.mxu0 0.0
    %3414 = vmatprep.subr.mxu0 0.0
    %3415 = vmatpush1.msra.mxu0 0.0
    %3416 = vmatprep.subr.mxu0 0.0
    %3417 = vmatpush1.msra.mxu0 0.0
    %3418 = vmatprep.subr.mxu0 0.0
    %3419 = vmatpush1.msra.mxu0 0.0
    %3420 = vmatprep.subr.mxu0 0.0
    %3421 = vmatpush1.msra.mxu0 0.0
    %3422 = vmatprep.subr.mxu0 0.0
    %3423 = vmatpush1.msra.mxu0 0.0
    %3424 = vmatprep.subr.mxu0 0.0
    %3425 = vmatpush1.msra.mxu0 0.0
    %3426 = vmatprep.subr.mxu0 0.0
    %3427 = vmatpush1.msra.mxu0 0.0
    %3428 = vmatprep.subr.mxu0 0.0
    %3429 = vmatpush1.msra.mxu0 0.0
    %3430 = vmatprep.subr.mxu0 0.0
    %3431 = vmatpush1.msra.mxu0 0.0
    %3432 = vmatprep.subr.mxu0 0.0
    %3433 = vmatpush1.msra.mxu0 0.0
    %3434 = vmatprep.subr.mxu0 0.0
    %3435 = vmatpush1.msra.mxu0 0.0
    %3436 = vmatprep.subr.mxu0 0.0
    %3437 = vmatpush1.msra.mxu0 0.0
    %3438 = vmatprep.subr.mxu0 0.0
    %3439 = vmatpush1.msra.mxu0 0.0
    %3440 = vmatprep.subr.mxu0 0.0
    %3441 = vmatpush1.msra.mxu0 0.0
    %3442 = vmatprep.subr.mxu0 0.0
    %3443 = vmatpush1.msra.mxu0 0.0
    %3444 = vmatprep.subr.mxu0 0.0
    %3445 = vmatpush1.msra.mxu0 0.0
    %3446 = vmatprep.subr.mxu0 0.0
    %3447 = vmatpush1.msra.mxu0 0.0
    %3448 = vmatprep.subr.mxu0 0.0
    %3449 = vmatpush1.msra.mxu0 0.0
    %3450 = vmatprep.subr.mxu0 0.0
    %3451 = vmatpush1.msra.mxu0 0.0
    %3452 = vmatprep.subr.mxu0 0.0
    %3453 = vmatpush1.msra.mxu0 0.0
    %3454 = vmatprep.subr.mxu0 0.0
    %3455 = vmatpush1.msra.mxu0 0.0
    %3456 = vmatprep.subr.mxu0 0.0
    %3457 = vmatpush1.msra.mxu0 0.0
    %3458 = vmatprep.subr.mxu0 0.0
    %3459 = vmatpush1.msra.mxu0 0.0
    %3460 = vmatprep.subr.mxu0 0.0
    %3461 = vmatpush1.msra.mxu0 0.0
    %3462 = vmatprep.subr.mxu0 0.0
    %3463 = vmatpush1.msra.mxu0 0.0
    %3464 = vmatprep.subr.mxu0 0.0
    %3465 = vmatpush1.msra.mxu0 0.0
    %3466 = vmatprep.subr.mxu0 0.0
    %3467 = vmatpush1.msra.mxu0 0.0
    %3468 = vmatprep.subr.mxu0 0.0
    %3469 = vmatpush1.msra.mxu0 0.0
    %3470 = vmatprep.subr.mxu0 0.0
    %3471 = vmatpush1.msra.mxu0 0.0
    %3472 = vmatprep.mubr.f32.mxu0 0.0
    %3473 = vmatmul.mubr.f32.gmra.mrb[0].mxu0 %v3400
    %v3474 = vpop.f32.mrb[0].mxu0
    %v3475 = vadd.f32 0.0, %v3474
    %v3476 = vpop.f32.mrb[0].mxu0
    %3477 = vmatprep.mubr.f32.mxu0 0.0
    %3478 = vmatmul.mubr.f32.gmra.mrb[0].mxu0 %v3403
    %v3479 = vpop.f32.mrb[0].mxu0
    %v3480 = vadd.f32 0.0, %v3479
    %v3481 = vpop.f32.mrb[0].mxu0
    %3482 = vmatprep.mubr.f32.mxu0 0.0
    %3483 = vmatmul.mubr.f32.gmra.mrb[0].mxu0 %v3406
    %v3484 = vpop.f32.mrb[0].mxu0
    %v3485 = vadd.f32 0.0, %v3484
    %v3486 = vpop.f32.mrb[0].mxu0
    %3487 = vdwg.mxu0
    %v3489 = vsel %vm731, %v3475, 0
    %v3492 = vsel %vm731, %v3480, 0
    %v3495 = vsel %vm731, %v3485, 0
    %3497 = vmatprep.subr.mxu0 0.0
    %3498 = vmatpush1.msra.mxu0 %v2394
    %3499 = vmatprep.subr.mxu0 0.0
    %3500 = vmatpush1.msra.mxu0 %v2395
    %3501 = vmatprep.subr.mxu0 0.0
    %3502 = vmatpush1.msra.mxu0 0.0
    %3503 = vmatprep.subr.mxu0 0.0
    %3504 = vmatpush1.msra.mxu0 0.0
    %3505 = vmatprep.subr.mxu0 0.0
    %3506 = vmatpush1.msra.mxu0 0.0
    %3507 = vmatprep.subr.mxu0 0.0
    %3508 = vmatpush1.msra.mxu0 0.0
    %3509 = vmatprep.subr.mxu0 0.0
    %3510 = vmatpush1.msra.mxu0 0.0
    %3511 = vmatprep.subr.mxu0 0.0
    %3512 = vmatpush1.msra.mxu0 0.0
    %3513 = vmatprep.subr.mxu0 0.0
    %3514 = vmatpush1.msra.mxu0 0.0
    %3515 = vmatprep.subr.mxu0 0.0
    %3516 = vmatpush1.msra.mxu0 0.0
    %3517 = vmatprep.subr.mxu0 0.0
    %3518 = vmatpush1.msra.mxu0 0.0
    %3519 = vmatprep.subr.mxu0 0.0
    %3520 = vmatpush1.msra.mxu0 0.0
    %3521 = vmatprep.subr.mxu0 0.0
    %3522 = vmatpush1.msra.mxu0 0.0
    %3523 = vmatprep.subr.mxu0 0.0
    %3524 = vmatpush1.msra.mxu0 0.0
    %3525 = vmatprep.subr.mxu0 0.0
    %3526 = vmatpush1.msra.mxu0 0.0
    %3527 = vmatprep.subr.mxu0 0.0
    %3528 = vmatpush1.msra.mxu0 0.0
    %3529 = vmatprep.subr.mxu0 0.0
    %3530 = vmatpush1.msra.mxu0 0.0
    %3531 = vmatprep.subr.mxu0 0.0
    %3532 = vmatpush1.msra.mxu0 0.0
    %3533 = vmatprep.subr.mxu0 0.0
    %3534 = vmatpush1.msra.mxu0 0.0
    %3535 = vmatprep.subr.mxu0 0.0
    %3536 = vmatpush1.msra.mxu0 0.0
    %3537 = vmatprep.subr.mxu0 0.0
    %3538 = vmatpush1.msra.mxu0 0.0
    %3539 = vmatprep.subr.mxu0 0.0
    %3540 = vmatpush1.msra.mxu0 0.0
    %3541 = vmatprep.subr.mxu0 0.0
    %3542 = vmatpush1.msra.mxu0 0.0
    %3543 = vmatprep.subr.mxu0 0.0
    %3544 = vmatpush1.msra.mxu0 0.0
    %3545 = vmatprep.subr.mxu0 0.0
    %3546 = vmatpush1.msra.mxu0 0.0
    %3547 = vmatprep.subr.mxu0 0.0
    %3548 = vmatpush1.msra.mxu0 0.0
    %3549 = vmatprep.subr.mxu0 0.0
    %3550 = vmatpush1.msra.mxu0 0.0
    %3551 = vmatprep.subr.mxu0 0.0
    %3552 = vmatpush1.msra.mxu0 0.0
    %3553 = vmatprep.subr.mxu0 0.0
    %3554 = vmatpush1.msra.mxu0 0.0
    %3555 = vmatprep.subr.mxu0 0.0
    %3556 = vmatpush1.msra.mxu0 0.0
    %3557 = vmatprep.subr.mxu0 0.0
    %3558 = vmatpush1.msra.mxu0 0.0
    %3559 = vmatprep.subr.mxu0 0.0
    %3560 = vmatpush1.msra.mxu0 0.0
    %3561 = vmatprep.mubr.f32.mxu0 0.0
    %3562 = vmatmul.mubr.f32.gmra.mrb[0].mxu0 %v3489
    %v3563 = vpop.f32.mrb[0].mxu0
    %v3564 = vadd.f32 0.0, %v3563
    %v3565 = vpop.f32.mrb[0].mxu0
    %3566 = vmatprep.mubr.f32.mxu0 0.0
    %3567 = vmatmul.mubr.f32.gmra.mrb[0].mxu0 %v3492
    %v3568 = vpop.f32.mrb[0].mxu0
    %v3569 = vadd.f32 0.0, %v3568
    %v3570 = vpop.f32.mrb[0].mxu0
    %3571 = vmatprep.mubr.f32.mxu0 0.0
    %3572 = vmatmul.mubr.f32.gmra.mrb[0].mxu0 %v3495
    %v3573 = vpop.f32.mrb[0].mxu0
    %v3574 = vadd.f32 0.0, %v3573
    %v3575 = vpop.f32.mrb[0].mxu0
    %3576 = vdwg.mxu0
    %v3578 = vsel %vm731, %v3244, 0
    %v3581 = vsel %vm731, %v3249, 0
    %v3584 = vsel %vm731, %v3254, 0
    %3586 = vmatprep.subr.mxu0 0.0
    %3587 = vmatpush1.msra.mxu0 %v2392
    %3588 = vmatprep.subr.mxu0 0.0
    %3589 = vmatpush1.msra.mxu0 %v2393
    %3590 = vmatprep.subr.mxu0 0.0
    %3591 = vmatpush1.msra.mxu0 0.0
    %3592 = vmatprep.subr.mxu0 0.0
    %3593 = vmatpush1.msra.mxu0 0.0
    %3594 = vmatprep.subr.mxu0 0.0
    %3595 = vmatpush1.msra.mxu0 0.0
    %3596 = vmatprep.subr.mxu0 0.0
    %3597 = vmatpush1.msra.mxu0 0.0
    %3598 = vmatprep.subr.mxu0 0.0
    %3599 = vmatpush1.msra.mxu0 0.0
    %3600 = vmatprep.subr.mxu0 0.0
    %3601 = vmatpush1.msra.mxu0 0.0
    %3602 = vmatprep.subr.mxu0 0.0
    %3603 = vmatpush1.msra.mxu0 0.0
    %3604 = vmatprep.subr.mxu0 0.0
    %3605 = vmatpush1.msra.mxu0 0.0
    %3606 = vmatprep.subr.mxu0 0.0
    %3607 = vmatpush1.msra.mxu0 0.0
    %3608 = vmatprep.subr.mxu0 0.0
    %3609 = vmatpush1.msra.mxu0 0.0
    %3610 = vmatprep.subr.mxu0 0.0
    %3611 = vmatpush1.msra.mxu0 0.0
    %3612 = vmatprep.subr.mxu0 0.0
    %3613 = vmatpush1.msra.mxu0 0.0
    %3614 = vmatprep.subr.mxu0 0.0
    %3615 = vmatpush1.msra.mxu0 0.0
    %3616 = vmatprep.subr.mxu0 0.0
    %3617 = vmatpush1.msra.mxu0 0.0
    %3618 = vmatprep.subr.mxu0 0.0
    %3619 = vmatpush1.msra.mxu0 0.0
    %3620 = vmatprep.subr.mxu0 0.0
    %3621 = vmatpush1.msra.mxu0 0.0
    %3622 = vmatprep.subr.mxu0 0.0
    %3623 = vmatpush1.msra.mxu0 0.0
    %3624 = vmatprep.subr.mxu0 0.0
    %3625 = vmatpush1.msra.mxu0 0.0
    %3626 = vmatprep.subr.mxu0 0.0
    %3627 = vmatpush1.msra.mxu0 0.0
    %3628 = vmatprep.subr.mxu0 0.0
    %3629 = vmatpush1.msra.mxu0 0.0
    %3630 = vmatprep.subr.mxu0 0.0
    %3631 = vmatpush1.msra.mxu0 0.0
    %3632 = vmatprep.subr.mxu0 0.0
    %3633 = vmatpush1.msra.mxu0 0.0
    %3634 = vmatprep.subr.mxu0 0.0
    %3635 = vmatpush1.msra.mxu0 0.0
    %3636 = vmatprep.subr.mxu0 0.0
    %3637 = vmatpush1.msra.mxu0 0.0
    %3638 = vmatprep.subr.mxu0 0.0
    %3639 = vmatpush1.msra.mxu0 0.0
    %3640 = vmatprep.subr.mxu0 0.0
    %3641 = vmatpush1.msra.mxu0 0.0
    %3642 = vmatprep.subr.mxu0 0.0
    %3643 = vmatpush1.msra.mxu0 0.0
    %3644 = vmatprep.subr.mxu0 0.0
    %3645 = vmatpush1.msra.mxu0 0.0
    %3646 = vmatprep.subr.mxu0 0.0
    %3647 = vmatpush1.msra.mxu0 0.0
    %3648 = vmatprep.subr.mxu0 0.0
    %3649 = vmatpush1.msra.mxu0 0.0
    %3650 = vmatprep.mubr.f32.mxu0 0.0
    %3651 = vmatmul.mubr.f32.gmra.mrb[0].mxu0 %v3578
    %v3652 = vpop.f32.mrb[0].mxu0
    %v3653 = vadd.f32 %v3564, %v3652
    %v3654 = vpop.f32.mrb[0].mxu0
    %3655 = vmatprep.mubr.f32.mxu0 0.0
    %3656 = vmatmul.mubr.f32.gmra.mrb[0].mxu0 %v3581
    %v3657 = vpop.f32.mrb[0].mxu0
    %v3658 = vadd.f32 %v3569, %v3657
    %v3659 = vpop.f32.mrb[0].mxu0
    %3660 = vmatprep.mubr.f32.mxu0 0.0
    %3661 = vmatmul.mubr.f32.gmra.mrb[0].mxu0 %v3584
    %v3662 = vpop.f32.mrb[0].mxu0
    %v3663 = vadd.f32 %v3574, %v3662
    %v3664 = vpop.f32.mrb[0].mxu0
    %3665 = vdwg.mxu0
    %v3666 = vadd.f32 %v2050, %v3018
    %v3667 = vadd.f32 %v2051, %v3023
    %v3668 = vadd.f32 %v2052, %v3028
    %v3669 = vadd.f32 %v2053, %v3653
    %v3670 = vadd.f32 %v2054, %v3658
    %v3671 = vadd.f32 %v2055, %v3663
    %v3672 = vld [vmem:[%s49] sm:$0x1]
    %v3674 = vlaneseq
    %v3675 = vshrl.u32 %v3674, 7
    %v3676 = vsub.s32 0, %v3675
    %v3677 = vrot.slane %v3672, %v3676
    %v3679 = vadd.f32 %v3666, %v3677
    %v3680 = vadd.f32 %v3667, %v3677
    %v3681 = vadd.f32 %v3668, %v3677
    %v3682 = vadd.f32 %v3669, %v3677
    %v3683 = vadd.f32 %v3670, %v3677
    %v3684 = vadd.f32 %v3671, %v3677
    %v3685 = vsel %vm349, %v3679, 0.0
    %3686 = vadd.xlane.f32.xlu0 %v3685
    %v3687 = vpop.xlane.xlu0 %3686
    %v3688 = vsel %vm349, %v3680, 0.0
    %3689 = vadd.xlane.f32.xlu0 %v3688
    %v3690 = vpop.xlane.xlu0 %3689
    %v3691 = vsel %vm349, %v3681, 0.0
    %3692 = vadd.xlane.f32.xlu0 %v3691
    %v3693 = vpop.xlane.xlu0 %3692
    %v3694 = vsel %vm349, %v3682, 0.0
    %3695 = vadd.xlane.f32.xlu0 %v3694
    %v3696 = vpop.xlane.xlu0 %3695
    %v3697 = vsel %vm349, %v3683, 0.0
    %3698 = vadd.xlane.f32.xlu0 %v3697
    %v3699 = vpop.xlane.xlu0 %3698
    %v3700 = vsel %vm349, %v3684, 0.0
    %3701 = vadd.xlane.f32.xlu0 %v3700
    %v3702 = vpop.xlane.xlu0 %3701
    %v3703 = vmul.f32 %v3687, %v507
    %v3704 = vmul.f32 %v3690, %v507
    %v3705 = vmul.f32 %v3693, %v507
    %v3706 = vmul.f32 %v3696, %v507
    %v3707 = vmul.f32 %v3699, %v507
    %v3708 = vmul.f32 %v3702, %v507
    %v3709 = vsub.f32 %v3679, %v3703
    %v3710 = vsub.f32 %v3680, %v3704
    %v3711 = vsub.f32 %v3681, %v3705
    %v3712 = vsub.f32 %v3682, %v3706
    %v3713 = vsub.f32 %v3683, %v3707
    %v3714 = vsub.f32 %v3684, %v3708
    %v3715 = vmul.f32 %v3709, %v3709
    %v3716 = vmul.f32 %v3710, %v3710
    %v3717 = vmul.f32 %v3711, %v3711
    %v3718 = vmul.f32 %v3712, %v3712
    %v3719 = vmul.f32 %v3713, %v3713
    %v3720 = vmul.f32 %v3714, %v3714
    %v3721 = vsel %vm349, %v3715, 0.0
    %3722 = vadd.xlane.f32.xlu0 %v3721
    %v3723 = vpop.xlane.xlu0 %3722
    %v3724 = vsel %vm349, %v3716, 0.0
    %3725 = vadd.xlane.f32.xlu0 %v3724
    %v3726 = vpop.xlane.xlu0 %3725
    %v3727 = vsel %vm349, %v3717, 0.0
    %3728 = vadd.xlane.f32.xlu0 %v3727
    %v3729 = vpop.xlane.xlu0 %3728
    %v3730 = vsel %vm349, %v3718, 0.0
    %3731 = vadd.xlane.f32.xlu0 %v3730
    %v3732 = vpop.xlane.xlu0 %3731
    %v3733 = vsel %vm349, %v3719, 0.0
    %3734 = vadd.xlane.f32.xlu0 %v3733
    %v3735 = vpop.xlane.xlu0 %3734
    %v3736 = vsel %vm349, %v3720, 0.0
    %3737 = vadd.xlane.f32.xlu0 %v3736
    %v3738 = vpop.xlane.xlu0 %3737
    %v3739 = vmul.f32 %v3723, %v507
    %v3740 = vmul.f32 %v3726, %v507
    %v3741 = vmul.f32 %v3729, %v507
    %v3742 = vmul.f32 %v3732, %v507
    %v3743 = vmul.f32 %v3735, %v507
    %v3744 = vmul.f32 %v3738, %v507
    %v3745 = vadd.f32 %v3739, 1e-05
    %v3746 = vadd.f32 %v3740, 1e-05
    %v3747 = vadd.f32 %v3741, 1e-05
    %v3748 = vadd.f32 %v3742, 1e-05
    %v3749 = vadd.f32 %v3743, 1e-05
    %v3750 = vadd.f32 %v3744, 1e-05
    %v3751 = vrsqrt.pop %v3745
    %v3752 = vrsqrt.pop %v3746
    %v3753 = vrsqrt.pop %v3747
    %v3754 = vrsqrt.pop %v3748
    %v3755 = vrsqrt.pop %v3749
    %v3756 = vrsqrt.pop %v3750
    %v3757 = vmul.f32 %v3709, %v3751
    %v3758 = vmul.f32 %v3710, %v3752
    %v3759 = vmul.f32 %v3711, %v3753
    %v3760 = vmul.f32 %v3712, %v3754
    %v3761 = vmul.f32 %v3713, %v3755
    %v3762 = vmul.f32 %v3714, %v3756
    %v3763 = vld [vmem:[%s23] sm:$0x1]
    %v3765 = vlaneseq
    %v3766 = vshrl.u32 %v3765, 7
    %v3767 = vsub.s32 0, %v3766
    %v3768 = vrot.slane %v3763, %v3767
    %v3770 = vmul.f32 %v3757, %v3768
    %v3771 = vmul.f32 %v3758, %v3768
    %v3772 = vmul.f32 %v3759, %v3768
    %v3773 = vmul.f32 %v3760, %v3768
    %v3774 = vmul.f32 %v3761, %v3768
    %v3775 = vmul.f32 %v3762, %v3768
    %v3776 = vld [vmem:[%s25] sm:$0x1]
    %v3778 = vlaneseq
    %v3779 = vshrl.u32 %v3778, 7
    %v3780 = vsub.s32 0, %v3779
    %v3781 = vrot.slane %v3776, %v3780
    %v3783 = vadd.f32 %v3770, %v3781
    %v3784 = vadd.f32 %v3771, %v3781
    %v3785 = vadd.f32 %v3772, %v3781
    %v3786 = vadd.f32 %v3773, %v3781
    %v3787 = vadd.f32 %v3774, %v3781
    %v3788 = vadd.f32 %v3775, %v3781
    %v3789 = vld [vmem:[%s51] sm:$0xff]
    %v3790 = vld [vmem:[%s51 + $0x8] sm:$0xff]
    %v3791 = vld [vmem:[%s51 + $0x10] sm:$0xff]
    %v3792 = vld [vmem:[%s51 + $0x18] sm:$0xff]
    %v3793 = vld [vmem:[%s53] sm:$0x1]
    %v3795 = vlaneseq
    %v3796 = vshrl.u32 %v3795, 7
    %v3797 = vsub.s32 0, %v3796
    %v3798 = vrot.slane %v3793, %v3797
    %v3801 = vsel %vm349, %v3783, 0
    %v3804 = vsel %vm349, %v3784, 0
    %v3807 = vsel %vm349, %v3785, 0
    %v3810 = vsel %vm349, %v3786, 0
    %v3813 = vsel %vm349, %v3787, 0
    %v3816 = vsel %vm349, %v3788, 0
    %3818 = vmatprep.subr.mxu0 0.0
    %3819 = vmatpush1.msra.mxu0 %v3789
    %3820 = vmatprep.subr.mxu0 0.0
    %3821 = vmatpush1.msra.mxu0 %v3790
    %3822 = vmatprep.subr.mxu0 0.0
    %3823 = vmatpush1.msra.mxu0 %v3791
    %3824 = vmatprep.subr.mxu0 0.0
    %3825 = vmatpush1.msra.mxu0 %v3792
    %3826 = vmatprep.subr.mxu0 0.0
    %3827 = vmatpush1.msra.mxu0 0.0
    %3828 = vmatprep.subr.mxu0 0.0
    %3829 = vmatpush1.msra.mxu0 0.0
    %3830 = vmatprep.subr.mxu0 0.0
    %3831 = vmatpush1.msra.mxu0 0.0
    %3832 = vmatprep.subr.mxu0 0.0
    %3833 = vmatpush1.msra.mxu0 0.0
    %3834 = vmatprep.subr.mxu0 0.0
    %3835 = vmatpush1.msra.mxu0 0.0
    %3836 = vmatprep.subr.mxu0 0.0
    %3837 = vmatpush1.msra.mxu0 0.0
    %3838 = vmatprep.subr.mxu0 0.0
    %3839 = vmatpush1.msra.mxu0 0.0
    %3840 = vmatprep.subr.mxu0 0.0
    %3841 = vmatpush1.msra.mxu0 0.0
    %3842 = vmatprep.subr.mxu0 0.0
    %3843 = vmatpush1.msra.mxu0 0.0
    %3844 = vmatprep.subr.mxu0 0.0
    %3845 = vmatpush1.msra.mxu0 0.0
    %3846 = vmatprep.subr.mxu0 0.0
    %3847 = vmatpush1.msra.mxu0 0.0
    %3848 = vmatprep.subr.mxu0 0.0
    %3849 = vmatpush1.msra.mxu0 0.0
    %3850 = vmatprep.subr.mxu0 0.0
    %3851 = vmatpush1.msra.mxu0 0.0
    %3852 = vmatprep.subr.mxu0 0.0
    %3853 = vmatpush1.msra.mxu0 0.0
    %3854 = vmatprep.subr.mxu0 0.0
    %3855 = vmatpush1.msra.mxu0 0.0
    %3856 = vmatprep.subr.mxu0 0.0
    %3857 = vmatpush1.msra.mxu0 0.0
    %3858 = vmatprep.subr.mxu0 0.0
    %3859 = vmatpush1.msra.mxu0 0.0
    %3860 = vmatprep.subr.mxu0 0.0
    %3861 = vmatpush1.msra.mxu0 0.0
    %3862 = vmatprep.subr.mxu0 0.0
    %3863 = vmatpush1.msra.mxu0 0.0
    %3864 = vmatprep.subr.mxu0 0.0
    %3865 = vmatpush1.msra.mxu0 0.0
    %3866 = vmatprep.subr.mxu0 0.0
    %3867 = vmatpush1.msra.mxu0 0.0
    %3868 = vmatprep.subr.mxu0 0.0
    %3869 = vmatpush1.msra.mxu0 0.0
    %3870 = vmatprep.subr.mxu0 0.0
    %3871 = vmatpush1.msra.mxu0 0.0
    %3872 = vmatprep.subr.mxu0 0.0
    %3873 = vmatpush1.msra.mxu0 0.0
    %3874 = vmatprep.subr.mxu0 0.0
    %3875 = vmatpush1.msra.mxu0 0.0
    %3876 = vmatprep.subr.mxu0 0.0
    %3877 = vmatpush1.msra.mxu0 0.0
    %3878 = vmatprep.subr.mxu0 0.0
    %3879 = vmatpush1.msra.mxu0 0.0
    %3880 = vmatprep.subr.mxu0 0.0
    %3881 = vmatpush1.msra.mxu0 0.0
    %3882 = vmatprep.mubr.f32.mxu0 0.0
    %3883 = vmatmul.mubr.f32.gmra.mrb[0].mxu0 %v3801
    %v3884 = vpop.f32.mrb[0].mxu0
    %v3885 = vadd.f32 %v3798, %v3884
    %v3886 = vpop.f32.mrb[0].mxu0
    %3887 = vmatprep.mubr.f32.mxu0 0.0
    %3888 = vmatmul.mubr.f32.gmra.mrb[0].mxu0 %v3804
    %v3889 = vpop.f32.mrb[0].mxu0
    %v3890 = vadd.f32 %v3798, %v3889
    %v3891 = vpop.f32.mrb[0].mxu0
    %3892 = vmatprep.mubr.f32.mxu0 0.0
    %3893 = vmatmul.mubr.f32.gmra.mrb[0].mxu0 %v3807
    %v3894 = vpop.f32.mrb[0].mxu0
    %v3895 = vadd.f32 %v3798, %v3894
    %v3896 = vpop.f32.mrb[0].mxu0
    %3897 = vmatprep.mubr.f32.mxu0 0.0
    %3898 = vmatmul.mubr.f32.gmra.mrb[0].mxu0 %v3810
    %v3899 = vpop.f32.mrb[0].mxu0
    %v3900 = vadd.f32 %v3798, %v3899
    %v3901 = vpop.f32.mrb[0].mxu0
    %3902 = vmatprep.mubr.f32.mxu0 0.0
    %3903 = vmatmul.mubr.f32.gmra.mrb[0].mxu0 %v3813
    %v3904 = vpop.f32.mrb[0].mxu0
    %v3905 = vadd.f32 %v3798, %v3904
    %v3906 = vpop.f32.mrb[0].mxu0
    %3907 = vmatprep.mubr.f32.mxu0 0.0
    %3908 = vmatmul.mubr.f32.gmra.mrb[0].mxu0 %v3816
    %v3909 = vpop.f32.mrb[0].mxu0
    %v3910 = vadd.f32 %v3798, %v3909
    %v3911 = vpop.f32.mrb[0].mxu0
    %3912 = vdwg.mxu0
    %v3913 = vmul.f32 %v3885, %v3885
    %v3914 = vmul.f32 %v3890, %v3890
    %v3915 = vmul.f32 %v3895, %v3895
    %v3916 = vmul.f32 %v3900, %v3900
    %v3917 = vmul.f32 %v3905, %v3905
    %v3918 = vmul.f32 %v3910, %v3910
    %v3919 = vmul.f32 %v3885, %v3913
    %v3920 = vmul.f32 %v3890, %v3914
    %v3921 = vmul.f32 %v3895, %v3915
    %v3922 = vmul.f32 %v3900, %v3916
    %v3923 = vmul.f32 %v3905, %v3917
    %v3924 = vmul.f32 %v3910, %v3918
    %v3925 = vmul.f32 %v3919, 0.044715
    %v3926 = vmul.f32 %v3920, 0.044715
    %v3927 = vmul.f32 %v3921, 0.044715
    %v3928 = vmul.f32 %v3922, 0.044715
    %v3929 = vmul.f32 %v3923, 0.044715
    %v3930 = vmul.f32 %v3924, 0.044715
    %v3931 = vadd.f32 %v3885, %v3925
    %v3932 = vadd.f32 %v3890, %v3926
    %v3933 = vadd.f32 %v3895, %v3927
    %v3934 = vadd.f32 %v3900, %v3928
    %v3935 = vadd.f32 %v3905, %v3929
    %v3936 = vadd.f32 %v3910, %v3930
    %v3937 = vmul.f32 %v3931, 0.7978846
    %v3938 = vmul.f32 %v3932, 0.7978846
    %v3939 = vmul.f32 %v3933, 0.7978846
    %v3940 = vmul.f32 %v3934, 0.7978846
    %v3941 = vmul.f32 %v3935, 0.7978846
    %v3942 = vmul.f32 %v3936, 0.7978846
    %v3943 = vtanh.pop %v3937
    %v3944 = vtanh.pop %v3938
    %v3945 = vtanh.pop %v3939
    %v3946 = vtanh.pop %v3940
    %v3947 = vtanh.pop %v3941
    %v3948 = vtanh.pop %v3942
    %v3949 = vadd.f32 %v3943, 1.0
    %v3950 = vadd.f32 %v3944, 1.0
    %v3951 = vadd.f32 %v3945, 1.0
    %v3952 = vadd.f32 %v3946, 1.0
    %v3953 = vadd.f32 %v3947, 1.0
    %v3954 = vadd.f32 %v3948, 1.0
    %v3955 = vmul.f32 %v3949, 0.5
    %v3956 = vmul.f32 %v3950, 0.5
    %v3957 = vmul.f32 %v3951, 0.5
    %v3958 = vmul.f32 %v3952, 0.5
    %v3959 = vmul.f32 %v3953, 0.5
    %v3960 = vmul.f32 %v3954, 0.5
    %v3961 = vmul.f32 %v3885, %v3955
    %v3962 = vmul.f32 %v3890, %v3956
    %v3963 = vmul.f32 %v3895, %v3957
    %v3964 = vmul.f32 %v3900, %v3958
    %v3965 = vmul.f32 %v3905, %v3959
    %v3966 = vmul.f32 %v3910, %v3960
    %v3967 = vld [vmem:[%s55] sm:$0xff]
    %v3968 = vld [vmem:[%s55 + $0x8] sm:$0xff]
    %v3969 = vld [vmem:[%s55 + $0x10] sm:$0xff]
    %v3970 = vld [vmem:[%s55 + $0x18] sm:$0xff]
    %v3971 = vld [vmem:[%s55 + $0x20] sm:$0xff]
    %v3972 = vld [vmem:[%s55 + $0x28] sm:$0xff]
    %v3973 = vld [vmem:[%s55 + $0x30] sm:$0xff]
    %v3974 = vld [vmem:[%s55 + $0x38] sm:$0xff]
    %v3975 = vld [vmem:[%s55 + $0x40] sm:$0xff]
    %v3976 = vld [vmem:[%s55 + $0x48] sm:$0xff]
    %v3977 = vld [vmem:[%s55 + $0x50] sm:$0xff]
    %v3978 = vld [vmem:[%s55 + $0x58] sm:$0xff]
    %v3979 = vld [vmem:[%s55 + $0x60] sm:$0xff]
    %v3980 = vld [vmem:[%s55 + $0x68] sm:$0xff]
    %v3981 = vld [vmem:[%s55 + $0x70] sm:$0xff]
    %v3982 = vld [vmem:[%s55 + $0x78] sm:$0xff]
    %3983 = vmatprep.subr.mxu0 0.0
    %3984 = vmatpush1.msra.mxu0 %v3967
    %3985 = vmatprep.subr.mxu0 0.0
    %3986 = vmatpush1.msra.mxu0 %v3968
    %3987 = vmatprep.subr.mxu0 0.0
    %3988 = vmatpush1.msra.mxu0 %v3969
    %3989 = vmatprep.subr.mxu0 0.0
    %3990 = vmatpush1.msra.mxu0 %v3970
    %3991 = vmatprep.subr.mxu0 0.0
    %3992 = vmatpush1.msra.mxu0 %v3971
    %3993 = vmatprep.subr.mxu0 0.0
    %3994 = vmatpush1.msra.mxu0 %v3972
    %3995 = vmatprep.subr.mxu0 0.0
    %3996 = vmatpush1.msra.mxu0 %v3973
    %3997 = vmatprep.subr.mxu0 0.0
    %3998 = vmatpush1.msra.mxu0 %v3974
    %3999 = vmatprep.subr.mxu0 0.0
    %4000 = vmatpush1.msra.mxu0 %v3975
    %4001 = vmatprep.subr.mxu0 0.0
    %4002 = vmatpush1.msra.mxu0 %v3976
    %4003 = vmatprep.subr.mxu0 0.0
    %4004 = vmatpush1.msra.mxu0 %v3977
    %4005 = vmatprep.subr.mxu0 0.0
    %4006 = vmatpush1.msra.mxu0 %v3978
    %4007 = vmatprep.subr.mxu0 0.0
    %4008 = vmatpush1.msra.mxu0 %v3979
    %4009 = vmatprep.subr.mxu0 0.0
    %4010 = vmatpush1.msra.mxu0 %v3980
    %4011 = vmatprep.subr.mxu0 0.0
    %4012 = vmatpush1.msra.mxu0 %v3981
    %4013 = vmatprep.subr.mxu0 0.0
    %4014 = vmatpush1.msra.mxu0 %v3982
    %4015 = vmatprep.subr.mxu0 0.0
    %4016 = vmatpush1.msra.mxu0 0.0
    %4017 = vmatprep.subr.mxu0 0.0
    %4018 = vmatpush1.msra.mxu0 0.0
    %4019 = vmatprep.subr.mxu0 0.0
    %4020 = vmatpush1.msra.mxu0 0.0
    %4021 = vmatprep.subr.mxu0 0.0
    %4022 = vmatpush1.msra.mxu0 0.0
    %4023 = vmatprep.subr.mxu0 0.0
    %4024 = vmatpush1.msra.mxu0 0.0
    %4025 = vmatprep.subr.mxu0 0.0
    %4026 = vmatpush1.msra.mxu0 0.0
    %4027 = vmatprep.subr.mxu0 0.0
    %4028 = vmatpush1.msra.mxu0 0.0
    %4029 = vmatprep.subr.mxu0 0.0
    %4030 = vmatpush1.msra.mxu0 0.0
    %4031 = vmatprep.subr.mxu0 0.0
    %4032 = vmatpush1.msra.mxu0 0.0
    %4033 = vmatprep.subr.mxu0 0.0
    %4034 = vmatpush1.msra.mxu0 0.0
    %4035 = vmatprep.subr.mxu0 0.0
    %4036 = vmatpush1.msra.mxu0 0.0
    %4037 = vmatprep.subr.mxu0 0.0
    %4038 = vmatpush1.msra.mxu0 0.0
    %4039 = vmatprep.subr.mxu0 0.0
    %4040 = vmatpush1.msra.mxu0 0.0
    %4041 = vmatprep.subr.mxu0 0.0
    %4042 = vmatpush1.msra.mxu0 0.0
    %4043 = vmatprep.subr.mxu0 0.0
    %4044 = vmatpush1.msra.mxu0 0.0
    %4045 = vmatprep.subr.mxu0 0.0
    %4046 = vmatpush1.msra.mxu0 0.0
    %4047 = vmatprep.mubr.f32.mxu0 0.0
    %4048 = vmatmul.mubr.f32.gmra.mrb[0].mxu0 %v3961
    %v4049 = vpop.f32.mrb[0].mxu0
    %v4050 = vadd.f32 0.0, %v4049
    %v4051 = vpop.f32.mrb[0].mxu0
    %4052 = vmatprep.mubr.f32.mxu0 0.0
    %4053 = vmatmul.mubr.f32.gmra.mrb[0].mxu0 %v3962
    %v4054 = vpop.f32.mrb[0].mxu0
    %v4055 = vadd.f32 0.0, %v4054
    %v4056 = vpop.f32.mrb[0].mxu0
    %4057 = vmatprep.mubr.f32.mxu0 0.0
    %4058 = vmatmul.mubr.f32.gmra.mrb[0].mxu0 %v3963
    %v4059 = vpop.f32.mrb[0].mxu0
    %v4060 = vadd.f32 0.0, %v4059
    %v4061 = vpop.f32.mrb[0].mxu0
    %4062 = vmatprep.mubr.f32.mxu0 0.0
    %4063 = vmatmul.mubr.f32.gmra.mrb[0].mxu0 %v3964
    %v4064 = vpop.f32.mrb[0].mxu0
    %v4065 = vadd.f32 0.0, %v4064
    %v4066 = vpop.f32.mrb[0].mxu0
    %4067 = vmatprep.mubr.f32.mxu0 0.0
    %4068 = vmatmul.mubr.f32.gmra.mrb[0].mxu0 %v3965
    %v4069 = vpop.f32.mrb[0].mxu0
    %v4070 = vadd.f32 0.0, %v4069
    %v4071 = vpop.f32.mrb[0].mxu0
    %4072 = vmatprep.mubr.f32.mxu0 0.0
    %4073 = vmatmul.mubr.f32.gmra.mrb[0].mxu0 %v3966
    %v4074 = vpop.f32.mrb[0].mxu0
    %v4075 = vadd.f32 0.0, %v4074
    %v4076 = vpop.f32.mrb[0].mxu0
    %4077 = vdwg.mxu0
    %v4078 = vadd.f32 %v3679, %v4050
    %v4079 = vadd.f32 %v3680, %v4055
    %v4080 = vadd.f32 %v3681, %v4060
    %v4081 = vadd.f32 %v3682, %v4065
    %v4082 = vadd.f32 %v3683, %v4070
    %v4083 = vadd.f32 %v3684, %v4075
    %v4084 = vld [vmem:[%s57] sm:$0x1]
    %v4086 = vlaneseq
    %v4087 = vshrl.u32 %v4086, 7
    %v4088 = vsub.s32 0, %v4087
    %v4089 = vrot.slane %v4084, %v4088
    %v4091 = vadd.f32 %v4078, %v4089
    %v4092 = vadd.f32 %v4079, %v4089
    %v4093 = vadd.f32 %v4080, %v4089
    %v4094 = vadd.f32 %v4081, %v4089
    %v4095 = vadd.f32 %v4082, %v4089
    %v4096 = vadd.f32 %v4083, %v4089
    %v4097 = vsel %vm349, %v4091, 0.0
    %4098 = vadd.xlane.f32.xlu0 %v4097
    %v4099 = vpop.xlane.xlu0 %4098
    %v4100 = vsel %vm349, %v4092, 0.0
    %4101 = vadd.xlane.f32.xlu0 %v4100
    %v4102 = vpop.xlane.xlu0 %4101
    %v4103 = vsel %vm349, %v4093, 0.0
    %4104 = vadd.xlane.f32.xlu0 %v4103
    %v4105 = vpop.xlane.xlu0 %4104
    %v4106 = vsel %vm349, %v4094, 0.0
    %4107 = vadd.xlane.f32.xlu0 %v4106
    %v4108 = vpop.xlane.xlu0 %4107
    %v4109 = vsel %vm349, %v4095, 0.0
    %4110 = vadd.xlane.f32.xlu0 %v4109
    %v4111 = vpop.xlane.xlu0 %4110
    %v4112 = vsel %vm349, %v4096, 0.0
    %4113 = vadd.xlane.f32.xlu0 %v4112
    %v4114 = vpop.xlane.xlu0 %4113
    %v4115 = vmul.f32 %v4099, %v507
    %v4116 = vmul.f32 %v4102, %v507
    %v4117 = vmul.f32 %v4105, %v507
    %v4118 = vmul.f32 %v4108, %v507
    %v4119 = vmul.f32 %v4111, %v507
    %v4120 = vmul.f32 %v4114, %v507
    %v4121 = vsub.f32 %v4091, %v4115
    %v4122 = vsub.f32 %v4092, %v4116
    %v4123 = vsub.f32 %v4093, %v4117
    %v4124 = vsub.f32 %v4094, %v4118
    %v4125 = vsub.f32 %v4095, %v4119
    %v4126 = vsub.f32 %v4096, %v4120
    %v4127 = vmul.f32 %v4121, %v4121
    %v4128 = vmul.f32 %v4122, %v4122
    %v4129 = vmul.f32 %v4123, %v4123
    %v4130 = vmul.f32 %v4124, %v4124
    %v4131 = vmul.f32 %v4125, %v4125
    %v4132 = vmul.f32 %v4126, %v4126
    %v4133 = vsel %vm349, %v4127, 0.0
    %4134 = vadd.xlane.f32.xlu0 %v4133
    %v4135 = vpop.xlane.xlu0 %4134
    %v4136 = vsel %vm349, %v4128, 0.0
    %4137 = vadd.xlane.f32.xlu0 %v4136
    %v4138 = vpop.xlane.xlu0 %4137
    %v4139 = vsel %vm349, %v4129, 0.0
    %4140 = vadd.xlane.f32.xlu0 %v4139
    %v4141 = vpop.xlane.xlu0 %4140
    %v4142 = vsel %vm349, %v4130, 0.0
    %4143 = vadd.xlane.f32.xlu0 %v4142
    %v4144 = vpop.xlane.xlu0 %4143
    %v4145 = vsel %vm349, %v4131, 0.0
    %4146 = vadd.xlane.f32.xlu0 %v4145
    %v4147 = vpop.xlane.xlu0 %4146
    %v4148 = vsel %vm349, %v4132, 0.0
    %4149 = vadd.xlane.f32.xlu0 %v4148
    %v4150 = vpop.xlane.xlu0 %4149
    %v4151 = vmul.f32 %v4135, %v507
    %v4152 = vmul.f32 %v4138, %v507
    %v4153 = vmul.f32 %v4141, %v507
    %v4154 = vmul.f32 %v4144, %v507
    %v4155 = vmul.f32 %v4147, %v507
    %v4156 = vmul.f32 %v4150, %v507
    %v4157 = vadd.f32 %v4151, 1e-05
    %v4158 = vadd.f32 %v4152, 1e-05
    %v4159 = vadd.f32 %v4153, 1e-05
    %v4160 = vadd.f32 %v4154, 1e-05
    %v4161 = vadd.f32 %v4155, 1e-05
    %v4162 = vadd.f32 %v4156, 1e-05
    %v4163 = vrsqrt.pop %v4157
    %v4164 = vrsqrt.pop %v4158
    %v4165 = vrsqrt.pop %v4159
    %v4166 = vrsqrt.pop %v4160
    %v4167 = vrsqrt.pop %v4161
    %v4168 = vrsqrt.pop %v4162
    %v4169 = vmul.f32 %v4121, %v4163
    %v4170 = vmul.f32 %v4122, %v4164
    %v4171 = vmul.f32 %v4123, %v4165
    %v4172 = vmul.f32 %v4124, %v4166
    %v4173 = vmul.f32 %v4125, %v4167
    %v4174 = vmul.f32 %v4126, %v4168
    %v4175 = vld [vmem:[%s27] sm:$0x1]
    %v4177 = vlaneseq
    %v4178 = vshrl.u32 %v4177, 7
    %v4179 = vsub.s32 0, %v4178
    %v4180 = vrot.slane %v4175, %v4179
    %v4182 = vmul.f32 %v4169, %v4180
    %v4183 = vmul.f32 %v4170, %v4180
    %v4184 = vmul.f32 %v4171, %v4180
    %v4185 = vmul.f32 %v4172, %v4180
    %v4186 = vmul.f32 %v4173, %v4180
    %v4187 = vmul.f32 %v4174, %v4180
    %v4188 = vld [vmem:[%s29] sm:$0x1]
    %v4190 = vlaneseq
    %v4191 = vshrl.u32 %v4190, 7
    %v4192 = vsub.s32 0, %v4191
    %v4193 = vrot.slane %v4188, %v4192
    %v4195 = vadd.f32 %v4182, %v4193
    %v4196 = vadd.f32 %v4183, %v4193
    %v4197 = vadd.f32 %v4184, %v4193
    %v4198 = vadd.f32 %v4185, %v4193
    %v4199 = vadd.f32 %v4186, %v4193
    %v4200 = vadd.f32 %v4187, %v4193
    %4201 = vst.msk [vmem:[#allocation4] sm:$0xff] %vm349, %v4195
    %4202 = vst.msk [vmem:[#allocation4 + $0x8] sm:$0xff] %vm349, %v4196
    %4203 = vst.msk [vmem:[#allocation4 + $0x10] sm:$0xff] %vm349, %v4197
    %4204 = vst.msk [vmem:[#allocation4 + $0x18] sm:$0xff] %vm349, %v4198
    %4205 = vst.msk [vmem:[#allocation4 + $0x20] sm:$0xff] %vm349, %v4199
    %4206 = vst.msk [vmem:[#allocation4 + $0x28] sm:$0xff] %vm349, %v4200
    %v4207 = vld [vmem:[%s59] sm:$0xff]
    %v4208 = vld [vmem:[%s59 + $0x8] sm:$0xff]
    %v4209 = vld [vmem:[%s59 + $0x10] sm:$0xff]
    %v4210 = vld [vmem:[%s59 + $0x18] sm:$0xff]
    %v4212 = vsel %vm349, %v4197, 0
    %v4215 = vsel %vm349, %v4200, 0
    %4217 = vmatprep.subr.mxu0 0.0
    %4218 = vmatpush1.msra.mxu0 %v4207
    %4219 = vmatprep.subr.mxu0 0.0
    %4220 = vmatpush1.msra.mxu0 %v4208
    %4221 = vmatprep.subr.mxu0 0.0
    %4222 = vmatpush1.msra.mxu0 %v4209
    %4223 = vmatprep.subr.mxu0 0.0
    %4224 = vmatpush1.msra.mxu0 %v4210
    %4225 = vmatprep.subr.mxu0 0.0
    %4226 = vmatpush1.msra.mxu0 0.0
    %4227 = vmatprep.subr.mxu0 0.0
    %4228 = vmatpush1.msra.mxu0 0.0
    %4229 = vmatprep.subr.mxu0 0.0
    %4230 = vmatpush1.msra.mxu0 0.0
    %4231 = vmatprep.subr.mxu0 0.0
    %4232 = vmatpush1.msra.mxu0 0.0
    %4233 = vmatprep.subr.mxu0 0.0
    %4234 = vmatpush1.msra.mxu0 0.0
    %4235 = vmatprep.subr.mxu0 0.0
    %4236 = vmatpush1.msra.mxu0 0.0
    %4237 = vmatprep.subr.mxu0 0.0
    %4238 = vmatpush1.msra.mxu0 0.0
    %4239 = vmatprep.subr.mxu0 0.0
    %4240 = vmatpush1.msra.mxu0 0.0
    %4241 = vmatprep.subr.mxu0 0.0
    %4242 = vmatpush1.msra.mxu0 0.0
    %4243 = vmatprep.subr.mxu0 0.0
    %4244 = vmatpush1.msra.mxu0 0.0
    %4245 = vmatprep.subr.mxu0 0.0
    %4246 = vmatpush1.msra.mxu0 0.0
    %4247 = vmatprep.subr.mxu0 0.0
    %4248 = vmatpush1.msra.mxu0 0.0
    %4249 = vmatprep.subr.mxu0 0.0
    %4250 = vmatpush1.msra.mxu0 0.0
    %4251 = vmatprep.subr.mxu0 0.0
    %4252 = vmatpush1.msra.mxu0 0.0
    %4253 = vmatprep.subr.mxu0 0.0
    %4254 = vmatpush1.msra.mxu0 0.0
    %4255 = vmatprep.subr.mxu0 0.0
    %4256 = vmatpush1.msra.mxu0 0.0
    %4257 = vmatprep.subr.mxu0 0.0
    %4258 = vmatpush1.msra.mxu0 0.0
    %4259 = vmatprep.subr.mxu0 0.0
    %4260 = vmatpush1.msra.mxu0 0.0
    %4261 = vmatprep.subr.mxu0 0.0
    %4262 = vmatpush1.msra.mxu0 0.0
    %4263 = vmatprep.subr.mxu0 0.0
    %4264 = vmatpush1.msra.mxu0 0.0
    %4265 = vmatprep.subr.mxu0 0.0
    %4266 = vmatpush1.msra.mxu0 0.0
    %4267 = vmatprep.subr.mxu0 0.0
    %4268 = vmatpush1.msra.mxu0 0.0
    %4269 = vmatprep.subr.mxu0 0.0
    %4270 = vmatpush1.msra.mxu0 0.0
    %4271 = vmatprep.subr.mxu0 0.0
    %4272 = vmatpush1.msra.mxu0 0.0
    %4273 = vmatprep.subr.mxu0 0.0
    %4274 = vmatpush1.msra.mxu0 0.0
    %4275 = vmatprep.subr.mxu0 0.0
    %4276 = vmatpush1.msra.mxu0 0.0
    %4277 = vmatprep.subr.mxu0 0.0
    %4278 = vmatpush1.msra.mxu0 0.0
    %4279 = vmatprep.subr.mxu0 0.0
    %4280 = vmatpush1.msra.mxu0 0.0
    %4281 = vmatprep.mubr.f32.mxu0 0.0
    %4282 = vmatmul.mubr.f32.gmra.mrb[0].mxu0 %v4212
    %v4283 = vpop.f32.mrb[0].mxu0
    %v4284 = vadd.f32 0.0, %v4283
    %v4285 = vpop.f32.mrb[0].mxu0
    %4286 = vmatprep.mubr.f32.mxu0 0.0
    %4287 = vmatmul.mubr.f32.gmra.mrb[0].mxu0 %v4215
    %v4288 = vpop.f32.mrb[0].mxu0
    %v4289 = vadd.f32 0.0, %v4288
    %v4290 = vpop.f32.mrb[0].mxu0
    %4291 = vdwg.mxu0
    %4292 = vst [vmem:[%s63] sm:$0xff] %v4284
    %4293 = vst [vmem:[%s63 + $0x8] sm:$0xff] %v4289
    // Predicated region
    $region122: #{vision_encoder_decoder_forward.1} parent=1 // pred_check
      _
    $region123: #{vision_encoder_decoder_forward.1} parent=1 // pred_check_branch
      %4295 = sbr.rel (0) target = $region125
    $region124: #{vision_encoder_decoder_forward.1} parent=1 // pred_region
      %s4297 = ssub.s32 512, 512
      %4298 = vsyncadd [#allocation3], %s4297
      %s4299 = sshll.u32 [#allocation2], 4
      %s4300 = int_to_ptr.vmem [resolvable:$true] %s4299
      %4305 = dma.vmem_to_hbm [thread:$0]  %s4300, 512, %s61, [#allocation3], 128, 128, 8
    $region125: #{vision_encoder_decoder_forward.1} parent=1 // pred_fallthru
      _
    // Predicated region
    $region126: #{vision_encoder_decoder_forward.1} parent=1 // pred_check
      _
    $region127: #{vision_encoder_decoder_forward.1} parent=1 // pred_check_branch
      %4307 = sbr.rel (0) target = $region129
    $region128: #{vision_encoder_decoder_forward.1} parent=1 // pred_region
      _
    $region129: #{vision_encoder_decoder_forward.1} parent=1 // pred_fallthru
      _
    // Predicated region
    $region130: #{vision_encoder_decoder_forward.1} parent=1 // pred_check
      _
    $region131: #{vision_encoder_decoder_forward.1} parent=1 // pred_check_branch
      %4309 = sbr.rel (0) target = $region133
    $region132: #{vision_encoder_decoder_forward.1} parent=1 // pred_region
      %s4311 = ssub.s32 768, 768
      %4312 = vsyncadd [#allocation5], %s4311
      %s4313 = sshll.u32 [#allocation4], 4
      %s4314 = int_to_ptr.vmem [resolvable:$true] %s4313
      %4319 = dma.vmem_to_hbm [thread:$0]  %s4314, 768, %s65, [#allocation5], 128, 128, 8
    $region133: #{vision_encoder_decoder_forward.1} parent=1 // pred_fallthru
      _
    // Predicated region
    $region134: #{vision_encoder_decoder_forward.1} parent=1 // pred_check
      _
    $region135: #{vision_encoder_decoder_forward.1} parent=1 // pred_check_branch
      %4321 = sbr.rel (0) target = $region137
    $region136: #{vision_encoder_decoder_forward.1} parent=1 // pred_region
      %4322 = dma.done [#allocation3], 512
    $region137: #{vision_encoder_decoder_forward.1} parent=1 // pred_fallthru
      _
    // Predicated region
    $region138: #{vision_encoder_decoder_forward.1} parent=1 // pred_check
      _
    $region139: #{vision_encoder_decoder_forward.1} parent=1 // pred_check_branch
      %4324 = sbr.rel (0) target = $region141
    $region140: #{vision_encoder_decoder_forward.1} parent=1 // pred_region
      _
    $region141: #{vision_encoder_decoder_forward.1} parent=1 // pred_fallthru
      _
    // Predicated region
    $region142: #{vision_encoder_decoder_forward.1} parent=1 // pred_check
      _
    $region143: #{vision_encoder_decoder_forward.1} parent=1 // pred_check_branch
      %4326 = sbr.rel (0) target = $region145
    $region144: #{vision_encoder_decoder_forward.1} parent=1 // pred_region
      %4327 = dma.done [#allocation5], 768
    $region145: #{vision_encoder_decoder_forward.1} parent=1 // pred_fallthru
      _
    %4328 = vsyncpa [#allocation3], 1
    %4329 = vsyncpa [#allocation5], 1

</llo_original>
